<compile_context>
chip_gen: v7x
topology: tpu7x:2x2x1
jax: 0.10.0
libtpu: 0.0.40
codegen_flags: <defaults>
</compile_context>

<pallas_src>
import jax
import jax.numpy as jnp
from jax.experimental import pallas as pl
from jax.experimental.pallas import tpu as pltpu

SELU_ALPHA = 1.6732632423543772
SELU_SCALE = 1.0507009873554805
MBSTD_EPS = 1e-8


def _selu(x):
    # clamp exp argument: the positive branch's exp result is discarded anyway
    return SELU_SCALE * jnp.where(
        x > 0, x, SELU_ALPHA * (jnp.exp(jnp.minimum(x, 0.0)) - 1.0))


def last_hdcgan_block(x_nchw, w1_oihw, w2_oihw, w3_oihw):
    """x_nchw: (B, C1, H, W); weights in PyTorch OIHW layout (bias=False).
    Returns (B, 1, H-3, W-3) like the PyTorch module."""
    B, C1, H, W = x_nchw.shape
    Cm = w1_oihw.shape[0]            # conv1 out channels (== C1)
    C2 = w2_oihw.shape[0]            # conv2 out channels
    Ho, Wo = H - 3, W - 3
    K1 = 9 * C1
    K1P = 128                        # lane-dense K for conv1's single matmul
    f32 = jnp.float32

    x = jnp.transpose(x_nchw, (0, 2, 3, 1)).astype(f32)              # NHWC (B,H,W,C1)

    # ---- wrapper-side layout plumbing ----
    x_flat = x.reshape(B, H * W * C1)                                 # for in-kernel mbstd

    xp = jnp.pad(x, ((0, 0), (1, 1), (1, 1), (0, 0)))                 # zero halo
    cols1 = jnp.concatenate(
        [xp[:, kh:kh + H, kw:kw + W, :].reshape(B * H * W, C1)
         for kh in range(3) for kw in range(3)], axis=-1)             # (B*H*W, 9*C1)
    cols1 = jnp.pad(cols1, ((0, 0), (0, K1P - K1)))                   # (B*H*W, 128)

    w1_hwio = jnp.transpose(w1_oihw, (2, 3, 1, 0)).astype(f32)        # (3,3,C1+1,Cm)
    w1p = jnp.pad(w1_hwio[:, :, :C1, :].reshape(K1, Cm),
                  ((0, K1P - K1), (0, 0)))                            # (128, Cm)
    w1s = w1_hwio[:, :, C1, :]                                        # (3,3,Cm) stddev-chan taps

    # unit bias: sum of in-bounds stddev-channel taps per output position
    ah = jnp.arange(H)[:, None] + jnp.arange(3)[None, :]
    aw = jnp.arange(W)[:, None] + jnp.arange(3)[None, :]
    ih = ((ah >= 1) & (ah <= H)).astype(f32)                          # (H, 3)
    iw = ((aw >= 1) & (aw <= W)).astype(f32)                          # (W, 3)
    u1 = jnp.einsum('hi,wj,ijc->hwc', ih, iw, w1s).reshape(H * W, Cm)
    u1b = jnp.tile(u1, (B, 1))                                        # (B*H*W, Cm)

    w2p = jnp.transpose(w2_oihw, (2, 3, 1, 0)).astype(f32).reshape(16, Cm, C2)
    w3p = jnp.pad(
        jnp.transpose(w3_oihw, (2, 3, 1, 0)).astype(f32).reshape(C2, 1),
        ((0, 0), (0, 127)))                                           # (C2, 128) lane-dense

    def kernel(xf_ref, c1_ref, w1_ref, u1_ref, w2_ref, w3_ref, o_ref):
        # xf_ref: (B, H*W*C1)     raw input for the minibatch-stddev scalar
        # c1_ref: (B*H*W, 128)    wrapper-side im2col of conv1 (zero-padded K)
        # w1_ref: (128, Cm)       packed conv1 weights (zero rows in pad region)
        # u1_ref: (B*H*W, Cm)     unit bias folding the constant stddev channel
        # w2_ref: (16, Cm, C2)    conv2 per-tap weights
        # w3_ref: (C2, 128)       validator weights, zero-padded to 128 lanes
        # o_ref : (B*Ho*Wo, 128)  result in lane 0

        # ---- minibatch stddev scalar (two-pass, matches the reference) ----
        xf = xf_ref[...]
        mu = jnp.mean(xf, axis=0, keepdims=True)
        var = jnp.mean((xf - mu) * (xf - mu), axis=0, keepdims=True)
        std = jnp.sqrt(var + MBSTD_EPS)
        s = jnp.sum(std, axis=1, keepdims=True) * (1.0 / std.shape[1])   # (1,1)

        # ---- conv1 (3x3, pad 1): one lane-dense im2col matmul ----
        y1 = jnp.dot(c1_ref[...], w1_ref[...], preferred_element_type=jnp.float32)
        y1 = _selu(y1 + s * u1_ref[...])                                 # (B*H*W, Cm)

        # ---- conv2 (4x4, valid): 16 accumulated tap matmuls (no concat) ----
        y1 = y1.reshape(B, H, W, Cm)
        acc = jnp.zeros((B * Ho * Wo, C2), jnp.float32)
        for kh in range(4):
            for kw in range(4):
                tap = y1[:, kh:kh + Ho, kw:kw + Wo, :].reshape(B * Ho * Wo, Cm)
                acc = acc + jnp.dot(tap, w2_ref[kh * 4 + kw],
                                    preferred_element_type=jnp.float32)
        y2 = _selu(acc)                                                  # (B*Ho*Wo, C2)

        # ---- validator (1x1): lane-dense unmasked store, result in lane 0 ----
        o_ref[...] = jnp.dot(y2, w3_ref[...], preferred_element_type=jnp.float32)

    vmem = pl.BlockSpec(memory_space=pltpu.MemorySpace.VMEM)
    out = pl.pallas_call(
        kernel,
        out_shape=jax.ShapeDtypeStruct((B * Ho * Wo, 128), f32),
        in_specs=[vmem, vmem, vmem, vmem, vmem, vmem],
        out_specs=vmem,
    )(x_flat, cols1, w1p, u1b, w2p, w3p)

    return out[:, 0].reshape(B, 1, Ho, Wo)                              # back to NCHW


def _reference(x, w1, w2, w3):
    """Pure-JAX (XLA conv) reference of the PyTorch forward, NCHW throughout."""
    B, C, H, W = x.shape
    mu = jnp.mean(x, axis=0, keepdims=True)
    std = jnp.sqrt(jnp.mean((x - mu) ** 2, axis=0) + MBSTD_EPS)
    s = jnp.mean(std)
    xc = jnp.concatenate([x, jnp.full((B, 1, H, W), s, x.dtype)], axis=1)

    def conv(inp, w, pad):
        dn = jax.lax.conv_dimension_numbers(inp.shape, w.shape, ('NCHW', 'OIHW', 'NCHW'))
        return jax.lax.conv_general_dilated(inp, w, (1, 1), pad, dimension_numbers=dn)

    y = jax.nn.selu(conv(xc, w1, ((1, 1), (1, 1))))
    y = jax.nn.selu(conv(y, w2, 'VALID'))
    return conv(y, w3, 'VALID')


if __name__ == "__main__":
    in_channels, out_channels, additional_channels = 4, 8, 2
    C1 = in_channels + additional_channels        # input channels to the block = 6
    C2 = out_channels + additional_channels       # conv2 output channels = 10
    B, H, W = 4, 7, 7

    key = jax.random.PRNGKey(0)
    kx, k1, k2, k3 = jax.random.split(key, 4)
    x = jax.random.normal(kx, (B, C1, H, W), jnp.float32)
    # deterministic fan-in scaled init, PyTorch OIHW weight layouts (bias=False)
    w1 = jax.random.normal(k1, (C1, C1 + 1, 3, 3), jnp.float32) / (((C1 + 1) * 9) ** 0.5)
    w2 = jax.random.normal(k2, (C2, C1, 4, 4), jnp.float32) / ((C1 * 16) ** 0.5)
    w3 = jax.random.normal(k3, (1, C2, 1, 1), jnp.float32) / (C2 ** 0.5)

    out = jax.block_until_ready(last_hdcgan_block(x, w1, w2, w3))

    ref = _reference(x, w1, w2, w3)
    assert out.shape == ref.shape == (B, 1, H - 3, W - 3), (out.shape, ref.shape)
    if not jnp.allclose(out, ref, rtol=1e-2, atol=1e-2):
        raise AssertionError(f"mismatch, max abs diff = {jnp.max(jnp.abs(out - ref))}")
    print("KERNEL_OK")
</pallas_src>

<mosaic_0001>
module attributes {stable_mosaic.version = 11 : i64} {
  func.func @kernel(%arg0: memref<4x294xf32, #tpu.memory_space<vmem>>, %arg1: memref<196x128xf32, #tpu.memory_space<vmem>>, %arg2: memref<128x6xf32, #tpu.memory_space<vmem>>, %arg3: memref<196x6xf32, #tpu.memory_space<vmem>>, %arg4: memref<16x6x10xf32, #tpu.memory_space<vmem>>, %arg5: memref<10x128xf32, #tpu.memory_space<vmem>>, %arg6: memref<64x128xf32, #tpu.memory_space<vmem>>) attributes {dimension_semantics = [], scalar_prefetch = 0 : i64, scratch_operands = 0 : i64, tpu.core_type = #tpu.core_type<tc>} {
    %c0 = arith.constant 0 : index
    %c0_0 = arith.constant 0 : index
    %0 = vector.load %arg0[%c0, %c0_0] : memref<4x294xf32, #tpu.memory_space<vmem>>, vector<4x294xf32>
    %cst = arith.constant dense<0.000000e+00> : vector<294xf32>
    %1 = vector.multi_reduction <add>, %0, %cst [0] : vector<4x294xf32> to vector<294xf32>
    %2 = vector.shape_cast %1 : vector<294xf32> to vector<1x294xf32>
    %cst_1 = arith.constant 4.000000e+00 : f32
    %3 = vector.broadcast %cst_1 : f32 to vector<1x294xf32>
    %4 = arith.divf %2, %3 : vector<1x294xf32>
    %5 = vector.broadcast %4 : vector<1x294xf32> to vector<4x294xf32>
    %6 = arith.subf %0, %5 : vector<4x294xf32>
    %7 = vector.broadcast %4 : vector<1x294xf32> to vector<4x294xf32>
    %8 = arith.subf %0, %7 : vector<4x294xf32>
    %9 = arith.mulf %6, %8 : vector<4x294xf32>
    %cst_2 = arith.constant dense<0.000000e+00> : vector<294xf32>
    %10 = vector.multi_reduction <add>, %9, %cst_2 [0] : vector<4x294xf32> to vector<294xf32>
    %11 = vector.shape_cast %10 : vector<294xf32> to vector<1x294xf32>
    %cst_3 = arith.constant 4.000000e+00 : f32
    %12 = vector.broadcast %cst_3 : f32 to vector<1x294xf32>
    %13 = arith.divf %11, %12 : vector<1x294xf32>
    %cst_4 = arith.constant 9.99999993E-9 : f32
    %14 = vector.broadcast %cst_4 : f32 to vector<1x294xf32>
    %15 = arith.addf %13, %14 : vector<1x294xf32>
    %16 = math.sqrt %15 : vector<1x294xf32>
    %cst_5 = arith.constant dense<0.000000e+00> : vector<1xf32>
    %17 = vector.multi_reduction <add>, %16, %cst_5 [1] : vector<1x294xf32> to vector<1xf32>
    %18 = vector.shape_cast %17 : vector<1xf32> to vector<1x1xf32>
    %cst_6 = arith.constant 0.00340136047 : f32
    %19 = vector.broadcast %cst_6 : f32 to vector<1x1xf32>
    %20 = arith.mulf %18, %19 : vector<1x1xf32>
    %c0_7 = arith.constant 0 : index
    %c0_8 = arith.constant 0 : index
    %21 = vector.load %arg1[%c0_7, %c0_8] : memref<196x128xf32, #tpu.memory_space<vmem>>, vector<196x128xf32>
    %c0_9 = arith.constant 0 : index
    %c0_10 = arith.constant 0 : index
    %22 = vector.load %arg2[%c0_9, %c0_10] : memref<128x6xf32, #tpu.memory_space<vmem>>, vector<128x6xf32>
    %cst_11 = arith.constant dense<0.000000e+00> : vector<196x6xf32>
    %23 = tpu.matmul %21, %22, %cst_11 {dimension_numbers = #tpu.dot_dimension_numbers<[1], [0], [0], [1], [0, 0, 1, 1], [], []>} : vector<196x128xf32>, vector<128x6xf32>, vector<196x6xf32> -> vector<196x6xf32>
    %c0_12 = arith.constant 0 : index
    %c0_13 = arith.constant 0 : index
    %24 = vector.load %arg3[%c0_12, %c0_13] : memref<196x6xf32, #tpu.memory_space<vmem>>, vector<196x6xf32>
    %25 = vector.broadcast %20 : vector<1x1xf32> to vector<196x6xf32>
    %26 = arith.mulf %25, %24 : vector<196x6xf32>
    %27 = arith.addf %23, %26 : vector<196x6xf32>
    %cst_14 = arith.constant 0.000000e+00 : f32
    %28 = vector.broadcast %cst_14 : f32 to vector<196x6xf32>
    %29 = arith.cmpf ogt, %27, %28 : vector<196x6xf32>
    %cst_15 = arith.constant 0.000000e+00 : f32
    %30 = vector.broadcast %cst_15 : f32 to vector<196x6xf32>
    %31 = arith.minimumf %27, %30 : vector<196x6xf32>
    %32 = math.exp %31 : vector<196x6xf32>
    %cst_16 = arith.constant 1.000000e+00 : f32
    %33 = vector.broadcast %cst_16 : f32 to vector<196x6xf32>
    %34 = arith.subf %32, %33 : vector<196x6xf32>
    %cst_17 = arith.constant 1.67326319 : f32
    %35 = vector.broadcast %cst_17 : f32 to vector<196x6xf32>
    %36 = arith.mulf %35, %34 : vector<196x6xf32>
    %37 = arith.select %29, %27, %36 : vector<196x6xi1>, vector<196x6xf32>
    %cst_18 = arith.constant 1.05070102 : f32
    %38 = vector.broadcast %cst_18 : f32 to vector<196x6xf32>
    %39 = arith.mulf %38, %37 : vector<196x6xf32>
    %40 = vector.shape_cast %39 : vector<196x6xf32> to vector<4x7x7x6xf32>
    %cst_19 = arith.constant 0.000000e+00 : f32
    %41 = vector.broadcast %cst_19 : f32 to vector<64x10xf32>
    %42 = vector.extract_strided_slice %40 {offsets = [0, 0, 0, 0], sizes = [4, 4, 4, 6], strides = [1, 1, 1, 1]} : vector<4x7x7x6xf32> to vector<4x4x4x6xf32>
    %43 = vector.shape_cast %42 : vector<4x4x4x6xf32> to vector<64x6xf32>
    %c0_20 = arith.constant 0 : index
    %c0_21 = arith.constant 0 : index
    %c0_22 = arith.constant 0 : index
    %44 = vector.load %arg4[%c0_20, %c0_21, %c0_22] : memref<16x6x10xf32, #tpu.memory_space<vmem>>, vector<1x6x10xf32>
    %45 = vector.shape_cast %44 : vector<1x6x10xf32> to vector<6x10xf32>
    %cst_23 = arith.constant dense<0.000000e+00> : vector<64x10xf32>
    %46 = tpu.matmul %43, %45, %cst_23 {dimension_numbers = #tpu.dot_dimension_numbers<[1], [0], [0], [1], [0, 0, 1, 1], [], []>} : vector<64x6xf32>, vector<6x10xf32>, vector<64x10xf32> -> vector<64x10xf32>
    %47 = arith.addf %41, %46 : vector<64x10xf32>
    %48 = vector.extract_strided_slice %40 {offsets = [0, 0, 1, 0], sizes = [4, 4, 4, 6], strides = [1, 1, 1, 1]} : vector<4x7x7x6xf32> to vector<4x4x4x6xf32>
    %49 = vector.shape_cast %48 : vector<4x4x4x6xf32> to vector<64x6xf32>
    %c1 = arith.constant 1 : index
    %c0_24 = arith.constant 0 : index
    %c0_25 = arith.constant 0 : index
    %50 = vector.load %arg4[%c1, %c0_24, %c0_25] : memref<16x6x10xf32, #tpu.memory_space<vmem>>, vector<1x6x10xf32>
    %51 = vector.shape_cast %50 : vector<1x6x10xf32> to vector<6x10xf32>
    %cst_26 = arith.constant dense<0.000000e+00> : vector<64x10xf32>
    %52 = tpu.matmul %49, %51, %cst_26 {dimension_numbers = #tpu.dot_dimension_numbers<[1], [0], [0], [1], [0, 0, 1, 1], [], []>} : vector<64x6xf32>, vector<6x10xf32>, vector<64x10xf32> -> vector<64x10xf32>
    %53 = arith.addf %47, %52 : vector<64x10xf32>
    %54 = vector.extract_strided_slice %40 {offsets = [0, 0, 2, 0], sizes = [4, 4, 4, 6], strides = [1, 1, 1, 1]} : vector<4x7x7x6xf32> to vector<4x4x4x6xf32>
    %55 = vector.shape_cast %54 : vector<4x4x4x6xf32> to vector<64x6xf32>
    %c2 = arith.constant 2 : index
    %c0_27 = arith.constant 0 : index
    %c0_28 = arith.constant 0 : index
    %56 = vector.load %arg4[%c2, %c0_27, %c0_28] : memref<16x6x10xf32, #tpu.memory_space<vmem>>, vector<1x6x10xf32>
    %57 = vector.shape_cast %56 : vector<1x6x10xf32> to vector<6x10xf32>
    %cst_29 = arith.constant dense<0.000000e+00> : vector<64x10xf32>
    %58 = tpu.matmul %55, %57, %cst_29 {dimension_numbers = #tpu.dot_dimension_numbers<[1], [0], [0], [1], [0, 0, 1, 1], [], []>} : vector<64x6xf32>, vector<6x10xf32>, vector<64x10xf32> -> vector<64x10xf32>
    %59 = arith.addf %53, %58 : vector<64x10xf32>
    %60 = vector.extract_strided_slice %40 {offsets = [0, 0, 3, 0], sizes = [4, 4, 4, 6], strides = [1, 1, 1, 1]} : vector<4x7x7x6xf32> to vector<4x4x4x6xf32>
    %61 = vector.shape_cast %60 : vector<4x4x4x6xf32> to vector<64x6xf32>
    %c3 = arith.constant 3 : index
    %c0_30 = arith.constant 0 : index
    %c0_31 = arith.constant 0 : index
    %62 = vector.load %arg4[%c3, %c0_30, %c0_31] : memref<16x6x10xf32, #tpu.memory_space<vmem>>, vector<1x6x10xf32>
    %63 = vector.shape_cast %62 : vector<1x6x10xf32> to vector<6x10xf32>
    %cst_32 = arith.constant dense<0.000000e+00> : vector<64x10xf32>
    %64 = tpu.matmul %61, %63, %cst_32 {dimension_numbers = #tpu.dot_dimension_numbers<[1], [0], [0], [1], [0, 0, 1, 1], [], []>} : vector<64x6xf32>, vector<6x10xf32>, vector<64x10xf32> -> vector<64x10xf32>
    %65 = arith.addf %59, %64 : vector<64x10xf32>
    %66 = vector.extract_strided_slice %40 {offsets = [0, 1, 0, 0], sizes = [4, 4, 4, 6], strides = [1, 1, 1, 1]} : vector<4x7x7x6xf32> to vector<4x4x4x6xf32>
    %67 = vector.shape_cast %66 : vector<4x4x4x6xf32> to vector<64x6xf32>
    %c4 = arith.constant 4 : index
    %c0_33 = arith.constant 0 : index
    %c0_34 = arith.constant 0 : index
    %68 = vector.load %arg4[%c4, %c0_33, %c0_34] : memref<16x6x10xf32, #tpu.memory_space<vmem>>, vector<1x6x10xf32>
    %69 = vector.shape_cast %68 : vector<1x6x10xf32> to vector<6x10xf32>
    %cst_35 = arith.constant dense<0.000000e+00> : vector<64x10xf32>
    %70 = tpu.matmul %67, %69, %cst_35 {dimension_numbers = #tpu.dot_dimension_numbers<[1], [0], [0], [1], [0, 0, 1, 1], [], []>} : vector<64x6xf32>, vector<6x10xf32>, vector<64x10xf32> -> vector<64x10xf32>
    %71 = arith.addf %65, %70 : vector<64x10xf32>
    %72 = vector.extract_strided_slice %40 {offsets = [0, 1, 1, 0], sizes = [4, 4, 4, 6], strides = [1, 1, 1, 1]} : vector<4x7x7x6xf32> to vector<4x4x4x6xf32>
    %73 = vector.shape_cast %72 : vector<4x4x4x6xf32> to vector<64x6xf32>
    %c5 = arith.constant 5 : index
    %c0_36 = arith.constant 0 : index
    %c0_37 = arith.constant 0 : index
    %74 = vector.load %arg4[%c5, %c0_36, %c0_37] : memref<16x6x10xf32, #tpu.memory_space<vmem>>, vector<1x6x10xf32>
    %75 = vector.shape_cast %74 : vector<1x6x10xf32> to vector<6x10xf32>
    %cst_38 = arith.constant dense<0.000000e+00> : vector<64x10xf32>
    %76 = tpu.matmul %73, %75, %cst_38 {dimension_numbers = #tpu.dot_dimension_numbers<[1], [0], [0], [1], [0, 0, 1, 1], [], []>} : vector<64x6xf32>, vector<6x10xf32>, vector<64x10xf32> -> vector<64x10xf32>
    %77 = arith.addf %71, %76 : vector<64x10xf32>
    %78 = vector.extract_strided_slice %40 {offsets = [0, 1, 2, 0], sizes = [4, 4, 4, 6], strides = [1, 1, 1, 1]} : vector<4x7x7x6xf32> to vector<4x4x4x6xf32>
    %79 = vector.shape_cast %78 : vector<4x4x4x6xf32> to vector<64x6xf32>
    %c6 = arith.constant 6 : index
    %c0_39 = arith.constant 0 : index
    %c0_40 = arith.constant 0 : index
    %80 = vector.load %arg4[%c6, %c0_39, %c0_40] : memref<16x6x10xf32, #tpu.memory_space<vmem>>, vector<1x6x10xf32>
    %81 = vector.shape_cast %80 : vector<1x6x10xf32> to vector<6x10xf32>
    %cst_41 = arith.constant dense<0.000000e+00> : vector<64x10xf32>
    %82 = tpu.matmul %79, %81, %cst_41 {dimension_numbers = #tpu.dot_dimension_numbers<[1], [0], [0], [1], [0, 0, 1, 1], [], []>} : vector<64x6xf32>, vector<6x10xf32>, vector<64x10xf32> -> vector<64x10xf32>
    %83 = arith.addf %77, %82 : vector<64x10xf32>
    %84 = vector.extract_strided_slice %40 {offsets = [0, 1, 3, 0], sizes = [4, 4, 4, 6], strides = [1, 1, 1, 1]} : vector<4x7x7x6xf32> to vector<4x4x4x6xf32>
    %85 = vector.shape_cast %84 : vector<4x4x4x6xf32> to vector<64x6xf32>
    %c7 = arith.constant 7 : index
    %c0_42 = arith.constant 0 : index
    %c0_43 = arith.constant 0 : index
    %86 = vector.load %arg4[%c7, %c0_42, %c0_43] : memref<16x6x10xf32, #tpu.memory_space<vmem>>, vector<1x6x10xf32>
    %87 = vector.shape_cast %86 : vector<1x6x10xf32> to vector<6x10xf32>
    %cst_44 = arith.constant dense<0.000000e+00> : vector<64x10xf32>
    %88 = tpu.matmul %85, %87, %cst_44 {dimension_numbers = #tpu.dot_dimension_numbers<[1], [0], [0], [1], [0, 0, 1, 1], [], []>} : vector<64x6xf32>, vector<6x10xf32>, vector<64x10xf32> -> vector<64x10xf32>
    %89 = arith.addf %83, %88 : vector<64x10xf32>
    %90 = vector.extract_strided_slice %40 {offsets = [0, 2, 0, 0], sizes = [4, 4, 4, 6], strides = [1, 1, 1, 1]} : vector<4x7x7x6xf32> to vector<4x4x4x6xf32>
    %91 = vector.shape_cast %90 : vector<4x4x4x6xf32> to vector<64x6xf32>
    %c8 = arith.constant 8 : index
    %c0_45 = arith.constant 0 : index
    %c0_46 = arith.constant 0 : index
    %92 = vector.load %arg4[%c8, %c0_45, %c0_46] : memref<16x6x10xf32, #tpu.memory_space<vmem>>, vector<1x6x10xf32>
    %93 = vector.shape_cast %92 : vector<1x6x10xf32> to vector<6x10xf32>
    %cst_47 = arith.constant dense<0.000000e+00> : vector<64x10xf32>
    %94 = tpu.matmul %91, %93, %cst_47 {dimension_numbers = #tpu.dot_dimension_numbers<[1], [0], [0], [1], [0, 0, 1, 1], [], []>} : vector<64x6xf32>, vector<6x10xf32>, vector<64x10xf32> -> vector<64x10xf32>
    %95 = arith.addf %89, %94 : vector<64x10xf32>
    %96 = vector.extract_strided_slice %40 {offsets = [0, 2, 1, 0], sizes = [4, 4, 4, 6], strides = [1, 1, 1, 1]} : vector<4x7x7x6xf32> to vector<4x4x4x6xf32>
    %97 = vector.shape_cast %96 : vector<4x4x4x6xf32> to vector<64x6xf32>
    %c9 = arith.constant 9 : index
    %c0_48 = arith.constant 0 : index
    %c0_49 = arith.constant 0 : index
    %98 = vector.load %arg4[%c9, %c0_48, %c0_49] : memref<16x6x10xf32, #tpu.memory_space<vmem>>, vector<1x6x10xf32>
    %99 = vector.shape_cast %98 : vector<1x6x10xf32> to vector<6x10xf32>
    %cst_50 = arith.constant dense<0.000000e+00> : vector<64x10xf32>
    %100 = tpu.matmul %97, %99, %cst_50 {dimension_numbers = #tpu.dot_dimension_numbers<[1], [0], [0], [1], [0, 0, 1, 1], [], []>} : vector<64x6xf32>, vector<6x10xf32>, vector<64x10xf32> -> vector<64x10xf32>
    %101 = arith.addf %95, %100 : vector<64x10xf32>
    %102 = vector.extract_strided_slice %40 {offsets = [0, 2, 2, 0], sizes = [4, 4, 4, 6], strides = [1, 1, 1, 1]} : vector<4x7x7x6xf32> to vector<4x4x4x6xf32>
    %103 = vector.shape_cast %102 : vector<4x4x4x6xf32> to vector<64x6xf32>
    %c10 = arith.constant 10 : index
    %c0_51 = arith.constant 0 : index
    %c0_52 = arith.constant 0 : index
    %104 = vector.load %arg4[%c10, %c0_51, %c0_52] : memref<16x6x10xf32, #tpu.memory_space<vmem>>, vector<1x6x10xf32>
    %105 = vector.shape_cast %104 : vector<1x6x10xf32> to vector<6x10xf32>
    %cst_53 = arith.constant dense<0.000000e+00> : vector<64x10xf32>
    %106 = tpu.matmul %103, %105, %cst_53 {dimension_numbers = #tpu.dot_dimension_numbers<[1], [0], [0], [1], [0, 0, 1, 1], [], []>} : vector<64x6xf32>, vector<6x10xf32>, vector<64x10xf32> -> vector<64x10xf32>
    %107 = arith.addf %101, %106 : vector<64x10xf32>
    %108 = vector.extract_strided_slice %40 {offsets = [0, 2, 3, 0], sizes = [4, 4, 4, 6], strides = [1, 1, 1, 1]} : vector<4x7x7x6xf32> to vector<4x4x4x6xf32>
    %109 = vector.shape_cast %108 : vector<4x4x4x6xf32> to vector<64x6xf32>
    %c11 = arith.constant 11 : index
    %c0_54 = arith.constant 0 : index
    %c0_55 = arith.constant 0 : index
    %110 = vector.load %arg4[%c11, %c0_54, %c0_55] : memref<16x6x10xf32, #tpu.memory_space<vmem>>, vector<1x6x10xf32>
    %111 = vector.shape_cast %110 : vector<1x6x10xf32> to vector<6x10xf32>
    %cst_56 = arith.constant dense<0.000000e+00> : vector<64x10xf32>
    %112 = tpu.matmul %109, %111, %cst_56 {dimension_numbers = #tpu.dot_dimension_numbers<[1], [0], [0], [1], [0, 0, 1, 1], [], []>} : vector<64x6xf32>, vector<6x10xf32>, vector<64x10xf32> -> vector<64x10xf32>
    %113 = arith.addf %107, %112 : vector<64x10xf32>
    %114 = vector.extract_strided_slice %40 {offsets = [0, 3, 0, 0], sizes = [4, 4, 4, 6], strides = [1, 1, 1, 1]} : vector<4x7x7x6xf32> to vector<4x4x4x6xf32>
    %115 = vector.shape_cast %114 : vector<4x4x4x6xf32> to vector<64x6xf32>
    %c12 = arith.constant 12 : index
    %c0_57 = arith.constant 0 : index
    %c0_58 = arith.constant 0 : index
    %116 = vector.load %arg4[%c12, %c0_57, %c0_58] : memref<16x6x10xf32, #tpu.memory_space<vmem>>, vector<1x6x10xf32>
    %117 = vector.shape_cast %116 : vector<1x6x10xf32> to vector<6x10xf32>
    %cst_59 = arith.constant dense<0.000000e+00> : vector<64x10xf32>
    %118 = tpu.matmul %115, %117, %cst_59 {dimension_numbers = #tpu.dot_dimension_numbers<[1], [0], [0], [1], [0, 0, 1, 1], [], []>} : vector<64x6xf32>, vector<6x10xf32>, vector<64x10xf32> -> vector<64x10xf32>
    %119 = arith.addf %113, %118 : vector<64x10xf32>
    %120 = vector.extract_strided_slice %40 {offsets = [0, 3, 1, 0], sizes = [4, 4, 4, 6], strides = [1, 1, 1, 1]} : vector<4x7x7x6xf32> to vector<4x4x4x6xf32>
    %121 = vector.shape_cast %120 : vector<4x4x4x6xf32> to vector<64x6xf32>
    %c13 = arith.constant 13 : index
    %c0_60 = arith.constant 0 : index
    %c0_61 = arith.constant 0 : index
    %122 = vector.load %arg4[%c13, %c0_60, %c0_61] : memref<16x6x10xf32, #tpu.memory_space<vmem>>, vector<1x6x10xf32>
    %123 = vector.shape_cast %122 : vector<1x6x10xf32> to vector<6x10xf32>
    %cst_62 = arith.constant dense<0.000000e+00> : vector<64x10xf32>
    %124 = tpu.matmul %121, %123, %cst_62 {dimension_numbers = #tpu.dot_dimension_numbers<[1], [0], [0], [1], [0, 0, 1, 1], [], []>} : vector<64x6xf32>, vector<6x10xf32>, vector<64x10xf32> -> vector<64x10xf32>
    %125 = arith.addf %119, %124 : vector<64x10xf32>
    %126 = vector.extract_strided_slice %40 {offsets = [0, 3, 2, 0], sizes = [4, 4, 4, 6], strides = [1, 1, 1, 1]} : vector<4x7x7x6xf32> to vector<4x4x4x6xf32>
    %127 = vector.shape_cast %126 : vector<4x4x4x6xf32> to vector<64x6xf32>
    %c14 = arith.constant 14 : index
    %c0_63 = arith.constant 0 : index
    %c0_64 = arith.constant 0 : index
    %128 = vector.load %arg4[%c14, %c0_63, %c0_64] : memref<16x6x10xf32, #tpu.memory_space<vmem>>, vector<1x6x10xf32>
    %129 = vector.shape_cast %128 : vector<1x6x10xf32> to vector<6x10xf32>
    %cst_65 = arith.constant dense<0.000000e+00> : vector<64x10xf32>
    %130 = tpu.matmul %127, %129, %cst_65 {dimension_numbers = #tpu.dot_dimension_numbers<[1], [0], [0], [1], [0, 0, 1, 1], [], []>} : vector<64x6xf32>, vector<6x10xf32>, vector<64x10xf32> -> vector<64x10xf32>
    %131 = arith.addf %125, %130 : vector<64x10xf32>
    %132 = vector.extract_strided_slice %40 {offsets = [0, 3, 3, 0], sizes = [4, 4, 4, 6], strides = [1, 1, 1, 1]} : vector<4x7x7x6xf32> to vector<4x4x4x6xf32>
    %133 = vector.shape_cast %132 : vector<4x4x4x6xf32> to vector<64x6xf32>
    %c15 = arith.constant 15 : index
    %c0_66 = arith.constant 0 : index
    %c0_67 = arith.constant 0 : index
    %134 = vector.load %arg4[%c15, %c0_66, %c0_67] : memref<16x6x10xf32, #tpu.memory_space<vmem>>, vector<1x6x10xf32>
    %135 = vector.shape_cast %134 : vector<1x6x10xf32> to vector<6x10xf32>
    %cst_68 = arith.constant dense<0.000000e+00> : vector<64x10xf32>
    %136 = tpu.matmul %133, %135, %cst_68 {dimension_numbers = #tpu.dot_dimension_numbers<[1], [0], [0], [1], [0, 0, 1, 1], [], []>} : vector<64x6xf32>, vector<6x10xf32>, vector<64x10xf32> -> vector<64x10xf32>
    %137 = arith.addf %131, %136 : vector<64x10xf32>
    %cst_69 = arith.constant 0.000000e+00 : f32
    %138 = vector.broadcast %cst_69 : f32 to vector<64x10xf32>
    %139 = arith.cmpf ogt, %137, %138 : vector<64x10xf32>
    %cst_70 = arith.constant 0.000000e+00 : f32
    %140 = vector.broadcast %cst_70 : f32 to vector<64x10xf32>
    %141 = arith.minimumf %137, %140 : vector<64x10xf32>
    %142 = math.exp %141 : vector<64x10xf32>
    %cst_71 = arith.constant 1.000000e+00 : f32
    %143 = vector.broadcast %cst_71 : f32 to vector<64x10xf32>
    %144 = arith.subf %142, %143 : vector<64x10xf32>
    %cst_72 = arith.constant 1.67326319 : f32
    %145 = vector.broadcast %cst_72 : f32 to vector<64x10xf32>
    %146 = arith.mulf %145, %144 : vector<64x10xf32>
    %147 = arith.select %139, %137, %146 : vector<64x10xi1>, vector<64x10xf32>
    %cst_73 = arith.constant 1.05070102 : f32
    %148 = vector.broadcast %cst_73 : f32 to vector<64x10xf32>
    %149 = arith.mulf %148, %147 : vector<64x10xf32>
    %c0_74 = arith.constant 0 : index
    %c0_75 = arith.constant 0 : index
    %150 = vector.load %arg5[%c0_74, %c0_75] : memref<10x128xf32, #tpu.memory_space<vmem>>, vector<10x128xf32>
    %cst_76 = arith.constant dense<0.000000e+00> : vector<64x128xf32>
    %151 = tpu.matmul %149, %150, %cst_76 {dimension_numbers = #tpu.dot_dimension_numbers<[1], [0], [0], [1], [0, 0, 1, 1], [], []>} : vector<64x10xf32>, vector<10x128xf32>, vector<64x128xf32> -> vector<64x128xf32>
    %c0_77 = arith.constant 0 : index
    %c0_78 = arith.constant 0 : index
    %152 = vector.load %arg6[%c0_77, %c0_78] : memref<64x128xf32, #tpu.memory_space<vmem>>, vector<64x128xf32>
    tpu.vector_store %arg6[%c0_77, %c0_78], %151 {strides = array<i32>} : memref<64x128xf32, #tpu.memory_space<vmem>>, vector<64x128xf32>,
    return
  }
}

</mosaic_0001>

<llo_original>
// kernel: tpu_custom_call.1
$region0: #{tpu_custom_call.1}
  #allocation0 [shape = 'u32[]', space=smem, size = 0x4, offset = 0x4, fixed_abs, tag = 'smem constant byte address 0x4 - core index']
  #allocation1 [shape = 'u32[144,128]{1,0:T(1,128)}', space=vmem, size = 0x12000, scoped, tag = 'internal scratch']
  %s0 = inlined_call_operand.vmem [shape: f32[4,294], index: 0, kind: input, shape index: {}]
  %s1 = inlined_call_operand.vmem [shape: f32[196,128], index: 1, kind: input, shape index: {}]
  %s2 = inlined_call_operand.vmem [shape: f32[128,6], index: 2, kind: input, shape index: {}]
  %s3 = inlined_call_operand.vmem [shape: f32[196,6], index: 3, kind: input, shape index: {}]
  %s4 = inlined_call_operand.vmem [shape: f32[16,6,10], index: 4, kind: input, shape index: {}]
  %s5 = inlined_call_operand.vmem [shape: f32[10,128], index: 5, kind: input, shape index: {}]
  %s6 = inlined_call_operand.hbm [shape: f32[64,128], index: 6, kind: output, shape index: {}]
  %s7 = sld [smem:[#allocation0]]
  $region34: #{tpu_custom_call.1} parent=0
    _
  %s9 = ssub.s32 1, %s7
  %s10 = scalar_select 0, %s9, %s7
  $region1: #{tpu_custom_call.1} parent=0
    #allocation2 [shape = 'u8[32768]{0}', space=vmem, size = 0x8000, scoped, tag = 'output window, operand 0, single buffered']
    #allocation3 [shape = 's32[1]{0}', space=sflag, size = 0x4, scoped, tag = 'scoped memory for tpu_custom_call.1']
    %11 = vsyncpa [#allocation3], 0
    // Predicated region
    $region2: #{tpu_custom_call.1} parent=1 // pred_check
      _
    $region3: #{tpu_custom_call.1} parent=1 // pred_check_branch
      %13 = sbr.rel (0) target = $region5
    $region4: #{tpu_custom_call.1} parent=1 // pred_region
      _
    $region5: #{tpu_custom_call.1} parent=1 // pred_fallthru
      _
    // Predicated region
    $region6: #{tpu_custom_call.1} parent=1 // pred_check
      _
    $region7: #{tpu_custom_call.1} parent=1 // pred_check_branch
      %15 = sbr.rel (0) target = $region9
    $region8: #{tpu_custom_call.1} parent=1 // pred_region
      _
    $region9: #{tpu_custom_call.1} parent=1 // pred_fallthru
      _
    // Predicated region
    $region10: #{tpu_custom_call.1} parent=1 // pred_check
      _
    $region11: #{tpu_custom_call.1} parent=1 // pred_check_branch
      %17 = sbr.rel (0) target = $region13
    $region12: #{tpu_custom_call.1} parent=1 // pred_region
      _
    $region13: #{tpu_custom_call.1} parent=1 // pred_fallthru
      _
    // Predicated region
    $region14: #{tpu_custom_call.1} parent=1 // pred_check
      _
    $region15: #{tpu_custom_call.1} parent=1 // pred_check_branch
      %19 = sbr.rel (0) target = $region17
    $region16: #{tpu_custom_call.1} parent=1 // pred_region
      _
    $region17: #{tpu_custom_call.1} parent=1 // pred_fallthru
      _
    // Predicated region
    $region18: #{tpu_custom_call.1} parent=1 // pred_check
      _
    $region19: #{tpu_custom_call.1} parent=1 // pred_check_branch
      %21 = sbr.rel (0) target = $region21
    $region20: #{tpu_custom_call.1} parent=1 // pred_region
      _
    $region21: #{tpu_custom_call.1} parent=1 // pred_fallthru
      _
    // Predicated region
    $region22: #{tpu_custom_call.1} parent=1 // pred_check
      _
    $region23: #{tpu_custom_call.1} parent=1 // pred_check_branch
      %23 = sbr.rel (0) target = $region25
    $region24: #{tpu_custom_call.1} parent=1 // pred_region
      _
    $region25: #{tpu_custom_call.1} parent=1 // pred_fallthru
      _
    %v24 = vld [vmem:[%s0] sm:$0xff]
    %v25 = vld [vmem:[%s0 + $0x8] sm:$0xf]
    %v27 = vcombine.high %v24, %v24
    %vm29 = vcmask 1043456
    %v30 = vsel %vm29, %v24, 0.0
    %v31 = vrot.slane %v30, 4
    %v32 = vadd.f32 %v30, %v31
    %v33 = vrot.slane %v32, 2
    %v34 = vadd.f32 %v32, %v33
    %v35 = vrot.slane %v34, 1
    %v36 = vadd.f32 %v34, %v35
    %v37 = vsel %vm29, %v27, 0.0
    %v38 = vrot.slane %v37, 4
    %v39 = vadd.f32 %v37, %v38
    %v40 = vrot.slane %v39, 2
    %v41 = vadd.f32 %v39, %v40
    %v42 = vrot.slane %v41, 1
    %v43 = vadd.f32 %v41, %v42
    %vm44 = vcmask 306176
    %v45 = vsel %vm44, %v25, 0.0
    %v46 = vrot.slane %v45, 4
    %v47 = vadd.f32 %v45, %v46
    %v48 = vrot.slane %v47, 2
    %v49 = vadd.f32 %v47, %v48
    %v50 = vrot.slane %v49, 1
    %v51 = vadd.f32 %v49, %v50
    %v52 = vrcp.pop 4.0
    %v53 = vmul.f32 %v36, %v52
    %v54 = vmul.f32 %v43, %v52
    %v55 = vmul.f32 %v51, %v52
    %v58 = vcombine.low %v53, %v54
    %v60 = vsub.f32 %v24, %v58
    %v61 = vsub.f32 %v25, %v55
    %v62 = vmul.f32 %v60, %v60
    %v63 = vmul.f32 %v61, %v61
    %v65 = vcombine.high %v62, %v62
    %v67 = vsel %vm29, %v62, 0.0
    %v68 = vrot.slane %v67, 4
    %v69 = vadd.f32 %v67, %v68
    %v70 = vrot.slane %v69, 2
    %v71 = vadd.f32 %v69, %v70
    %v72 = vrot.slane %v71, 1
    %v73 = vadd.f32 %v71, %v72
    %v74 = vsel %vm29, %v65, 0.0
    %v75 = vrot.slane %v74, 4
    %v76 = vadd.f32 %v74, %v75
    %v77 = vrot.slane %v76, 2
    %v78 = vadd.f32 %v76, %v77
    %v79 = vrot.slane %v78, 1
    %v80 = vadd.f32 %v78, %v79
    %v81 = vsel %vm44, %v63, 0.0
    %v82 = vrot.slane %v81, 4
    %v83 = vadd.f32 %v81, %v82
    %v84 = vrot.slane %v83, 2
    %v85 = vadd.f32 %v83, %v84
    %v86 = vrot.slane %v85, 1
    %v87 = vadd.f32 %v85, %v86
    %v88 = vmul.f32 %v73, %v52
    %v89 = vmul.f32 %v80, %v52
    %v90 = vmul.f32 %v87, %v52
    %v91 = vadd.f32 %v88, 1e-08
    %v92 = vadd.f32 %v89, 1e-08
    %v93 = vadd.f32 %v90, 1e-08
    %v94 = vrsqrt.pop %v91
    %v95 = vmul.f32 %v91, %v94
    %vm96 = vcmp.eq.f32.partialorder %v91, inf
    %v97 = vsel %vm96, %v91, %v95
    %vm98 = vcmp.eq.f32.partialorder %v91, 0.0
    %v99 = vand.u32 %v91, 2147483648
    %v100 = vsel %vm98, %v99, %v97
    %v101 = vrsqrt.pop %v92
    %v102 = vmul.f32 %v92, %v101
    %vm103 = vcmp.eq.f32.partialorder %v92, inf
    %v104 = vsel %vm103, %v92, %v102
    %vm105 = vcmp.eq.f32.partialorder %v92, 0.0
    %v106 = vand.u32 %v92, 2147483648
    %v107 = vsel %vm105, %v106, %v104
    %v108 = vrsqrt.pop %v93
    %v109 = vmul.f32 %v93, %v108
    %vm110 = vcmp.eq.f32.partialorder %v93, inf
    %v111 = vsel %vm110, %v93, %v109
    %vm112 = vcmp.eq.f32.partialorder %v93, 0.0
    %v113 = vand.u32 %v93, 2147483648
    %v114 = vsel %vm112, %v113, %v111
    %v115 = vadd.f32 %v100, %v107
    %vm116 = vcmask 310272
    %v117 = vsel %vm116, %v114, 0.0
    %v118 = vadd.f32 %v115, %v117
    %119 = vadd.xlane.f32.xlu0 %v118
    %v120 = vpop.xlane.xlu0 %119
    %v121 = vmul.f32 %v120, 0.0034013605
    %v122 = vld [vmem:[%s1] sm:$0xff]
    %v123 = vld [vmem:[%s1 + $0x8] sm:$0xff]
    %v124 = vld [vmem:[%s1 + $0x10] sm:$0xff]
    %v125 = vld [vmem:[%s1 + $0x18] sm:$0xff]
    %v126 = vld [vmem:[%s1 + $0x20] sm:$0xff]
    %v127 = vld [vmem:[%s1 + $0x28] sm:$0xff]
    %v128 = vld [vmem:[%s1 + $0x30] sm:$0xff]
    %v129 = vld [vmem:[%s1 + $0x38] sm:$0xff]
    %v130 = vld [vmem:[%s1 + $0x40] sm:$0xff]
    %v131 = vld [vmem:[%s1 + $0x48] sm:$0xff]
    %v132 = vld [vmem:[%s1 + $0x50] sm:$0xff]
    %v133 = vld [vmem:[%s1 + $0x58] sm:$0xff]
    %v134 = vld [vmem:[%s1 + $0x60] sm:$0xff]
    %v135 = vld [vmem:[%s1 + $0x68] sm:$0xff]
    %v136 = vld [vmem:[%s1 + $0x70] sm:$0xff]
    %v137 = vld [vmem:[%s1 + $0x78] sm:$0xff]
    %v138 = vld [vmem:[%s1 + $0x80] sm:$0xff]
    %v139 = vld [vmem:[%s1 + $0x88] sm:$0xff]
    %v140 = vld [vmem:[%s1 + $0x90] sm:$0xff]
    %v141 = vld [vmem:[%s1 + $0x98] sm:$0xff]
    %v142 = vld [vmem:[%s1 + $0xa0] sm:$0xff]
    %v143 = vld [vmem:[%s1 + $0xa8] sm:$0xff]
    %v144 = vld [vmem:[%s1 + $0xb0] sm:$0xff]
    %v145 = vld [vmem:[%s1 + $0xb8] sm:$0xff]
    %v146 = vld [vmem:[%s1 + $0xc0] sm:$0xf]
    %v147 = vld [vmem:[%s2] sm:$0xff]
    %v148 = vld [vmem:[%s2 + $0x8] sm:$0xff]
    %v149 = vld [vmem:[%s2 + $0x10] sm:$0xff]
    %v150 = vld [vmem:[%s2 + $0x18] sm:$0xff]
    %v151 = vld [vmem:[%s2 + $0x20] sm:$0xff]
    %v152 = vld [vmem:[%s2 + $0x28] sm:$0xff]
    %v153 = vld [vmem:[%s2 + $0x30] sm:$0xff]
    %v154 = vld [vmem:[%s2 + $0x38] sm:$0xff]
    %v155 = vld [vmem:[%s2 + $0x40] sm:$0xff]
    %v156 = vld [vmem:[%s2 + $0x48] sm:$0xff]
    %v157 = vld [vmem:[%s2 + $0x50] sm:$0xff]
    %v158 = vld [vmem:[%s2 + $0x58] sm:$0xff]
    %v159 = vld [vmem:[%s2 + $0x60] sm:$0xff]
    %v160 = vld [vmem:[%s2 + $0x68] sm:$0xff]
    %v161 = vld [vmem:[%s2 + $0x70] sm:$0xff]
    %v162 = vld [vmem:[%s2 + $0x78] sm:$0xff]
    %v163 = vld [vmem:[%s3] sm:$0xff]
    %v164 = vld [vmem:[%s3 + $0x8] sm:$0xff]
    %v165 = vld [vmem:[%s3 + $0x10] sm:$0xff]
    %v166 = vld [vmem:[%s3 + $0x18] sm:$0xff]
    %v167 = vld [vmem:[%s3 + $0x20] sm:$0xff]
    %v168 = vld [vmem:[%s3 + $0x28] sm:$0xff]
    %v169 = vld [vmem:[%s3 + $0x30] sm:$0xff]
    %v170 = vld [vmem:[%s3 + $0x38] sm:$0xff]
    %v171 = vld [vmem:[%s3 + $0x40] sm:$0xff]
    %v172 = vld [vmem:[%s3 + $0x48] sm:$0xff]
    %v173 = vld [vmem:[%s3 + $0x50] sm:$0xff]
    %v174 = vld [vmem:[%s3 + $0x58] sm:$0xff]
    %v175 = vld [vmem:[%s3 + $0x60] sm:$0xff]
    %v176 = vld [vmem:[%s3 + $0x68] sm:$0xff]
    %v177 = vld [vmem:[%s3 + $0x70] sm:$0xff]
    %v178 = vld [vmem:[%s3 + $0x78] sm:$0xff]
    %v179 = vld [vmem:[%s3 + $0x80] sm:$0xff]
    %v180 = vld [vmem:[%s3 + $0x88] sm:$0xff]
    %v181 = vld [vmem:[%s3 + $0x90] sm:$0xff]
    %v182 = vld [vmem:[%s3 + $0x98] sm:$0xff]
    %v183 = vld [vmem:[%s3 + $0xa0] sm:$0xff]
    %v184 = vld [vmem:[%s3 + $0xa8] sm:$0xff]
    %v185 = vld [vmem:[%s3 + $0xb0] sm:$0xff]
    %v186 = vld [vmem:[%s3 + $0xb8] sm:$0xff]
    %v187 = vld [vmem:[%s3 + $0xc0] sm:$0xf]
    %v188 = vmul.f32 %v121, %v163
    %v189 = vmul.f32 %v121, %v164
    %v190 = vmul.f32 %v121, %v165
    %v191 = vmul.f32 %v121, %v166
    %v192 = vmul.f32 %v121, %v167
    %v193 = vmul.f32 %v121, %v168
    %v194 = vmul.f32 %v121, %v169
    %v195 = vmul.f32 %v121, %v170
    %v196 = vmul.f32 %v121, %v171
    %v197 = vmul.f32 %v121, %v172
    %v198 = vmul.f32 %v121, %v173
    %v199 = vmul.f32 %v121, %v174
    %v200 = vmul.f32 %v121, %v175
    %v201 = vmul.f32 %v121, %v176
    %v202 = vmul.f32 %v121, %v177
    %v203 = vmul.f32 %v121, %v178
    %v204 = vmul.f32 %v121, %v179
    %v205 = vmul.f32 %v121, %v180
    %v206 = vmul.f32 %v121, %v181
    %v207 = vmul.f32 %v121, %v182
    %v208 = vmul.f32 %v121, %v183
    %v209 = vmul.f32 %v121, %v184
    %v210 = vmul.f32 %v121, %v185
    %v211 = vmul.f32 %v121, %v186
    %v212 = vmul.f32 %v121, %v187
    %213 = vmatprep.subr.mxu0 0.0
    %214 = vmatpush1.msra.mxu0 %v147
    %215 = vmatprep.subr.mxu0 0.0
    %216 = vmatpush1.msra.mxu0 %v148
    %217 = vmatprep.subr.mxu0 0.0
    %218 = vmatpush1.msra.mxu0 %v149
    %219 = vmatprep.subr.mxu0 0.0
    %220 = vmatpush1.msra.mxu0 %v150
    %221 = vmatprep.subr.mxu0 0.0
    %222 = vmatpush1.msra.mxu0 %v151
    %223 = vmatprep.subr.mxu0 0.0
    %224 = vmatpush1.msra.mxu0 %v152
    %225 = vmatprep.subr.mxu0 0.0
    %226 = vmatpush1.msra.mxu0 %v153
    %227 = vmatprep.subr.mxu0 0.0
    %228 = vmatpush1.msra.mxu0 %v154
    %229 = vmatprep.subr.mxu0 0.0
    %230 = vmatpush1.msra.mxu0 %v155
    %231 = vmatprep.subr.mxu0 0.0
    %232 = vmatpush1.msra.mxu0 %v156
    %233 = vmatprep.subr.mxu0 0.0
    %234 = vmatpush1.msra.mxu0 %v157
    %235 = vmatprep.subr.mxu0 0.0
    %236 = vmatpush1.msra.mxu0 %v158
    %237 = vmatprep.subr.mxu0 0.0
    %238 = vmatpush1.msra.mxu0 %v159
    %239 = vmatprep.subr.mxu0 0.0
    %240 = vmatpush1.msra.mxu0 %v160
    %241 = vmatprep.subr.mxu0 0.0
    %242 = vmatpush1.msra.mxu0 %v161
    %243 = vmatprep.subr.mxu0 0.0
    %244 = vmatpush1.msra.mxu0 %v162
    %245 = vmatprep.subr.mxu0 0.0
    %246 = vmatpush1.msra.mxu0 0.0
    %247 = vmatprep.subr.mxu0 0.0
    %248 = vmatpush1.msra.mxu0 0.0
    %249 = vmatprep.subr.mxu0 0.0
    %250 = vmatpush1.msra.mxu0 0.0
    %251 = vmatprep.subr.mxu0 0.0
    %252 = vmatpush1.msra.mxu0 0.0
    %253 = vmatprep.subr.mxu0 0.0
    %254 = vmatpush1.msra.mxu0 0.0
    %255 = vmatprep.subr.mxu0 0.0
    %256 = vmatpush1.msra.mxu0 0.0
    %257 = vmatprep.subr.mxu0 0.0
    %258 = vmatpush1.msra.mxu0 0.0
    %259 = vmatprep.subr.mxu0 0.0
    %260 = vmatpush1.msra.mxu0 0.0
    %261 = vmatprep.subr.mxu0 0.0
    %262 = vmatpush1.msra.mxu0 0.0
    %263 = vmatprep.subr.mxu0 0.0
    %264 = vmatpush1.msra.mxu0 0.0
    %265 = vmatprep.subr.mxu0 0.0
    %266 = vmatpush1.msra.mxu0 0.0
    %267 = vmatprep.subr.mxu0 0.0
    %268 = vmatpush1.msra.mxu0 0.0
    %269 = vmatprep.subr.mxu0 0.0
    %270 = vmatpush1.msra.mxu0 0.0
    %271 = vmatprep.subr.mxu0 0.0
    %272 = vmatpush1.msra.mxu0 0.0
    %273 = vmatprep.subr.mxu0 0.0
    %274 = vmatpush1.msra.mxu0 0.0
    %275 = vmatprep.subr.mxu0 0.0
    %276 = vmatpush1.msra.mxu0 0.0
    %277 = vmatprep.mubr.f32.mxu0 0.0
    %278 = vmatmul.mubr.f32.gmra.mrb[0].mxu0 %v122
    %v279 = vpop.f32.mrb[0].mxu0
    %v280 = vadd.f32 %v188, %v279
    %v281 = vpop.f32.mrb[0].mxu0
    %282 = vmatprep.mubr.f32.mxu0 0.0
    %283 = vmatmul.mubr.f32.gmra.mrb[0].mxu0 %v123
    %v284 = vpop.f32.mrb[0].mxu0
    %v285 = vadd.f32 %v189, %v284
    %v286 = vpop.f32.mrb[0].mxu0
    %287 = vmatprep.mubr.f32.mxu0 0.0
    %288 = vmatmul.mubr.f32.gmra.mrb[0].mxu0 %v124
    %v289 = vpop.f32.mrb[0].mxu0
    %v290 = vadd.f32 %v190, %v289
    %v291 = vpop.f32.mrb[0].mxu0
    %292 = vmatprep.mubr.f32.mxu0 0.0
    %293 = vmatmul.mubr.f32.gmra.mrb[0].mxu0 %v125
    %v294 = vpop.f32.mrb[0].mxu0
    %v295 = vadd.f32 %v191, %v294
    %v296 = vpop.f32.mrb[0].mxu0
    %297 = vmatprep.mubr.f32.mxu0 0.0
    %298 = vmatmul.mubr.f32.gmra.mrb[0].mxu0 %v126
    %v299 = vpop.f32.mrb[0].mxu0
    %v300 = vadd.f32 %v192, %v299
    %v301 = vpop.f32.mrb[0].mxu0
    %302 = vmatprep.mubr.f32.mxu0 0.0
    %303 = vmatmul.mubr.f32.gmra.mrb[0].mxu0 %v127
    %v304 = vpop.f32.mrb[0].mxu0
    %v305 = vadd.f32 %v193, %v304
    %v306 = vpop.f32.mrb[0].mxu0
    %307 = vmatprep.mubr.f32.mxu0 0.0
    %308 = vmatmul.mubr.f32.gmra.mrb[0].mxu0 %v128
    %v309 = vpop.f32.mrb[0].mxu0
    %v310 = vadd.f32 %v194, %v309
    %v311 = vpop.f32.mrb[0].mxu0
    %312 = vmatprep.mubr.f32.mxu0 0.0
    %313 = vmatmul.mubr.f32.gmra.mrb[0].mxu0 %v129
    %v314 = vpop.f32.mrb[0].mxu0
    %v315 = vadd.f32 %v195, %v314
    %v316 = vpop.f32.mrb[0].mxu0
    %317 = vmatprep.mubr.f32.mxu0 0.0
    %318 = vmatmul.mubr.f32.gmra.mrb[0].mxu0 %v130
    %v319 = vpop.f32.mrb[0].mxu0
    %v320 = vadd.f32 %v196, %v319
    %v321 = vpop.f32.mrb[0].mxu0
    %322 = vmatprep.mubr.f32.mxu0 0.0
    %323 = vmatmul.mubr.f32.gmra.mrb[0].mxu0 %v131
    %v324 = vpop.f32.mrb[0].mxu0
    %v325 = vadd.f32 %v197, %v324
    %v326 = vpop.f32.mrb[0].mxu0
    %327 = vmatprep.mubr.f32.mxu0 0.0
    %328 = vmatmul.mubr.f32.gmra.mrb[0].mxu0 %v132
    %v329 = vpop.f32.mrb[0].mxu0
    %v330 = vadd.f32 %v198, %v329
    %v331 = vpop.f32.mrb[0].mxu0
    %332 = vmatprep.mubr.f32.mxu0 0.0
    %333 = vmatmul.mubr.f32.gmra.mrb[0].mxu0 %v133
    %v334 = vpop.f32.mrb[0].mxu0
    %v335 = vadd.f32 %v199, %v334
    %v336 = vpop.f32.mrb[0].mxu0
    %337 = vmatprep.mubr.f32.mxu0 0.0
    %338 = vmatmul.mubr.f32.gmra.mrb[0].mxu0 %v134
    %v339 = vpop.f32.mrb[0].mxu0
    %v340 = vadd.f32 %v200, %v339
    %v341 = vpop.f32.mrb[0].mxu0
    %342 = vmatprep.mubr.f32.mxu0 0.0
    %343 = vmatmul.mubr.f32.gmra.mrb[0].mxu0 %v135
    %v344 = vpop.f32.mrb[0].mxu0
    %v345 = vadd.f32 %v201, %v344
    %v346 = vpop.f32.mrb[0].mxu0
    %347 = vmatprep.mubr.f32.mxu0 0.0
    %348 = vmatmul.mubr.f32.gmra.mrb[0].mxu0 %v136
    %v349 = vpop.f32.mrb[0].mxu0
    %v350 = vadd.f32 %v202, %v349
    %v351 = vpop.f32.mrb[0].mxu0
    %352 = vmatprep.mubr.f32.mxu0 0.0
    %353 = vmatmul.mubr.f32.gmra.mrb[0].mxu0 %v137
    %v354 = vpop.f32.mrb[0].mxu0
    %v355 = vadd.f32 %v203, %v354
    %v356 = vpop.f32.mrb[0].mxu0
    %357 = vmatprep.mubr.f32.mxu0 0.0
    %358 = vmatmul.mubr.f32.gmra.mrb[0].mxu0 %v138
    %v359 = vpop.f32.mrb[0].mxu0
    %v360 = vadd.f32 %v204, %v359
    %v361 = vpop.f32.mrb[0].mxu0
    %362 = vmatprep.mubr.f32.mxu0 0.0
    %363 = vmatmul.mubr.f32.gmra.mrb[0].mxu0 %v139
    %v364 = vpop.f32.mrb[0].mxu0
    %v365 = vadd.f32 %v205, %v364
    %v366 = vpop.f32.mrb[0].mxu0
    %367 = vmatprep.mubr.f32.mxu0 0.0
    %368 = vmatmul.mubr.f32.gmra.mrb[0].mxu0 %v140
    %v369 = vpop.f32.mrb[0].mxu0
    %v370 = vadd.f32 %v206, %v369
    %v371 = vpop.f32.mrb[0].mxu0
    %372 = vmatprep.mubr.f32.mxu0 0.0
    %373 = vmatmul.mubr.f32.gmra.mrb[0].mxu0 %v141
    %v374 = vpop.f32.mrb[0].mxu0
    %v375 = vadd.f32 %v207, %v374
    %v376 = vpop.f32.mrb[0].mxu0
    %377 = vmatprep.mubr.f32.mxu0 0.0
    %378 = vmatmul.mubr.f32.gmra.mrb[0].mxu0 %v142
    %v379 = vpop.f32.mrb[0].mxu0
    %v380 = vadd.f32 %v208, %v379
    %v381 = vpop.f32.mrb[0].mxu0
    %382 = vmatprep.mubr.f32.mxu0 0.0
    %383 = vmatmul.mubr.f32.gmra.mrb[0].mxu0 %v143
    %v384 = vpop.f32.mrb[0].mxu0
    %v385 = vadd.f32 %v209, %v384
    %v386 = vpop.f32.mrb[0].mxu0
    %387 = vmatprep.mubr.f32.mxu0 0.0
    %388 = vmatmul.mubr.f32.gmra.mrb[0].mxu0 %v144
    %v389 = vpop.f32.mrb[0].mxu0
    %v390 = vadd.f32 %v210, %v389
    %v391 = vpop.f32.mrb[0].mxu0
    %392 = vmatprep.mubr.f32.mxu0 0.0
    %393 = vmatmul.mubr.f32.gmra.mrb[0].mxu0 %v145
    %v394 = vpop.f32.mrb[0].mxu0
    %v395 = vadd.f32 %v211, %v394
    %v396 = vpop.f32.mrb[0].mxu0
    %397 = vmatprep.mubr.f32.mxu0 0.0
    %398 = vmatmul.mubr.f32.gmra.mrb[0].mxu0 %v146
    %v399 = vpop.f32.mrb[0].mxu0
    %v400 = vadd.f32 %v212, %v399
    %v401 = vpop.f32.mrb[0].mxu0
    %402 = vdwg.mxu0
    %vm403 = vcmp.gt.f32.partialorder %v280, 0.0
    %vm404 = vcmp.gt.f32.partialorder %v285, 0.0
    %vm405 = vcmp.gt.f32.partialorder %v290, 0.0
    %vm406 = vcmp.gt.f32.partialorder %v295, 0.0
    %vm407 = vcmp.gt.f32.partialorder %v300, 0.0
    %vm408 = vcmp.gt.f32.partialorder %v305, 0.0
    %vm409 = vcmp.gt.f32.partialorder %v310, 0.0
    %vm410 = vcmp.gt.f32.partialorder %v315, 0.0
    %vm411 = vcmp.gt.f32.partialorder %v320, 0.0
    %vm412 = vcmp.gt.f32.partialorder %v325, 0.0
    %vm413 = vcmp.gt.f32.partialorder %v330, 0.0
    %vm414 = vcmp.gt.f32.partialorder %v335, 0.0
    %vm415 = vcmp.gt.f32.partialorder %v340, 0.0
    %vm416 = vcmp.gt.f32.partialorder %v345, 0.0
    %vm417 = vcmp.gt.f32.partialorder %v350, 0.0
    %vm418 = vcmp.gt.f32.partialorder %v355, 0.0
    %vm419 = vcmp.gt.f32.partialorder %v360, 0.0
    %vm420 = vcmp.gt.f32.partialorder %v365, 0.0
    %vm421 = vcmp.gt.f32.partialorder %v370, 0.0
    %vm422 = vcmp.gt.f32.partialorder %v375, 0.0
    %vm423 = vcmp.gt.f32.partialorder %v380, 0.0
    %vm424 = vcmp.gt.f32.partialorder %v385, 0.0
    %vm425 = vcmp.gt.f32.partialorder %v390, 0.0
    %vm426 = vcmp.gt.f32.partialorder %v395, 0.0
    %vm427 = vcmp.gt.f32.partialorder %v400, 0.0
    %v428 = vmin.f32 %v280, 0.0
    %v429 = vmin.f32 %v285, 0.0
    %v430 = vmin.f32 %v290, 0.0
    %v431 = vmin.f32 %v295, 0.0
    %v432 = vmin.f32 %v300, 0.0
    %v433 = vmin.f32 %v305, 0.0
    %v434 = vmin.f32 %v310, 0.0
    %v435 = vmin.f32 %v315, 0.0
    %v436 = vmin.f32 %v320, 0.0
    %v437 = vmin.f32 %v325, 0.0
    %v438 = vmin.f32 %v330, 0.0
    %v439 = vmin.f32 %v335, 0.0
    %v440 = vmin.f32 %v340, 0.0
    %v441 = vmin.f32 %v345, 0.0
    %v442 = vmin.f32 %v350, 0.0
    %v443 = vmin.f32 %v355, 0.0
    %v444 = vmin.f32 %v360, 0.0
    %v445 = vmin.f32 %v365, 0.0
    %v446 = vmin.f32 %v370, 0.0
    %v447 = vmin.f32 %v375, 0.0
    %v448 = vmin.f32 %v380, 0.0
    %v449 = vmin.f32 %v385, 0.0
    %v450 = vmin.f32 %v390, 0.0
    %v451 = vmin.f32 %v395, 0.0
    %v452 = vmin.f32 %v400, 0.0
    %v453 = vmul.f32 %v428, 1.442695
    %v454 = vpow.pop %v453
    %v455 = vmul.f32 %v429, 1.442695
    %v456 = vpow.pop %v455
    %v457 = vmul.f32 %v430, 1.442695
    %v458 = vpow.pop %v457
    %v459 = vmul.f32 %v431, 1.442695
    %v460 = vpow.pop %v459
    %v461 = vmul.f32 %v432, 1.442695
    %v462 = vpow.pop %v461
    %v463 = vmul.f32 %v433, 1.442695
    %v464 = vpow.pop %v463
    %v465 = vmul.f32 %v434, 1.442695
    %v466 = vpow.pop %v465
    %v467 = vmul.f32 %v435, 1.442695
    %v468 = vpow.pop %v467
    %v469 = vmul.f32 %v436, 1.442695
    %v470 = vpow.pop %v469
    %v471 = vmul.f32 %v437, 1.442695
    %v472 = vpow.pop %v471
    %v473 = vmul.f32 %v438, 1.442695
    %v474 = vpow.pop %v473
    %v475 = vmul.f32 %v439, 1.442695
    %v476 = vpow.pop %v475
    %v477 = vmul.f32 %v440, 1.442695
    %v478 = vpow.pop %v477
    %v479 = vmul.f32 %v441, 1.442695
    %v480 = vpow.pop %v479
    %v481 = vmul.f32 %v442, 1.442695
    %v482 = vpow.pop %v481
    %v483 = vmul.f32 %v443, 1.442695
    %v484 = vpow.pop %v483
    %v485 = vmul.f32 %v444, 1.442695
    %v486 = vpow.pop %v485
    %v487 = vmul.f32 %v445, 1.442695
    %v488 = vpow.pop %v487
    %v489 = vmul.f32 %v446, 1.442695
    %v490 = vpow.pop %v489
    %v491 = vmul.f32 %v447, 1.442695
    %v492 = vpow.pop %v491
    %v493 = vmul.f32 %v448, 1.442695
    %v494 = vpow.pop %v493
    %v495 = vmul.f32 %v449, 1.442695
    %v496 = vpow.pop %v495
    %v497 = vmul.f32 %v450, 1.442695
    %v498 = vpow.pop %v497
    %v499 = vmul.f32 %v451, 1.442695
    %v500 = vpow.pop %v499
    %v501 = vmul.f32 %v452, 1.442695
    %v502 = vpow.pop %v501
    %v503 = vsub.f32 %v454, 1.0
    %v504 = vsub.f32 %v456, 1.0
    %v505 = vsub.f32 %v458, 1.0
    %v506 = vsub.f32 %v460, 1.0
    %v507 = vsub.f32 %v462, 1.0
    %v508 = vsub.f32 %v464, 1.0
    %v509 = vsub.f32 %v466, 1.0
    %v510 = vsub.f32 %v468, 1.0
    %v511 = vsub.f32 %v470, 1.0
    %v512 = vsub.f32 %v472, 1.0
    %v513 = vsub.f32 %v474, 1.0
    %v514 = vsub.f32 %v476, 1.0
    %v515 = vsub.f32 %v478, 1.0
    %v516 = vsub.f32 %v480, 1.0
    %v517 = vsub.f32 %v482, 1.0
    %v518 = vsub.f32 %v484, 1.0
    %v519 = vsub.f32 %v486, 1.0
    %v520 = vsub.f32 %v488, 1.0
    %v521 = vsub.f32 %v490, 1.0
    %v522 = vsub.f32 %v492, 1.0
    %v523 = vsub.f32 %v494, 1.0
    %v524 = vsub.f32 %v496, 1.0
    %v525 = vsub.f32 %v498, 1.0
    %v526 = vsub.f32 %v500, 1.0
    %v527 = vsub.f32 %v502, 1.0
    %v528 = vmul.f32 %v503, 1.6732632
    %v529 = vmul.f32 %v504, 1.6732632
    %v530 = vmul.f32 %v505, 1.6732632
    %v531 = vmul.f32 %v506, 1.6732632
    %v532 = vmul.f32 %v507, 1.6732632
    %v533 = vmul.f32 %v508, 1.6732632
    %v534 = vmul.f32 %v509, 1.6732632
    %v535 = vmul.f32 %v510, 1.6732632
    %v536 = vmul.f32 %v511, 1.6732632
    %v537 = vmul.f32 %v512, 1.6732632
    %v538 = vmul.f32 %v513, 1.6732632
    %v539 = vmul.f32 %v514, 1.6732632
    %v540 = vmul.f32 %v515, 1.6732632
    %v541 = vmul.f32 %v516, 1.6732632
    %v542 = vmul.f32 %v517, 1.6732632
    %v543 = vmul.f32 %v518, 1.6732632
    %v544 = vmul.f32 %v519, 1.6732632
    %v545 = vmul.f32 %v520, 1.6732632
    %v546 = vmul.f32 %v521, 1.6732632
    %v547 = vmul.f32 %v522, 1.6732632
    %v548 = vmul.f32 %v523, 1.6732632
    %v549 = vmul.f32 %v524, 1.6732632
    %v550 = vmul.f32 %v525, 1.6732632
    %v551 = vmul.f32 %v526, 1.6732632
    %v552 = vmul.f32 %v527, 1.6732632
    %v553 = vsel %vm403, %v280, %v528
    %v554 = vsel %vm404, %v285, %v529
    %v555 = vsel %vm405, %v290, %v530
    %v556 = vsel %vm406, %v295, %v531
    %v557 = vsel %vm407, %v300, %v532
    %v558 = vsel %vm408, %v305, %v533
    %v559 = vsel %vm409, %v310, %v534
    %v560 = vsel %vm410, %v315, %v535
    %v561 = vsel %vm411, %v320, %v536
    %v562 = vsel %vm412, %v325, %v537
    %v563 = vsel %vm413, %v330, %v538
    %v564 = vsel %vm414, %v335, %v539
    %v565 = vsel %vm415, %v340, %v540
    %v566 = vsel %vm416, %v345, %v541
    %v567 = vsel %vm417, %v350, %v542
    %v568 = vsel %vm418, %v355, %v543
    %v569 = vsel %vm419, %v360, %v544
    %v570 = vsel %vm420, %v365, %v545
    %v571 = vsel %vm421, %v370, %v546
    %v572 = vsel %vm422, %v375, %v547
    %v573 = vsel %vm423, %v380, %v548
    %v574 = vsel %vm424, %v385, %v549
    %v575 = vsel %vm425, %v390, %v550
    %v576 = vsel %vm426, %v395, %v551
    %v577 = vsel %vm427, %v400, %v552
    %v578 = vmul.f32 %v553, 1.050701
    %v579 = vmul.f32 %v554, 1.050701
    %v580 = vmul.f32 %v555, 1.050701
    %v581 = vmul.f32 %v556, 1.050701
    %v582 = vmul.f32 %v557, 1.050701
    %v583 = vmul.f32 %v558, 1.050701
    %v584 = vmul.f32 %v559, 1.050701
    %v585 = vmul.f32 %v560, 1.050701
    %v586 = vmul.f32 %v561, 1.050701
    %v587 = vmul.f32 %v562, 1.050701
    %v588 = vmul.f32 %v563, 1.050701
    %v589 = vmul.f32 %v564, 1.050701
    %v590 = vmul.f32 %v565, 1.050701
    %v591 = vmul.f32 %v566, 1.050701
    %v592 = vmul.f32 %v567, 1.050701
    %v593 = vmul.f32 %v568, 1.050701
    %v594 = vmul.f32 %v569, 1.050701
    %v595 = vmul.f32 %v570, 1.050701
    %v596 = vmul.f32 %v571, 1.050701
    %v597 = vmul.f32 %v572, 1.050701
    %v598 = vmul.f32 %v573, 1.050701
    %v599 = vmul.f32 %v574, 1.050701
    %v600 = vmul.f32 %v575, 1.050701
    %v601 = vmul.f32 %v576, 1.050701
    %v602 = vmul.f32 %v577, 1.050701
    %v628 = vcombine.high %v578, %v578
    %v630 = vunpack.c.l.s4 1966171168
    %v631 = vunpack.c.0.s8 %v630
    %v632 = vlaneseq
    %v633 = vshrl.u32 %v632, 7
    %v634 = vsub.s32 %v631, %v633
    %v635 = vrot.slane %v578, %v634
    %v637 = vunpack.c.l.s4 1966171168
    %v638 = vunpack.c.0.s8 %v637
    %v639 = vlaneseq
    %v640 = vshrl.u32 %v639, 7
    %v641 = vsub.s32 %v638, %v640
    %v642 = vrot.slane %v628, %v641
    %v643 = vcombine.high %v635, %v635
    %v644 = vcombine.high %v642, %v642
    %v646 = vunpack.c.l.s4 1966171168
    %v647 = vunpack.c.0.s8 %v646
    %v648 = vlaneseq
    %v649 = vshrl.u32 %v648, 7
    %v650 = vsub.s32 %v647, %v649
    %v651 = vrot.slane %v635, %v650
    %v653 = vunpack.c.l.s4 1966171168
    %v654 = vunpack.c.0.s8 %v653
    %v655 = vlaneseq
    %v656 = vshrl.u32 %v655, 7
    %v657 = vsub.s32 %v654, %v656
    %v658 = vrot.slane %v642, %v657
    %v660 = vunpack.c.l.s4 1966171168
    %v661 = vunpack.c.0.s8 %v660
    %v662 = vlaneseq
    %v663 = vshrl.u32 %v662, 7
    %v664 = vsub.s32 %v661, %v663
    %v665 = vrot.slane %v643, %v664
    %v667 = vunpack.c.l.s4 1966171168
    %v668 = vunpack.c.0.s8 %v667
    %v669 = vlaneseq
    %v670 = vshrl.u32 %v669, 7
    %v671 = vsub.s32 %v668, %v670
    %v672 = vrot.slane %v644, %v671
    %v673 = vcombine.high %v651, %v651
    %v674 = vcombine.high %v658, %v658
    %v675 = vcombine.high %v665, %v665
    %v676 = vcombine.high %v672, %v672
    %v677 = vcombine.high %v579, %v579
    %v679 = vunpack.c.l.s4 1966171168
    %v680 = vunpack.c.0.s8 %v679
    %v681 = vlaneseq
    %v682 = vshrl.u32 %v681, 7
    %v683 = vsub.s32 %v680, %v682
    %v684 = vrot.slane %v579, %v683
    %v686 = vunpack.c.l.s4 1966171168
    %v687 = vunpack.c.0.s8 %v686
    %v688 = vlaneseq
    %v689 = vshrl.u32 %v688, 7
    %v690 = vsub.s32 %v687, %v689
    %v691 = vrot.slane %v677, %v690
    %v692 = vcombine.high %v684, %v684
    %v693 = vcombine.high %v691, %v691
    %v695 = vunpack.c.l.s4 1966171168
    %v696 = vunpack.c.0.s8 %v695
    %v697 = vlaneseq
    %v698 = vshrl.u32 %v697, 7
    %v699 = vsub.s32 %v696, %v698
    %v700 = vrot.slane %v684, %v699
    %v702 = vunpack.c.l.s4 1966171168
    %v703 = vunpack.c.0.s8 %v702
    %v704 = vlaneseq
    %v705 = vshrl.u32 %v704, 7
    %v706 = vsub.s32 %v703, %v705
    %v707 = vrot.slane %v691, %v706
    %v709 = vunpack.c.l.s4 1966171168
    %v710 = vunpack.c.0.s8 %v709
    %v711 = vlaneseq
    %v712 = vshrl.u32 %v711, 7
    %v713 = vsub.s32 %v710, %v712
    %v714 = vrot.slane %v692, %v713
    %v716 = vunpack.c.l.s4 1966171168
    %v717 = vunpack.c.0.s8 %v716
    %v718 = vlaneseq
    %v719 = vshrl.u32 %v718, 7
    %v720 = vsub.s32 %v717, %v719
    %v721 = vrot.slane %v693, %v720
    %v722 = vcombine.high %v700, %v700
    %v723 = vcombine.high %v707, %v707
    %v724 = vcombine.high %v714, %v714
    %v725 = vcombine.high %v721, %v721
    %v726 = vcombine.high %v580, %v580
    %v728 = vunpack.c.l.s4 1966171168
    %v729 = vunpack.c.0.s8 %v728
    %v730 = vlaneseq
    %v731 = vshrl.u32 %v730, 7
    %v732 = vsub.s32 %v729, %v731
    %v733 = vrot.slane %v580, %v732
    %v735 = vunpack.c.l.s4 1966171168
    %v736 = vunpack.c.0.s8 %v735
    %v737 = vlaneseq
    %v738 = vshrl.u32 %v737, 7
    %v739 = vsub.s32 %v736, %v738
    %v740 = vrot.slane %v726, %v739
    %v741 = vcombine.high %v733, %v733
    %v742 = vcombine.high %v740, %v740
    %v744 = vunpack.c.l.s4 1966171168
    %v745 = vunpack.c.0.s8 %v744
    %v746 = vlaneseq
    %v747 = vshrl.u32 %v746, 7
    %v748 = vsub.s32 %v745, %v747
    %v749 = vrot.slane %v733, %v748
    %v751 = vunpack.c.l.s4 1966171168
    %v752 = vunpack.c.0.s8 %v751
    %v753 = vlaneseq
    %v754 = vshrl.u32 %v753, 7
    %v755 = vsub.s32 %v752, %v754
    %v756 = vrot.slane %v740, %v755
    %v758 = vunpack.c.l.s4 1966171168
    %v759 = vunpack.c.0.s8 %v758
    %v760 = vlaneseq
    %v761 = vshrl.u32 %v760, 7
    %v762 = vsub.s32 %v759, %v761
    %v763 = vrot.slane %v741, %v762
    %v765 = vunpack.c.l.s4 1966171168
    %v766 = vunpack.c.0.s8 %v765
    %v767 = vlaneseq
    %v768 = vshrl.u32 %v767, 7
    %v769 = vsub.s32 %v766, %v768
    %v770 = vrot.slane %v742, %v769
    %v771 = vcombine.high %v749, %v749
    %v772 = vcombine.high %v756, %v756
    %v773 = vcombine.high %v763, %v763
    %v774 = vcombine.high %v770, %v770
    %v775 = vcombine.high %v581, %v581
    %v777 = vunpack.c.l.s4 1966171168
    %v778 = vunpack.c.0.s8 %v777
    %v779 = vlaneseq
    %v780 = vshrl.u32 %v779, 7
    %v781 = vsub.s32 %v778, %v780
    %v782 = vrot.slane %v581, %v781
    %v784 = vunpack.c.l.s4 1966171168
    %v785 = vunpack.c.0.s8 %v784
    %v786 = vlaneseq
    %v787 = vshrl.u32 %v786, 7
    %v788 = vsub.s32 %v785, %v787
    %v789 = vrot.slane %v775, %v788
    %v790 = vcombine.high %v782, %v782
    %v791 = vcombine.high %v789, %v789
    %v793 = vunpack.c.l.s4 1966171168
    %v794 = vunpack.c.0.s8 %v793
    %v795 = vlaneseq
    %v796 = vshrl.u32 %v795, 7
    %v797 = vsub.s32 %v794, %v796
    %v798 = vrot.slane %v782, %v797
    %v800 = vunpack.c.l.s4 1966171168
    %v801 = vunpack.c.0.s8 %v800
    %v802 = vlaneseq
    %v803 = vshrl.u32 %v802, 7
    %v804 = vsub.s32 %v801, %v803
    %v805 = vrot.slane %v789, %v804
    %v807 = vunpack.c.l.s4 1966171168
    %v808 = vunpack.c.0.s8 %v807
    %v809 = vlaneseq
    %v810 = vshrl.u32 %v809, 7
    %v811 = vsub.s32 %v808, %v810
    %v812 = vrot.slane %v790, %v811
    %v814 = vunpack.c.l.s4 1966171168
    %v815 = vunpack.c.0.s8 %v814
    %v816 = vlaneseq
    %v817 = vshrl.u32 %v816, 7
    %v818 = vsub.s32 %v815, %v817
    %v819 = vrot.slane %v791, %v818
    %v820 = vcombine.high %v798, %v798
    %v821 = vcombine.high %v805, %v805
    %v822 = vcombine.high %v812, %v812
    %v823 = vcombine.high %v819, %v819
    %v824 = vcombine.high %v582, %v582
    %v826 = vunpack.c.l.s4 1966171168
    %v827 = vunpack.c.0.s8 %v826
    %v828 = vlaneseq
    %v829 = vshrl.u32 %v828, 7
    %v830 = vsub.s32 %v827, %v829
    %v831 = vrot.slane %v582, %v830
    %v833 = vunpack.c.l.s4 1966171168
    %v834 = vunpack.c.0.s8 %v833
    %v835 = vlaneseq
    %v836 = vshrl.u32 %v835, 7
    %v837 = vsub.s32 %v834, %v836
    %v838 = vrot.slane %v824, %v837
    %v839 = vcombine.high %v831, %v831
    %v840 = vcombine.high %v838, %v838
    %v842 = vunpack.c.l.s4 1966171168
    %v843 = vunpack.c.0.s8 %v842
    %v844 = vlaneseq
    %v845 = vshrl.u32 %v844, 7
    %v846 = vsub.s32 %v843, %v845
    %v847 = vrot.slane %v831, %v846
    %v849 = vunpack.c.l.s4 1966171168
    %v850 = vunpack.c.0.s8 %v849
    %v851 = vlaneseq
    %v852 = vshrl.u32 %v851, 7
    %v853 = vsub.s32 %v850, %v852
    %v854 = vrot.slane %v838, %v853
    %v856 = vunpack.c.l.s4 1966171168
    %v857 = vunpack.c.0.s8 %v856
    %v858 = vlaneseq
    %v859 = vshrl.u32 %v858, 7
    %v860 = vsub.s32 %v857, %v859
    %v861 = vrot.slane %v839, %v860
    %v863 = vunpack.c.l.s4 1966171168
    %v864 = vunpack.c.0.s8 %v863
    %v865 = vlaneseq
    %v866 = vshrl.u32 %v865, 7
    %v867 = vsub.s32 %v864, %v866
    %v868 = vrot.slane %v840, %v867
    %v869 = vcombine.high %v847, %v847
    %v870 = vcombine.high %v854, %v854
    %v871 = vcombine.high %v861, %v861
    %v872 = vcombine.high %v868, %v868
    %v873 = vcombine.high %v583, %v583
    %v875 = vunpack.c.l.s4 1966171168
    %v876 = vunpack.c.0.s8 %v875
    %v877 = vlaneseq
    %v878 = vshrl.u32 %v877, 7
    %v879 = vsub.s32 %v876, %v878
    %v880 = vrot.slane %v583, %v879
    %v882 = vunpack.c.l.s4 1966171168
    %v883 = vunpack.c.0.s8 %v882
    %v884 = vlaneseq
    %v885 = vshrl.u32 %v884, 7
    %v886 = vsub.s32 %v883, %v885
    %v887 = vrot.slane %v873, %v886
    %v888 = vcombine.high %v880, %v880
    %v889 = vcombine.high %v887, %v887
    %v891 = vunpack.c.l.s4 1966171168
    %v892 = vunpack.c.0.s8 %v891
    %v893 = vlaneseq
    %v894 = vshrl.u32 %v893, 7
    %v895 = vsub.s32 %v892, %v894
    %v896 = vrot.slane %v880, %v895
    %v898 = vunpack.c.l.s4 1966171168
    %v899 = vunpack.c.0.s8 %v898
    %v900 = vlaneseq
    %v901 = vshrl.u32 %v900, 7
    %v902 = vsub.s32 %v899, %v901
    %v903 = vrot.slane %v887, %v902
    %v905 = vunpack.c.l.s4 1966171168
    %v906 = vunpack.c.0.s8 %v905
    %v907 = vlaneseq
    %v908 = vshrl.u32 %v907, 7
    %v909 = vsub.s32 %v906, %v908
    %v910 = vrot.slane %v888, %v909
    %v912 = vunpack.c.l.s4 1966171168
    %v913 = vunpack.c.0.s8 %v912
    %v914 = vlaneseq
    %v915 = vshrl.u32 %v914, 7
    %v916 = vsub.s32 %v913, %v915
    %v917 = vrot.slane %v889, %v916
    %v918 = vcombine.high %v896, %v896
    %v919 = vcombine.high %v903, %v903
    %v920 = vcombine.high %v910, %v910
    %v921 = vcombine.high %v917, %v917
    %v922 = vcombine.high %v584, %v584
    %v924 = vunpack.c.l.s4 1966171168
    %v925 = vunpack.c.0.s8 %v924
    %v926 = vlaneseq
    %v927 = vshrl.u32 %v926, 7
    %v928 = vsub.s32 %v925, %v927
    %v929 = vrot.slane %v584, %v928
    %v931 = vunpack.c.l.s4 1966171168
    %v932 = vunpack.c.0.s8 %v931
    %v933 = vlaneseq
    %v934 = vshrl.u32 %v933, 7
    %v935 = vsub.s32 %v932, %v934
    %v936 = vrot.slane %v922, %v935
    %v937 = vcombine.high %v929, %v929
    %v938 = vcombine.high %v936, %v936
    %v940 = vunpack.c.l.s4 1966171168
    %v941 = vunpack.c.0.s8 %v940
    %v942 = vlaneseq
    %v943 = vshrl.u32 %v942, 7
    %v944 = vsub.s32 %v941, %v943
    %v945 = vrot.slane %v929, %v944
    %v947 = vunpack.c.l.s4 1966171168
    %v948 = vunpack.c.0.s8 %v947
    %v949 = vlaneseq
    %v950 = vshrl.u32 %v949, 7
    %v951 = vsub.s32 %v948, %v950
    %v952 = vrot.slane %v936, %v951
    %v954 = vunpack.c.l.s4 1966171168
    %v955 = vunpack.c.0.s8 %v954
    %v956 = vlaneseq
    %v957 = vshrl.u32 %v956, 7
    %v958 = vsub.s32 %v955, %v957
    %v959 = vrot.slane %v937, %v958
    %v961 = vunpack.c.l.s4 1966171168
    %v962 = vunpack.c.0.s8 %v961
    %v963 = vlaneseq
    %v964 = vshrl.u32 %v963, 7
    %v965 = vsub.s32 %v962, %v964
    %v966 = vrot.slane %v938, %v965
    %v967 = vcombine.high %v945, %v945
    %v968 = vcombine.high %v952, %v952
    %v969 = vcombine.high %v959, %v959
    %v970 = vcombine.high %v966, %v966
    %v971 = vcombine.high %v585, %v585
    %v973 = vunpack.c.l.s4 1966171168
    %v974 = vunpack.c.0.s8 %v973
    %v975 = vlaneseq
    %v976 = vshrl.u32 %v975, 7
    %v977 = vsub.s32 %v974, %v976
    %v978 = vrot.slane %v585, %v977
    %v980 = vunpack.c.l.s4 1966171168
    %v981 = vunpack.c.0.s8 %v980
    %v982 = vlaneseq
    %v983 = vshrl.u32 %v982, 7
    %v984 = vsub.s32 %v981, %v983
    %v985 = vrot.slane %v971, %v984
    %v986 = vcombine.high %v978, %v978
    %v987 = vcombine.high %v985, %v985
    %v989 = vunpack.c.l.s4 1966171168
    %v990 = vunpack.c.0.s8 %v989
    %v991 = vlaneseq
    %v992 = vshrl.u32 %v991, 7
    %v993 = vsub.s32 %v990, %v992
    %v994 = vrot.slane %v978, %v993
    %v996 = vunpack.c.l.s4 1966171168
    %v997 = vunpack.c.0.s8 %v996
    %v998 = vlaneseq
    %v999 = vshrl.u32 %v998, 7
    %v1000 = vsub.s32 %v997, %v999
    %v1001 = vrot.slane %v985, %v1000
    %v1003 = vunpack.c.l.s4 1966171168
    %v1004 = vunpack.c.0.s8 %v1003
    %v1005 = vlaneseq
    %v1006 = vshrl.u32 %v1005, 7
    %v1007 = vsub.s32 %v1004, %v1006
    %v1008 = vrot.slane %v986, %v1007
    %v1010 = vunpack.c.l.s4 1966171168
    %v1011 = vunpack.c.0.s8 %v1010
    %v1012 = vlaneseq
    %v1013 = vshrl.u32 %v1012, 7
    %v1014 = vsub.s32 %v1011, %v1013
    %v1015 = vrot.slane %v987, %v1014
    %v1016 = vcombine.high %v994, %v994
    %v1017 = vcombine.high %v1001, %v1001
    %v1018 = vcombine.high %v1008, %v1008
    %v1019 = vcombine.high %v1015, %v1015
    %v1020 = vcombine.high %v586, %v586
    %v1022 = vunpack.c.l.s4 1966171168
    %v1023 = vunpack.c.0.s8 %v1022
    %v1024 = vlaneseq
    %v1025 = vshrl.u32 %v1024, 7
    %v1026 = vsub.s32 %v1023, %v1025
    %v1027 = vrot.slane %v586, %v1026
    %v1029 = vunpack.c.l.s4 1966171168
    %v1030 = vunpack.c.0.s8 %v1029
    %v1031 = vlaneseq
    %v1032 = vshrl.u32 %v1031, 7
    %v1033 = vsub.s32 %v1030, %v1032
    %v1034 = vrot.slane %v1020, %v1033
    %v1035 = vcombine.high %v1027, %v1027
    %v1036 = vcombine.high %v1034, %v1034
    %v1038 = vunpack.c.l.s4 1966171168
    %v1039 = vunpack.c.0.s8 %v1038
    %v1040 = vlaneseq
    %v1041 = vshrl.u32 %v1040, 7
    %v1042 = vsub.s32 %v1039, %v1041
    %v1043 = vrot.slane %v1027, %v1042
    %v1045 = vunpack.c.l.s4 1966171168
    %v1046 = vunpack.c.0.s8 %v1045
    %v1047 = vlaneseq
    %v1048 = vshrl.u32 %v1047, 7
    %v1049 = vsub.s32 %v1046, %v1048
    %v1050 = vrot.slane %v1034, %v1049
    %v1052 = vunpack.c.l.s4 1966171168
    %v1053 = vunpack.c.0.s8 %v1052
    %v1054 = vlaneseq
    %v1055 = vshrl.u32 %v1054, 7
    %v1056 = vsub.s32 %v1053, %v1055
    %v1057 = vrot.slane %v1035, %v1056
    %v1059 = vunpack.c.l.s4 1966171168
    %v1060 = vunpack.c.0.s8 %v1059
    %v1061 = vlaneseq
    %v1062 = vshrl.u32 %v1061, 7
    %v1063 = vsub.s32 %v1060, %v1062
    %v1064 = vrot.slane %v1036, %v1063
    %v1065 = vcombine.high %v1043, %v1043
    %v1066 = vcombine.high %v1050, %v1050
    %v1067 = vcombine.high %v1057, %v1057
    %v1068 = vcombine.high %v1064, %v1064
    %v1069 = vcombine.high %v587, %v587
    %v1071 = vunpack.c.l.s4 1966171168
    %v1072 = vunpack.c.0.s8 %v1071
    %v1073 = vlaneseq
    %v1074 = vshrl.u32 %v1073, 7
    %v1075 = vsub.s32 %v1072, %v1074
    %v1076 = vrot.slane %v587, %v1075
    %v1078 = vunpack.c.l.s4 1966171168
    %v1079 = vunpack.c.0.s8 %v1078
    %v1080 = vlaneseq
    %v1081 = vshrl.u32 %v1080, 7
    %v1082 = vsub.s32 %v1079, %v1081
    %v1083 = vrot.slane %v1069, %v1082
    %v1084 = vcombine.high %v1076, %v1076
    %v1085 = vcombine.high %v1083, %v1083
    %v1087 = vunpack.c.l.s4 1966171168
    %v1088 = vunpack.c.0.s8 %v1087
    %v1089 = vlaneseq
    %v1090 = vshrl.u32 %v1089, 7
    %v1091 = vsub.s32 %v1088, %v1090
    %v1092 = vrot.slane %v1076, %v1091
    %v1094 = vunpack.c.l.s4 1966171168
    %v1095 = vunpack.c.0.s8 %v1094
    %v1096 = vlaneseq
    %v1097 = vshrl.u32 %v1096, 7
    %v1098 = vsub.s32 %v1095, %v1097
    %v1099 = vrot.slane %v1083, %v1098
    %v1101 = vunpack.c.l.s4 1966171168
    %v1102 = vunpack.c.0.s8 %v1101
    %v1103 = vlaneseq
    %v1104 = vshrl.u32 %v1103, 7
    %v1105 = vsub.s32 %v1102, %v1104
    %v1106 = vrot.slane %v1084, %v1105
    %v1108 = vunpack.c.l.s4 1966171168
    %v1109 = vunpack.c.0.s8 %v1108
    %v1110 = vlaneseq
    %v1111 = vshrl.u32 %v1110, 7
    %v1112 = vsub.s32 %v1109, %v1111
    %v1113 = vrot.slane %v1085, %v1112
    %v1114 = vcombine.high %v1092, %v1092
    %v1115 = vcombine.high %v1099, %v1099
    %v1116 = vcombine.high %v1106, %v1106
    %v1117 = vcombine.high %v1113, %v1113
    %v1118 = vcombine.high %v588, %v588
    %v1120 = vunpack.c.l.s4 1966171168
    %v1121 = vunpack.c.0.s8 %v1120
    %v1122 = vlaneseq
    %v1123 = vshrl.u32 %v1122, 7
    %v1124 = vsub.s32 %v1121, %v1123
    %v1125 = vrot.slane %v588, %v1124
    %v1127 = vunpack.c.l.s4 1966171168
    %v1128 = vunpack.c.0.s8 %v1127
    %v1129 = vlaneseq
    %v1130 = vshrl.u32 %v1129, 7
    %v1131 = vsub.s32 %v1128, %v1130
    %v1132 = vrot.slane %v1118, %v1131
    %v1133 = vcombine.high %v1125, %v1125
    %v1134 = vcombine.high %v1132, %v1132
    %v1136 = vunpack.c.l.s4 1966171168
    %v1137 = vunpack.c.0.s8 %v1136
    %v1138 = vlaneseq
    %v1139 = vshrl.u32 %v1138, 7
    %v1140 = vsub.s32 %v1137, %v1139
    %v1141 = vrot.slane %v1125, %v1140
    %v1143 = vunpack.c.l.s4 1966171168
    %v1144 = vunpack.c.0.s8 %v1143
    %v1145 = vlaneseq
    %v1146 = vshrl.u32 %v1145, 7
    %v1147 = vsub.s32 %v1144, %v1146
    %v1148 = vrot.slane %v1132, %v1147
    %v1150 = vunpack.c.l.s4 1966171168
    %v1151 = vunpack.c.0.s8 %v1150
    %v1152 = vlaneseq
    %v1153 = vshrl.u32 %v1152, 7
    %v1154 = vsub.s32 %v1151, %v1153
    %v1155 = vrot.slane %v1133, %v1154
    %v1157 = vunpack.c.l.s4 1966171168
    %v1158 = vunpack.c.0.s8 %v1157
    %v1159 = vlaneseq
    %v1160 = vshrl.u32 %v1159, 7
    %v1161 = vsub.s32 %v1158, %v1160
    %v1162 = vrot.slane %v1134, %v1161
    %v1163 = vcombine.high %v1141, %v1141
    %v1164 = vcombine.high %v1148, %v1148
    %v1165 = vcombine.high %v1155, %v1155
    %v1166 = vcombine.high %v1162, %v1162
    %v1167 = vcombine.high %v589, %v589
    %v1169 = vunpack.c.l.s4 1966171168
    %v1170 = vunpack.c.0.s8 %v1169
    %v1171 = vlaneseq
    %v1172 = vshrl.u32 %v1171, 7
    %v1173 = vsub.s32 %v1170, %v1172
    %v1174 = vrot.slane %v589, %v1173
    %v1176 = vunpack.c.l.s4 1966171168
    %v1177 = vunpack.c.0.s8 %v1176
    %v1178 = vlaneseq
    %v1179 = vshrl.u32 %v1178, 7
    %v1180 = vsub.s32 %v1177, %v1179
    %v1181 = vrot.slane %v1167, %v1180
    %v1182 = vcombine.high %v1174, %v1174
    %v1183 = vcombine.high %v1181, %v1181
    %v1185 = vunpack.c.l.s4 1966171168
    %v1186 = vunpack.c.0.s8 %v1185
    %v1187 = vlaneseq
    %v1188 = vshrl.u32 %v1187, 7
    %v1189 = vsub.s32 %v1186, %v1188
    %v1190 = vrot.slane %v1174, %v1189
    %v1192 = vunpack.c.l.s4 1966171168
    %v1193 = vunpack.c.0.s8 %v1192
    %v1194 = vlaneseq
    %v1195 = vshrl.u32 %v1194, 7
    %v1196 = vsub.s32 %v1193, %v1195
    %v1197 = vrot.slane %v1181, %v1196
    %v1199 = vunpack.c.l.s4 1966171168
    %v1200 = vunpack.c.0.s8 %v1199
    %v1201 = vlaneseq
    %v1202 = vshrl.u32 %v1201, 7
    %v1203 = vsub.s32 %v1200, %v1202
    %v1204 = vrot.slane %v1182, %v1203
    %v1206 = vunpack.c.l.s4 1966171168
    %v1207 = vunpack.c.0.s8 %v1206
    %v1208 = vlaneseq
    %v1209 = vshrl.u32 %v1208, 7
    %v1210 = vsub.s32 %v1207, %v1209
    %v1211 = vrot.slane %v1183, %v1210
    %v1212 = vcombine.high %v1190, %v1190
    %v1213 = vcombine.high %v1197, %v1197
    %v1214 = vcombine.high %v1204, %v1204
    %v1215 = vcombine.high %v1211, %v1211
    %v1216 = vcombine.high %v590, %v590
    %v1218 = vunpack.c.l.s4 1966171168
    %v1219 = vunpack.c.0.s8 %v1218
    %v1220 = vlaneseq
    %v1221 = vshrl.u32 %v1220, 7
    %v1222 = vsub.s32 %v1219, %v1221
    %v1223 = vrot.slane %v590, %v1222
    %v1225 = vunpack.c.l.s4 1966171168
    %v1226 = vunpack.c.0.s8 %v1225
    %v1227 = vlaneseq
    %v1228 = vshrl.u32 %v1227, 7
    %v1229 = vsub.s32 %v1226, %v1228
    %v1230 = vrot.slane %v1216, %v1229
    %v1231 = vcombine.high %v1223, %v1223
    %v1232 = vcombine.high %v1230, %v1230
    %v1234 = vunpack.c.l.s4 1966171168
    %v1235 = vunpack.c.0.s8 %v1234
    %v1236 = vlaneseq
    %v1237 = vshrl.u32 %v1236, 7
    %v1238 = vsub.s32 %v1235, %v1237
    %v1239 = vrot.slane %v1223, %v1238
    %v1241 = vunpack.c.l.s4 1966171168
    %v1242 = vunpack.c.0.s8 %v1241
    %v1243 = vlaneseq
    %v1244 = vshrl.u32 %v1243, 7
    %v1245 = vsub.s32 %v1242, %v1244
    %v1246 = vrot.slane %v1230, %v1245
    %v1248 = vunpack.c.l.s4 1966171168
    %v1249 = vunpack.c.0.s8 %v1248
    %v1250 = vlaneseq
    %v1251 = vshrl.u32 %v1250, 7
    %v1252 = vsub.s32 %v1249, %v1251
    %v1253 = vrot.slane %v1231, %v1252
    %v1255 = vunpack.c.l.s4 1966171168
    %v1256 = vunpack.c.0.s8 %v1255
    %v1257 = vlaneseq
    %v1258 = vshrl.u32 %v1257, 7
    %v1259 = vsub.s32 %v1256, %v1258
    %v1260 = vrot.slane %v1232, %v1259
    %v1261 = vcombine.high %v1239, %v1239
    %v1262 = vcombine.high %v1246, %v1246
    %v1263 = vcombine.high %v1253, %v1253
    %v1264 = vcombine.high %v1260, %v1260
    %v1265 = vcombine.high %v591, %v591
    %v1267 = vunpack.c.l.s4 1966171168
    %v1268 = vunpack.c.0.s8 %v1267
    %v1269 = vlaneseq
    %v1270 = vshrl.u32 %v1269, 7
    %v1271 = vsub.s32 %v1268, %v1270
    %v1272 = vrot.slane %v591, %v1271
    %v1274 = vunpack.c.l.s4 1966171168
    %v1275 = vunpack.c.0.s8 %v1274
    %v1276 = vlaneseq
    %v1277 = vshrl.u32 %v1276, 7
    %v1278 = vsub.s32 %v1275, %v1277
    %v1279 = vrot.slane %v1265, %v1278
    %v1280 = vcombine.high %v1272, %v1272
    %v1281 = vcombine.high %v1279, %v1279
    %v1283 = vunpack.c.l.s4 1966171168
    %v1284 = vunpack.c.0.s8 %v1283
    %v1285 = vlaneseq
    %v1286 = vshrl.u32 %v1285, 7
    %v1287 = vsub.s32 %v1284, %v1286
    %v1288 = vrot.slane %v1272, %v1287
    %v1290 = vunpack.c.l.s4 1966171168
    %v1291 = vunpack.c.0.s8 %v1290
    %v1292 = vlaneseq
    %v1293 = vshrl.u32 %v1292, 7
    %v1294 = vsub.s32 %v1291, %v1293
    %v1295 = vrot.slane %v1279, %v1294
    %v1297 = vunpack.c.l.s4 1966171168
    %v1298 = vunpack.c.0.s8 %v1297
    %v1299 = vlaneseq
    %v1300 = vshrl.u32 %v1299, 7
    %v1301 = vsub.s32 %v1298, %v1300
    %v1302 = vrot.slane %v1280, %v1301
    %v1304 = vunpack.c.l.s4 1966171168
    %v1305 = vunpack.c.0.s8 %v1304
    %v1306 = vlaneseq
    %v1307 = vshrl.u32 %v1306, 7
    %v1308 = vsub.s32 %v1305, %v1307
    %v1309 = vrot.slane %v1281, %v1308
    %v1310 = vcombine.high %v1288, %v1288
    %v1311 = vcombine.high %v1295, %v1295
    %v1312 = vcombine.high %v1302, %v1302
    %v1313 = vcombine.high %v1309, %v1309
    %v1314 = vcombine.high %v592, %v592
    %v1316 = vunpack.c.l.s4 1966171168
    %v1317 = vunpack.c.0.s8 %v1316
    %v1318 = vlaneseq
    %v1319 = vshrl.u32 %v1318, 7
    %v1320 = vsub.s32 %v1317, %v1319
    %v1321 = vrot.slane %v592, %v1320
    %v1323 = vunpack.c.l.s4 1966171168
    %v1324 = vunpack.c.0.s8 %v1323
    %v1325 = vlaneseq
    %v1326 = vshrl.u32 %v1325, 7
    %v1327 = vsub.s32 %v1324, %v1326
    %v1328 = vrot.slane %v1314, %v1327
    %v1329 = vcombine.high %v1321, %v1321
    %v1330 = vcombine.high %v1328, %v1328
    %v1332 = vunpack.c.l.s4 1966171168
    %v1333 = vunpack.c.0.s8 %v1332
    %v1334 = vlaneseq
    %v1335 = vshrl.u32 %v1334, 7
    %v1336 = vsub.s32 %v1333, %v1335
    %v1337 = vrot.slane %v1321, %v1336
    %v1339 = vunpack.c.l.s4 1966171168
    %v1340 = vunpack.c.0.s8 %v1339
    %v1341 = vlaneseq
    %v1342 = vshrl.u32 %v1341, 7
    %v1343 = vsub.s32 %v1340, %v1342
    %v1344 = vrot.slane %v1328, %v1343
    %v1346 = vunpack.c.l.s4 1966171168
    %v1347 = vunpack.c.0.s8 %v1346
    %v1348 = vlaneseq
    %v1349 = vshrl.u32 %v1348, 7
    %v1350 = vsub.s32 %v1347, %v1349
    %v1351 = vrot.slane %v1329, %v1350
    %v1353 = vunpack.c.l.s4 1966171168
    %v1354 = vunpack.c.0.s8 %v1353
    %v1355 = vlaneseq
    %v1356 = vshrl.u32 %v1355, 7
    %v1357 = vsub.s32 %v1354, %v1356
    %v1358 = vrot.slane %v1330, %v1357
    %v1359 = vcombine.high %v1337, %v1337
    %v1360 = vcombine.high %v1344, %v1344
    %v1361 = vcombine.high %v1351, %v1351
    %v1362 = vcombine.high %v1358, %v1358
    %v1363 = vcombine.high %v593, %v593
    %v1365 = vunpack.c.l.s4 1966171168
    %v1366 = vunpack.c.0.s8 %v1365
    %v1367 = vlaneseq
    %v1368 = vshrl.u32 %v1367, 7
    %v1369 = vsub.s32 %v1366, %v1368
    %v1370 = vrot.slane %v593, %v1369
    %v1372 = vunpack.c.l.s4 1966171168
    %v1373 = vunpack.c.0.s8 %v1372
    %v1374 = vlaneseq
    %v1375 = vshrl.u32 %v1374, 7
    %v1376 = vsub.s32 %v1373, %v1375
    %v1377 = vrot.slane %v1363, %v1376
    %v1378 = vcombine.high %v1370, %v1370
    %v1379 = vcombine.high %v1377, %v1377
    %v1381 = vunpack.c.l.s4 1966171168
    %v1382 = vunpack.c.0.s8 %v1381
    %v1383 = vlaneseq
    %v1384 = vshrl.u32 %v1383, 7
    %v1385 = vsub.s32 %v1382, %v1384
    %v1386 = vrot.slane %v1370, %v1385
    %v1388 = vunpack.c.l.s4 1966171168
    %v1389 = vunpack.c.0.s8 %v1388
    %v1390 = vlaneseq
    %v1391 = vshrl.u32 %v1390, 7
    %v1392 = vsub.s32 %v1389, %v1391
    %v1393 = vrot.slane %v1377, %v1392
    %v1395 = vunpack.c.l.s4 1966171168
    %v1396 = vunpack.c.0.s8 %v1395
    %v1397 = vlaneseq
    %v1398 = vshrl.u32 %v1397, 7
    %v1399 = vsub.s32 %v1396, %v1398
    %v1400 = vrot.slane %v1378, %v1399
    %v1402 = vunpack.c.l.s4 1966171168
    %v1403 = vunpack.c.0.s8 %v1402
    %v1404 = vlaneseq
    %v1405 = vshrl.u32 %v1404, 7
    %v1406 = vsub.s32 %v1403, %v1405
    %v1407 = vrot.slane %v1379, %v1406
    %v1408 = vcombine.high %v1386, %v1386
    %v1409 = vcombine.high %v1393, %v1393
    %v1410 = vcombine.high %v1400, %v1400
    %v1411 = vcombine.high %v1407, %v1407
    %v1412 = vcombine.high %v594, %v594
    %v1414 = vunpack.c.l.s4 1966171168
    %v1415 = vunpack.c.0.s8 %v1414
    %v1416 = vlaneseq
    %v1417 = vshrl.u32 %v1416, 7
    %v1418 = vsub.s32 %v1415, %v1417
    %v1419 = vrot.slane %v594, %v1418
    %v1421 = vunpack.c.l.s4 1966171168
    %v1422 = vunpack.c.0.s8 %v1421
    %v1423 = vlaneseq
    %v1424 = vshrl.u32 %v1423, 7
    %v1425 = vsub.s32 %v1422, %v1424
    %v1426 = vrot.slane %v1412, %v1425
    %v1427 = vcombine.high %v1419, %v1419
    %v1428 = vcombine.high %v1426, %v1426
    %v1430 = vunpack.c.l.s4 1966171168
    %v1431 = vunpack.c.0.s8 %v1430
    %v1432 = vlaneseq
    %v1433 = vshrl.u32 %v1432, 7
    %v1434 = vsub.s32 %v1431, %v1433
    %v1435 = vrot.slane %v1419, %v1434
    %v1437 = vunpack.c.l.s4 1966171168
    %v1438 = vunpack.c.0.s8 %v1437
    %v1439 = vlaneseq
    %v1440 = vshrl.u32 %v1439, 7
    %v1441 = vsub.s32 %v1438, %v1440
    %v1442 = vrot.slane %v1426, %v1441
    %v1444 = vunpack.c.l.s4 1966171168
    %v1445 = vunpack.c.0.s8 %v1444
    %v1446 = vlaneseq
    %v1447 = vshrl.u32 %v1446, 7
    %v1448 = vsub.s32 %v1445, %v1447
    %v1449 = vrot.slane %v1427, %v1448
    %v1451 = vunpack.c.l.s4 1966171168
    %v1452 = vunpack.c.0.s8 %v1451
    %v1453 = vlaneseq
    %v1454 = vshrl.u32 %v1453, 7
    %v1455 = vsub.s32 %v1452, %v1454
    %v1456 = vrot.slane %v1428, %v1455
    %v1457 = vcombine.high %v1435, %v1435
    %v1458 = vcombine.high %v1442, %v1442
    %v1459 = vcombine.high %v1449, %v1449
    %v1460 = vcombine.high %v1456, %v1456
    %v1461 = vcombine.high %v595, %v595
    %v1463 = vunpack.c.l.s4 1966171168
    %v1464 = vunpack.c.0.s8 %v1463
    %v1465 = vlaneseq
    %v1466 = vshrl.u32 %v1465, 7
    %v1467 = vsub.s32 %v1464, %v1466
    %v1468 = vrot.slane %v595, %v1467
    %v1470 = vunpack.c.l.s4 1966171168
    %v1471 = vunpack.c.0.s8 %v1470
    %v1472 = vlaneseq
    %v1473 = vshrl.u32 %v1472, 7
    %v1474 = vsub.s32 %v1471, %v1473
    %v1475 = vrot.slane %v1461, %v1474
    %v1476 = vcombine.high %v1468, %v1468
    %v1477 = vcombine.high %v1475, %v1475
    %v1479 = vunpack.c.l.s4 1966171168
    %v1480 = vunpack.c.0.s8 %v1479
    %v1481 = vlaneseq
    %v1482 = vshrl.u32 %v1481, 7
    %v1483 = vsub.s32 %v1480, %v1482
    %v1484 = vrot.slane %v1468, %v1483
    %v1486 = vunpack.c.l.s4 1966171168
    %v1487 = vunpack.c.0.s8 %v1486
    %v1488 = vlaneseq
    %v1489 = vshrl.u32 %v1488, 7
    %v1490 = vsub.s32 %v1487, %v1489
    %v1491 = vrot.slane %v1475, %v1490
    %v1493 = vunpack.c.l.s4 1966171168
    %v1494 = vunpack.c.0.s8 %v1493
    %v1495 = vlaneseq
    %v1496 = vshrl.u32 %v1495, 7
    %v1497 = vsub.s32 %v1494, %v1496
    %v1498 = vrot.slane %v1476, %v1497
    %v1500 = vunpack.c.l.s4 1966171168
    %v1501 = vunpack.c.0.s8 %v1500
    %v1502 = vlaneseq
    %v1503 = vshrl.u32 %v1502, 7
    %v1504 = vsub.s32 %v1501, %v1503
    %v1505 = vrot.slane %v1477, %v1504
    %v1506 = vcombine.high %v1484, %v1484
    %v1507 = vcombine.high %v1491, %v1491
    %v1508 = vcombine.high %v1498, %v1498
    %v1509 = vcombine.high %v1505, %v1505
    %v1510 = vcombine.high %v596, %v596
    %v1512 = vunpack.c.l.s4 1966171168
    %v1513 = vunpack.c.0.s8 %v1512
    %v1514 = vlaneseq
    %v1515 = vshrl.u32 %v1514, 7
    %v1516 = vsub.s32 %v1513, %v1515
    %v1517 = vrot.slane %v596, %v1516
    %v1519 = vunpack.c.l.s4 1966171168
    %v1520 = vunpack.c.0.s8 %v1519
    %v1521 = vlaneseq
    %v1522 = vshrl.u32 %v1521, 7
    %v1523 = vsub.s32 %v1520, %v1522
    %v1524 = vrot.slane %v1510, %v1523
    %v1525 = vcombine.high %v1517, %v1517
    %v1526 = vcombine.high %v1524, %v1524
    %v1528 = vunpack.c.l.s4 1966171168
    %v1529 = vunpack.c.0.s8 %v1528
    %v1530 = vlaneseq
    %v1531 = vshrl.u32 %v1530, 7
    %v1532 = vsub.s32 %v1529, %v1531
    %v1533 = vrot.slane %v1517, %v1532
    %v1535 = vunpack.c.l.s4 1966171168
    %v1536 = vunpack.c.0.s8 %v1535
    %v1537 = vlaneseq
    %v1538 = vshrl.u32 %v1537, 7
    %v1539 = vsub.s32 %v1536, %v1538
    %v1540 = vrot.slane %v1524, %v1539
    %v1542 = vunpack.c.l.s4 1966171168
    %v1543 = vunpack.c.0.s8 %v1542
    %v1544 = vlaneseq
    %v1545 = vshrl.u32 %v1544, 7
    %v1546 = vsub.s32 %v1543, %v1545
    %v1547 = vrot.slane %v1525, %v1546
    %v1549 = vunpack.c.l.s4 1966171168
    %v1550 = vunpack.c.0.s8 %v1549
    %v1551 = vlaneseq
    %v1552 = vshrl.u32 %v1551, 7
    %v1553 = vsub.s32 %v1550, %v1552
    %v1554 = vrot.slane %v1526, %v1553
    %v1555 = vcombine.high %v1533, %v1533
    %v1556 = vcombine.high %v1540, %v1540
    %v1557 = vcombine.high %v1547, %v1547
    %v1558 = vcombine.high %v1554, %v1554
    %v1559 = vcombine.high %v597, %v597
    %v1561 = vunpack.c.l.s4 1966171168
    %v1562 = vunpack.c.0.s8 %v1561
    %v1563 = vlaneseq
    %v1564 = vshrl.u32 %v1563, 7
    %v1565 = vsub.s32 %v1562, %v1564
    %v1566 = vrot.slane %v597, %v1565
    %v1568 = vunpack.c.l.s4 1966171168
    %v1569 = vunpack.c.0.s8 %v1568
    %v1570 = vlaneseq
    %v1571 = vshrl.u32 %v1570, 7
    %v1572 = vsub.s32 %v1569, %v1571
    %v1573 = vrot.slane %v1559, %v1572
    %v1574 = vcombine.high %v1566, %v1566
    %v1575 = vcombine.high %v1573, %v1573
    %v1577 = vunpack.c.l.s4 1966171168
    %v1578 = vunpack.c.0.s8 %v1577
    %v1579 = vlaneseq
    %v1580 = vshrl.u32 %v1579, 7
    %v1581 = vsub.s32 %v1578, %v1580
    %v1582 = vrot.slane %v1566, %v1581
    %v1584 = vunpack.c.l.s4 1966171168
    %v1585 = vunpack.c.0.s8 %v1584
    %v1586 = vlaneseq
    %v1587 = vshrl.u32 %v1586, 7
    %v1588 = vsub.s32 %v1585, %v1587
    %v1589 = vrot.slane %v1573, %v1588
    %v1591 = vunpack.c.l.s4 1966171168
    %v1592 = vunpack.c.0.s8 %v1591
    %v1593 = vlaneseq
    %v1594 = vshrl.u32 %v1593, 7
    %v1595 = vsub.s32 %v1592, %v1594
    %v1596 = vrot.slane %v1574, %v1595
    %v1598 = vunpack.c.l.s4 1966171168
    %v1599 = vunpack.c.0.s8 %v1598
    %v1600 = vlaneseq
    %v1601 = vshrl.u32 %v1600, 7
    %v1602 = vsub.s32 %v1599, %v1601
    %v1603 = vrot.slane %v1575, %v1602
    %v1604 = vcombine.high %v1582, %v1582
    %v1605 = vcombine.high %v1589, %v1589
    %v1606 = vcombine.high %v1596, %v1596
    %v1607 = vcombine.high %v1603, %v1603
    %v1608 = vcombine.high %v598, %v598
    %v1610 = vunpack.c.l.s4 1966171168
    %v1611 = vunpack.c.0.s8 %v1610
    %v1612 = vlaneseq
    %v1613 = vshrl.u32 %v1612, 7
    %v1614 = vsub.s32 %v1611, %v1613
    %v1615 = vrot.slane %v598, %v1614
    %v1617 = vunpack.c.l.s4 1966171168
    %v1618 = vunpack.c.0.s8 %v1617
    %v1619 = vlaneseq
    %v1620 = vshrl.u32 %v1619, 7
    %v1621 = vsub.s32 %v1618, %v1620
    %v1622 = vrot.slane %v1608, %v1621
    %v1623 = vcombine.high %v1615, %v1615
    %v1624 = vcombine.high %v1622, %v1622
    %v1626 = vunpack.c.l.s4 1966171168
    %v1627 = vunpack.c.0.s8 %v1626
    %v1628 = vlaneseq
    %v1629 = vshrl.u32 %v1628, 7
    %v1630 = vsub.s32 %v1627, %v1629
    %v1631 = vrot.slane %v1615, %v1630
    %v1633 = vunpack.c.l.s4 1966171168
    %v1634 = vunpack.c.0.s8 %v1633
    %v1635 = vlaneseq
    %v1636 = vshrl.u32 %v1635, 7
    %v1637 = vsub.s32 %v1634, %v1636
    %v1638 = vrot.slane %v1622, %v1637
    %v1640 = vunpack.c.l.s4 1966171168
    %v1641 = vunpack.c.0.s8 %v1640
    %v1642 = vlaneseq
    %v1643 = vshrl.u32 %v1642, 7
    %v1644 = vsub.s32 %v1641, %v1643
    %v1645 = vrot.slane %v1623, %v1644
    %v1647 = vunpack.c.l.s4 1966171168
    %v1648 = vunpack.c.0.s8 %v1647
    %v1649 = vlaneseq
    %v1650 = vshrl.u32 %v1649, 7
    %v1651 = vsub.s32 %v1648, %v1650
    %v1652 = vrot.slane %v1624, %v1651
    %v1653 = vcombine.high %v1631, %v1631
    %v1654 = vcombine.high %v1638, %v1638
    %v1655 = vcombine.high %v1645, %v1645
    %v1656 = vcombine.high %v1652, %v1652
    %v1657 = vcombine.high %v599, %v599
    %v1659 = vunpack.c.l.s4 1966171168
    %v1660 = vunpack.c.0.s8 %v1659
    %v1661 = vlaneseq
    %v1662 = vshrl.u32 %v1661, 7
    %v1663 = vsub.s32 %v1660, %v1662
    %v1664 = vrot.slane %v599, %v1663
    %v1666 = vunpack.c.l.s4 1966171168
    %v1667 = vunpack.c.0.s8 %v1666
    %v1668 = vlaneseq
    %v1669 = vshrl.u32 %v1668, 7
    %v1670 = vsub.s32 %v1667, %v1669
    %v1671 = vrot.slane %v1657, %v1670
    %v1672 = vcombine.high %v1664, %v1664
    %v1673 = vcombine.high %v1671, %v1671
    %v1675 = vunpack.c.l.s4 1966171168
    %v1676 = vunpack.c.0.s8 %v1675
    %v1677 = vlaneseq
    %v1678 = vshrl.u32 %v1677, 7
    %v1679 = vsub.s32 %v1676, %v1678
    %v1680 = vrot.slane %v1664, %v1679
    %v1682 = vunpack.c.l.s4 1966171168
    %v1683 = vunpack.c.0.s8 %v1682
    %v1684 = vlaneseq
    %v1685 = vshrl.u32 %v1684, 7
    %v1686 = vsub.s32 %v1683, %v1685
    %v1687 = vrot.slane %v1671, %v1686
    %v1689 = vunpack.c.l.s4 1966171168
    %v1690 = vunpack.c.0.s8 %v1689
    %v1691 = vlaneseq
    %v1692 = vshrl.u32 %v1691, 7
    %v1693 = vsub.s32 %v1690, %v1692
    %v1694 = vrot.slane %v1672, %v1693
    %v1696 = vunpack.c.l.s4 1966171168
    %v1697 = vunpack.c.0.s8 %v1696
    %v1698 = vlaneseq
    %v1699 = vshrl.u32 %v1698, 7
    %v1700 = vsub.s32 %v1697, %v1699
    %v1701 = vrot.slane %v1673, %v1700
    %v1702 = vcombine.high %v1680, %v1680
    %v1703 = vcombine.high %v1687, %v1687
    %v1704 = vcombine.high %v1694, %v1694
    %v1705 = vcombine.high %v1701, %v1701
    %v1706 = vcombine.high %v600, %v600
    %v1708 = vunpack.c.l.s4 1966171168
    %v1709 = vunpack.c.0.s8 %v1708
    %v1710 = vlaneseq
    %v1711 = vshrl.u32 %v1710, 7
    %v1712 = vsub.s32 %v1709, %v1711
    %v1713 = vrot.slane %v600, %v1712
    %v1715 = vunpack.c.l.s4 1966171168
    %v1716 = vunpack.c.0.s8 %v1715
    %v1717 = vlaneseq
    %v1718 = vshrl.u32 %v1717, 7
    %v1719 = vsub.s32 %v1716, %v1718
    %v1720 = vrot.slane %v1706, %v1719
    %v1721 = vcombine.high %v1713, %v1713
    %v1722 = vcombine.high %v1720, %v1720
    %v1724 = vunpack.c.l.s4 1966171168
    %v1725 = vunpack.c.0.s8 %v1724
    %v1726 = vlaneseq
    %v1727 = vshrl.u32 %v1726, 7
    %v1728 = vsub.s32 %v1725, %v1727
    %v1729 = vrot.slane %v1713, %v1728
    %v1731 = vunpack.c.l.s4 1966171168
    %v1732 = vunpack.c.0.s8 %v1731
    %v1733 = vlaneseq
    %v1734 = vshrl.u32 %v1733, 7
    %v1735 = vsub.s32 %v1732, %v1734
    %v1736 = vrot.slane %v1720, %v1735
    %v1738 = vunpack.c.l.s4 1966171168
    %v1739 = vunpack.c.0.s8 %v1738
    %v1740 = vlaneseq
    %v1741 = vshrl.u32 %v1740, 7
    %v1742 = vsub.s32 %v1739, %v1741
    %v1743 = vrot.slane %v1721, %v1742
    %v1745 = vunpack.c.l.s4 1966171168
    %v1746 = vunpack.c.0.s8 %v1745
    %v1747 = vlaneseq
    %v1748 = vshrl.u32 %v1747, 7
    %v1749 = vsub.s32 %v1746, %v1748
    %v1750 = vrot.slane %v1722, %v1749
    %v1751 = vcombine.high %v1729, %v1729
    %v1752 = vcombine.high %v1736, %v1736
    %v1753 = vcombine.high %v1743, %v1743
    %v1754 = vcombine.high %v1750, %v1750
    %v1755 = vcombine.high %v601, %v601
    %v1757 = vunpack.c.l.s4 1966171168
    %v1758 = vunpack.c.0.s8 %v1757
    %v1759 = vlaneseq
    %v1760 = vshrl.u32 %v1759, 7
    %v1761 = vsub.s32 %v1758, %v1760
    %v1762 = vrot.slane %v601, %v1761
    %v1764 = vunpack.c.l.s4 1966171168
    %v1765 = vunpack.c.0.s8 %v1764
    %v1766 = vlaneseq
    %v1767 = vshrl.u32 %v1766, 7
    %v1768 = vsub.s32 %v1765, %v1767
    %v1769 = vrot.slane %v1755, %v1768
    %v1770 = vcombine.high %v1762, %v1762
    %v1771 = vcombine.high %v1769, %v1769
    %v1773 = vunpack.c.l.s4 1966171168
    %v1774 = vunpack.c.0.s8 %v1773
    %v1775 = vlaneseq
    %v1776 = vshrl.u32 %v1775, 7
    %v1777 = vsub.s32 %v1774, %v1776
    %v1778 = vrot.slane %v1762, %v1777
    %v1780 = vunpack.c.l.s4 1966171168
    %v1781 = vunpack.c.0.s8 %v1780
    %v1782 = vlaneseq
    %v1783 = vshrl.u32 %v1782, 7
    %v1784 = vsub.s32 %v1781, %v1783
    %v1785 = vrot.slane %v1769, %v1784
    %v1787 = vunpack.c.l.s4 1966171168
    %v1788 = vunpack.c.0.s8 %v1787
    %v1789 = vlaneseq
    %v1790 = vshrl.u32 %v1789, 7
    %v1791 = vsub.s32 %v1788, %v1790
    %v1792 = vrot.slane %v1770, %v1791
    %v1794 = vunpack.c.l.s4 1966171168
    %v1795 = vunpack.c.0.s8 %v1794
    %v1796 = vlaneseq
    %v1797 = vshrl.u32 %v1796, 7
    %v1798 = vsub.s32 %v1795, %v1797
    %v1799 = vrot.slane %v1771, %v1798
    %v1800 = vcombine.high %v1778, %v1778
    %v1801 = vcombine.high %v1785, %v1785
    %v1802 = vcombine.high %v1792, %v1792
    %v1803 = vcombine.high %v1799, %v1799
    %v1805 = vunpack.c.l.s4 1966171168
    %v1806 = vunpack.c.0.s8 %v1805
    %v1807 = vlaneseq
    %v1808 = vshrl.u32 %v1807, 7
    %v1809 = vsub.s32 %v1806, %v1808
    %v1810 = vrot.slane %v602, %v1809
    %v1811 = vcombine.high %v1810, %v1810
    %v1813 = vunpack.c.l.s4 1966171168
    %v1814 = vunpack.c.0.s8 %v1813
    %v1815 = vlaneseq
    %v1816 = vshrl.u32 %v1815, 7
    %v1817 = vsub.s32 %v1814, %v1816
    %v1818 = vrot.slane %v1810, %v1817
    %v1820 = vunpack.c.l.s4 1966171168
    %v1821 = vunpack.c.0.s8 %v1820
    %v1822 = vlaneseq
    %v1823 = vshrl.u32 %v1822, 7
    %v1824 = vsub.s32 %v1821, %v1823
    %v1825 = vrot.slane %v1811, %v1824
    %v1826 = vcombine.high %v1818, %v1818
    %v1827 = vcombine.high %v1825, %v1825
    %v1828 = vld [vmem:[%s4] sm:$0x3f]
    %s1829 = scalar_lea.vmem %s4, 8
    %v1830 = vld [vmem:[%s1829] sm:$0x3f]
    %v1831 = vcombine.low %v665, %v673
    %v1832 = vcombine.low %v675, %v658
    %v1833 = vcombine.low %v700, %v714
    %v1834 = vcombine.low %v722, %v724
    %v1836 = vunpack.c.l.s4 1966171168
    %v1837 = vunpack.c.0.s8 %v1836
    %v1838 = vlaneseq
    %v1839 = vshrl.u32 %v1838, 7
    %v1840 = vsub.s32 %v1837, %v1839
    %v1841 = vrot.slane %v1831, %v1840
    %v1843 = vunpack.c.l.s4 1966171168
    %v1844 = vunpack.c.0.s8 %v1843
    %v1845 = vlaneseq
    %v1846 = vshrl.u32 %v1845, 7
    %v1847 = vsub.s32 %v1844, %v1846
    %v1848 = vrot.slane %v1832, %v1847
    %v1850 = vunpack.c.l.s4 1966171168
    %v1851 = vunpack.c.0.s8 %v1850
    %v1852 = vlaneseq
    %v1853 = vshrl.u32 %v1852, 7
    %v1854 = vsub.s32 %v1851, %v1853
    %v1855 = vrot.slane %v1833, %v1854
    %v1857 = vunpack.c.l.s4 1966171168
    %v1858 = vunpack.c.0.s8 %v1857
    %v1859 = vlaneseq
    %v1860 = vshrl.u32 %v1859, 7
    %v1861 = vsub.s32 %v1858, %v1860
    %v1862 = vrot.slane %v1834, %v1861
    %v1863 = vcombine.low %v1841, %v1848
    %v1864 = vcombine.low %v1855, %v1862
    %v1866 = vunpack.c.l.s4 1966171168
    %v1867 = vunpack.c.0.s8 %v1866
    %v1868 = vlaneseq
    %v1869 = vshrl.u32 %v1868, 7
    %v1870 = vsub.s32 %v1867, %v1869
    %v1871 = vrot.slane %v1863, %v1870
    %v1873 = vunpack.c.l.s4 1966171168
    %v1874 = vunpack.c.0.s8 %v1873
    %v1875 = vlaneseq
    %v1876 = vshrl.u32 %v1875, 7
    %v1877 = vsub.s32 %v1874, %v1876
    %v1878 = vrot.slane %v1864, %v1877
    %v1879 = vcombine.low %v1871, %v1878
    %v1880 = vcombine.low %v725, %v749
    %v1881 = vcombine.low %v763, %v771
    %v1882 = vcombine.low %v772, %v774
    %v1883 = vcombine.low %v798, %v812
    %v1885 = vunpack.c.l.s4 1966171168
    %v1886 = vunpack.c.0.s8 %v1885
    %v1887 = vlaneseq
    %v1888 = vshrl.u32 %v1887, 7
    %v1889 = vsub.s32 %v1886, %v1888
    %v1890 = vrot.slane %v1880, %v1889
    %v1892 = vunpack.c.l.s4 1966171168
    %v1893 = vunpack.c.0.s8 %v1892
    %v1894 = vlaneseq
    %v1895 = vshrl.u32 %v1894, 7
    %v1896 = vsub.s32 %v1893, %v1895
    %v1897 = vrot.slane %v1881, %v1896
    %v1899 = vunpack.c.l.s4 1966171168
    %v1900 = vunpack.c.0.s8 %v1899
    %v1901 = vlaneseq
    %v1902 = vshrl.u32 %v1901, 7
    %v1903 = vsub.s32 %v1900, %v1902
    %v1904 = vrot.slane %v1882, %v1903
    %v1906 = vunpack.c.l.s4 1966171168
    %v1907 = vunpack.c.0.s8 %v1906
    %v1908 = vlaneseq
    %v1909 = vshrl.u32 %v1908, 7
    %v1910 = vsub.s32 %v1907, %v1909
    %v1911 = vrot.slane %v1883, %v1910
    %v1912 = vcombine.low %v1890, %v1897
    %v1913 = vcombine.low %v1904, %v1911
    %v1915 = vunpack.c.l.s4 1966171168
    %v1916 = vunpack.c.0.s8 %v1915
    %v1917 = vlaneseq
    %v1918 = vshrl.u32 %v1917, 7
    %v1919 = vsub.s32 %v1916, %v1918
    %v1920 = vrot.slane %v1912, %v1919
    %v1922 = vunpack.c.l.s4 1966171168
    %v1923 = vunpack.c.0.s8 %v1922
    %v1924 = vlaneseq
    %v1925 = vshrl.u32 %v1924, 7
    %v1926 = vsub.s32 %v1923, %v1925
    %v1927 = vrot.slane %v1913, %v1926
    %v1928 = vcombine.low %v1920, %v1927
    %v1929 = vcombine.low %v967, %v969
    %v1930 = vcombine.low %v952, %v966
    %v1931 = vcombine.low %v1008, %v1016
    %v1932 = vcombine.low %v1018, %v1001
    %v1934 = vunpack.c.l.s4 1966171168
    %v1935 = vunpack.c.0.s8 %v1934
    %v1936 = vlaneseq
    %v1937 = vshrl.u32 %v1936, 7
    %v1938 = vsub.s32 %v1935, %v1937
    %v1939 = vrot.slane %v1929, %v1938
    %v1941 = vunpack.c.l.s4 1966171168
    %v1942 = vunpack.c.0.s8 %v1941
    %v1943 = vlaneseq
    %v1944 = vshrl.u32 %v1943, 7
    %v1945 = vsub.s32 %v1942, %v1944
    %v1946 = vrot.slane %v1930, %v1945
    %v1948 = vunpack.c.l.s4 1966171168
    %v1949 = vunpack.c.0.s8 %v1948
    %v1950 = vlaneseq
    %v1951 = vshrl.u32 %v1950, 7
    %v1952 = vsub.s32 %v1949, %v1951
    %v1953 = vrot.slane %v1931, %v1952
    %v1955 = vunpack.c.l.s4 1966171168
    %v1956 = vunpack.c.0.s8 %v1955
    %v1957 = vlaneseq
    %v1958 = vshrl.u32 %v1957, 7
    %v1959 = vsub.s32 %v1956, %v1958
    %v1960 = vrot.slane %v1932, %v1959
    %v1961 = vcombine.low %v1939, %v1946
    %v1962 = vcombine.low %v1953, %v1960
    %v1964 = vunpack.c.l.s4 1966171168
    %v1965 = vunpack.c.0.s8 %v1964
    %v1966 = vlaneseq
    %v1967 = vshrl.u32 %v1966, 7
    %v1968 = vsub.s32 %v1965, %v1967
    %v1969 = vrot.slane %v1961, %v1968
    %v1971 = vunpack.c.l.s4 1966171168
    %v1972 = vunpack.c.0.s8 %v1971
    %v1973 = vlaneseq
    %v1974 = vshrl.u32 %v1973, 7
    %v1975 = vsub.s32 %v1972, %v1974
    %v1976 = vrot.slane %v1962, %v1975
    %v1977 = vcombine.low %v1969, %v1976
    %v1978 = vcombine.low %v1043, %v1057
    %v1979 = vcombine.low %v1065, %v1067
    %v1980 = vcombine.low %v1068, %v1092
    %v1981 = vcombine.low %v1106, %v1114
    %v1983 = vunpack.c.l.s4 1966171168
    %v1984 = vunpack.c.0.s8 %v1983
    %v1985 = vlaneseq
    %v1986 = vshrl.u32 %v1985, 7
    %v1987 = vsub.s32 %v1984, %v1986
    %v1988 = vrot.slane %v1978, %v1987
    %v1990 = vunpack.c.l.s4 1966171168
    %v1991 = vunpack.c.0.s8 %v1990
    %v1992 = vlaneseq
    %v1993 = vshrl.u32 %v1992, 7
    %v1994 = vsub.s32 %v1991, %v1993
    %v1995 = vrot.slane %v1979, %v1994
    %v1997 = vunpack.c.l.s4 1966171168
    %v1998 = vunpack.c.0.s8 %v1997
    %v1999 = vlaneseq
    %v2000 = vshrl.u32 %v1999, 7
    %v2001 = vsub.s32 %v1998, %v2000
    %v2002 = vrot.slane %v1980, %v2001
    %v2004 = vunpack.c.l.s4 1966171168
    %v2005 = vunpack.c.0.s8 %v2004
    %v2006 = vlaneseq
    %v2007 = vshrl.u32 %v2006, 7
    %v2008 = vsub.s32 %v2005, %v2007
    %v2009 = vrot.slane %v1981, %v2008
    %v2010 = vcombine.low %v1988, %v1995
    %v2011 = vcombine.low %v2002, %v2009
    %v2013 = vunpack.c.l.s4 1966171168
    %v2014 = vunpack.c.0.s8 %v2013
    %v2015 = vlaneseq
    %v2016 = vshrl.u32 %v2015, 7
    %v2017 = vsub.s32 %v2014, %v2016
    %v2018 = vrot.slane %v2010, %v2017
    %v2020 = vunpack.c.l.s4 1966171168
    %v2021 = vunpack.c.0.s8 %v2020
    %v2022 = vlaneseq
    %v2023 = vshrl.u32 %v2022, 7
    %v2024 = vsub.s32 %v2021, %v2023
    %v2025 = vrot.slane %v2011, %v2024
    %v2026 = vcombine.low %v2018, %v2025
    %v2027 = vcombine.low %v1263, %v1246
    %v2028 = vcombine.low %v1260, %v1262
    %v2029 = vcombine.low %v1310, %v1312
    %v2030 = vcombine.low %v1295, %v1309
    %v2032 = vunpack.c.l.s4 1966171168
    %v2033 = vunpack.c.0.s8 %v2032
    %v2034 = vlaneseq
    %v2035 = vshrl.u32 %v2034, 7
    %v2036 = vsub.s32 %v2033, %v2035
    %v2037 = vrot.slane %v2027, %v2036
    %v2039 = vunpack.c.l.s4 1966171168
    %v2040 = vunpack.c.0.s8 %v2039
    %v2041 = vlaneseq
    %v2042 = vshrl.u32 %v2041, 7
    %v2043 = vsub.s32 %v2040, %v2042
    %v2044 = vrot.slane %v2028, %v2043
    %v2046 = vunpack.c.l.s4 1966171168
    %v2047 = vunpack.c.0.s8 %v2046
    %v2048 = vlaneseq
    %v2049 = vshrl.u32 %v2048, 7
    %v2050 = vsub.s32 %v2047, %v2049
    %v2051 = vrot.slane %v2029, %v2050
    %v2053 = vunpack.c.l.s4 1966171168
    %v2054 = vunpack.c.0.s8 %v2053
    %v2055 = vlaneseq
    %v2056 = vshrl.u32 %v2055, 7
    %v2057 = vsub.s32 %v2054, %v2056
    %v2058 = vrot.slane %v2030, %v2057
    %v2059 = vcombine.low %v2037, %v2044
    %v2060 = vcombine.low %v2051, %v2058
    %v2062 = vunpack.c.l.s4 1966171168
    %v2063 = vunpack.c.0.s8 %v2062
    %v2064 = vlaneseq
    %v2065 = vshrl.u32 %v2064, 7
    %v2066 = vsub.s32 %v2063, %v2065
    %v2067 = vrot.slane %v2059, %v2066
    %v2069 = vunpack.c.l.s4 1966171168
    %v2070 = vunpack.c.0.s8 %v2069
    %v2071 = vlaneseq
    %v2072 = vshrl.u32 %v2071, 7
    %v2073 = vsub.s32 %v2070, %v2072
    %v2074 = vrot.slane %v2060, %v2073
    %v2075 = vcombine.low %v2067, %v2074
    %v2076 = vcombine.low %v1351, %v1359
    %v2077 = vcombine.low %v1361, %v1344
    %v2078 = vcombine.low %v1386, %v1400
    %v2079 = vcombine.low %v1408, %v1410
    %v2081 = vunpack.c.l.s4 1966171168
    %v2082 = vunpack.c.0.s8 %v2081
    %v2083 = vlaneseq
    %v2084 = vshrl.u32 %v2083, 7
    %v2085 = vsub.s32 %v2082, %v2084
    %v2086 = vrot.slane %v2076, %v2085
    %v2088 = vunpack.c.l.s4 1966171168
    %v2089 = vunpack.c.0.s8 %v2088
    %v2090 = vlaneseq
    %v2091 = vshrl.u32 %v2090, 7
    %v2092 = vsub.s32 %v2089, %v2091
    %v2093 = vrot.slane %v2077, %v2092
    %v2095 = vunpack.c.l.s4 1966171168
    %v2096 = vunpack.c.0.s8 %v2095
    %v2097 = vlaneseq
    %v2098 = vshrl.u32 %v2097, 7
    %v2099 = vsub.s32 %v2096, %v2098
    %v2100 = vrot.slane %v2078, %v2099
    %v2102 = vunpack.c.l.s4 1966171168
    %v2103 = vunpack.c.0.s8 %v2102
    %v2104 = vlaneseq
    %v2105 = vshrl.u32 %v2104, 7
    %v2106 = vsub.s32 %v2103, %v2105
    %v2107 = vrot.slane %v2079, %v2106
    %v2108 = vcombine.low %v2086, %v2093
    %v2109 = vcombine.low %v2100, %v2107
    %v2111 = vunpack.c.l.s4 1966171168
    %v2112 = vunpack.c.0.s8 %v2111
    %v2113 = vlaneseq
    %v2114 = vshrl.u32 %v2113, 7
    %v2115 = vsub.s32 %v2112, %v2114
    %v2116 = vrot.slane %v2108, %v2115
    %v2118 = vunpack.c.l.s4 1966171168
    %v2119 = vunpack.c.0.s8 %v2118
    %v2120 = vlaneseq
    %v2121 = vshrl.u32 %v2120, 7
    %v2122 = vsub.s32 %v2119, %v2121
    %v2123 = vrot.slane %v2109, %v2122
    %v2124 = vcombine.low %v2116, %v2123
    %v2125 = vcombine.low %v1540, %v1554
    %v2126 = vcombine.low %v1556, %v1558
    %v2127 = vcombine.low %v1606, %v1589
    %v2128 = vcombine.low %v1603, %v1605
    %v2130 = vunpack.c.l.s4 1966171168
    %v2131 = vunpack.c.0.s8 %v2130
    %v2132 = vlaneseq
    %v2133 = vshrl.u32 %v2132, 7
    %v2134 = vsub.s32 %v2131, %v2133
    %v2135 = vrot.slane %v2125, %v2134
    %v2137 = vunpack.c.l.s4 1966171168
    %v2138 = vunpack.c.0.s8 %v2137
    %v2139 = vlaneseq
    %v2140 = vshrl.u32 %v2139, 7
    %v2141 = vsub.s32 %v2138, %v2140
    %v2142 = vrot.slane %v2126, %v2141
    %v2144 = vunpack.c.l.s4 1966171168
    %v2145 = vunpack.c.0.s8 %v2144
    %v2146 = vlaneseq
    %v2147 = vshrl.u32 %v2146, 7
    %v2148 = vsub.s32 %v2145, %v2147
    %v2149 = vrot.slane %v2127, %v2148
    %v2151 = vunpack.c.l.s4 1966171168
    %v2152 = vunpack.c.0.s8 %v2151
    %v2153 = vlaneseq
    %v2154 = vshrl.u32 %v2153, 7
    %v2155 = vsub.s32 %v2152, %v2154
    %v2156 = vrot.slane %v2128, %v2155
    %v2157 = vcombine.low %v2135, %v2142
    %v2158 = vcombine.low %v2149, %v2156
    %v2160 = vunpack.c.l.s4 1966171168
    %v2161 = vunpack.c.0.s8 %v2160
    %v2162 = vlaneseq
    %v2163 = vshrl.u32 %v2162, 7
    %v2164 = vsub.s32 %v2161, %v2163
    %v2165 = vrot.slane %v2157, %v2164
    %v2167 = vunpack.c.l.s4 1966171168
    %v2168 = vunpack.c.0.s8 %v2167
    %v2169 = vlaneseq
    %v2170 = vshrl.u32 %v2169, 7
    %v2171 = vsub.s32 %v2168, %v2170
    %v2172 = vrot.slane %v2158, %v2171
    %v2173 = vcombine.low %v2165, %v2172
    %v2174 = vcombine.low %v1653, %v1655
    %v2175 = vcombine.low %v1638, %v1652
    %v2176 = vcombine.low %v1694, %v1702
    %v2177 = vcombine.low %v1704, %v1687
    %v2179 = vunpack.c.l.s4 1966171168
    %v2180 = vunpack.c.0.s8 %v2179
    %v2181 = vlaneseq
    %v2182 = vshrl.u32 %v2181, 7
    %v2183 = vsub.s32 %v2180, %v2182
    %v2184 = vrot.slane %v2174, %v2183
    %v2186 = vunpack.c.l.s4 1966171168
    %v2187 = vunpack.c.0.s8 %v2186
    %v2188 = vlaneseq
    %v2189 = vshrl.u32 %v2188, 7
    %v2190 = vsub.s32 %v2187, %v2189
    %v2191 = vrot.slane %v2175, %v2190
    %v2193 = vunpack.c.l.s4 1966171168
    %v2194 = vunpack.c.0.s8 %v2193
    %v2195 = vlaneseq
    %v2196 = vshrl.u32 %v2195, 7
    %v2197 = vsub.s32 %v2194, %v2196
    %v2198 = vrot.slane %v2176, %v2197
    %v2200 = vunpack.c.l.s4 1966171168
    %v2201 = vunpack.c.0.s8 %v2200
    %v2202 = vlaneseq
    %v2203 = vshrl.u32 %v2202, 7
    %v2204 = vsub.s32 %v2201, %v2203
    %v2205 = vrot.slane %v2177, %v2204
    %v2206 = vcombine.low %v2184, %v2191
    %v2207 = vcombine.low %v2198, %v2205
    %v2209 = vunpack.c.l.s4 1966171168
    %v2210 = vunpack.c.0.s8 %v2209
    %v2211 = vlaneseq
    %v2212 = vshrl.u32 %v2211, 7
    %v2213 = vsub.s32 %v2210, %v2212
    %v2214 = vrot.slane %v2206, %v2213
    %v2216 = vunpack.c.l.s4 1966171168
    %v2217 = vunpack.c.0.s8 %v2216
    %v2218 = vlaneseq
    %v2219 = vshrl.u32 %v2218, 7
    %v2220 = vsub.s32 %v2217, %v2219
    %v2221 = vrot.slane %v2207, %v2220
    %v2222 = vcombine.low %v2214, %v2221
    %vm2223 = vcmask 48128
    %v2224 = vsel %vm2223, %v1879, 0
    %v2226 = vsel %vm2223, %v1928, 0
    %v2228 = vsel %vm2223, %v1977, 0
    %v2230 = vsel %vm2223, %v2026, 0
    %v2232 = vsel %vm2223, %v2075, 0
    %v2234 = vsel %vm2223, %v2124, 0
    %v2236 = vsel %vm2223, %v2173, 0
    %v2238 = vsel %vm2223, %v2222, 0
    %vm2240 = vcmask 1045504
    %v2242 = vsel %vm2240, %v1830, 0
    %2244 = vmatprep.subr.mxu0 0.0
    %2245 = vmatpush1.msra.mxu0 %v2242
    %2246 = vmatprep.subr.mxu0 0.0
    %2247 = vmatpush1.msra.mxu0 0.0
    %2248 = vmatprep.subr.mxu0 0.0
    %2249 = vmatpush1.msra.mxu0 0.0
    %2250 = vmatprep.subr.mxu0 0.0
    %2251 = vmatpush1.msra.mxu0 0.0
    %2252 = vmatprep.subr.mxu0 0.0
    %2253 = vmatpush1.msra.mxu0 0.0
    %2254 = vmatprep.subr.mxu0 0.0
    %2255 = vmatpush1.msra.mxu0 0.0
    %2256 = vmatprep.subr.mxu0 0.0
    %2257 = vmatpush1.msra.mxu0 0.0
    %2258 = vmatprep.subr.mxu0 0.0
    %2259 = vmatpush1.msra.mxu0 0.0
    %2260 = vmatprep.subr.mxu0 0.0
    %2261 = vmatpush1.msra.mxu0 0.0
    %2262 = vmatprep.subr.mxu0 0.0
    %2263 = vmatpush1.msra.mxu0 0.0
    %2264 = vmatprep.subr.mxu0 0.0
    %2265 = vmatpush1.msra.mxu0 0.0
    %2266 = vmatprep.subr.mxu0 0.0
    %2267 = vmatpush1.msra.mxu0 0.0
    %2268 = vmatprep.subr.mxu0 0.0
    %2269 = vmatpush1.msra.mxu0 0.0
    %2270 = vmatprep.subr.mxu0 0.0
    %2271 = vmatpush1.msra.mxu0 0.0
    %2272 = vmatprep.subr.mxu0 0.0
    %2273 = vmatpush1.msra.mxu0 0.0
    %2274 = vmatprep.subr.mxu0 0.0
    %2275 = vmatpush1.msra.mxu0 0.0
    %2276 = vmatprep.subr.mxu0 0.0
    %2277 = vmatpush1.msra.mxu0 0.0
    %2278 = vmatprep.subr.mxu0 0.0
    %2279 = vmatpush1.msra.mxu0 0.0
    %2280 = vmatprep.subr.mxu0 0.0
    %2281 = vmatpush1.msra.mxu0 0.0
    %2282 = vmatprep.subr.mxu0 0.0
    %2283 = vmatpush1.msra.mxu0 0.0
    %2284 = vmatprep.subr.mxu0 0.0
    %2285 = vmatpush1.msra.mxu0 0.0
    %2286 = vmatprep.subr.mxu0 0.0
    %2287 = vmatpush1.msra.mxu0 0.0
    %2288 = vmatprep.subr.mxu0 0.0
    %2289 = vmatpush1.msra.mxu0 0.0
    %2290 = vmatprep.subr.mxu0 0.0
    %2291 = vmatpush1.msra.mxu0 0.0
    %2292 = vmatprep.subr.mxu0 0.0
    %2293 = vmatpush1.msra.mxu0 0.0
    %2294 = vmatprep.subr.mxu0 0.0
    %2295 = vmatpush1.msra.mxu0 0.0
    %2296 = vmatprep.subr.mxu0 0.0
    %2297 = vmatpush1.msra.mxu0 0.0
    %2298 = vmatprep.subr.mxu0 0.0
    %2299 = vmatpush1.msra.mxu0 0.0
    %2300 = vmatprep.subr.mxu0 0.0
    %2301 = vmatpush1.msra.mxu0 0.0
    %2302 = vmatprep.subr.mxu0 0.0
    %2303 = vmatpush1.msra.mxu0 0.0
    %2304 = vmatprep.subr.mxu0 0.0
    %2305 = vmatpush1.msra.mxu0 0.0
    %2306 = vmatprep.subr.mxu0 0.0
    %2307 = vmatpush1.msra.mxu0 0.0
    %2308 = vmatprep.mubr.f32.mxu0 0.0
    %2309 = vmatmul.mubr.f32.gmra.mrb[0].mxu0 %v2224
    %v2310 = vpop.f32.mrb[0].mxu0
    %v2311 = vadd.f32 0.0, %v2310
    %v2312 = vpop.f32.mrb[0].mxu0
    %2313 = vmatprep.mubr.f32.mxu0 0.0
    %2314 = vmatmul.mubr.f32.gmra.mrb[0].mxu0 %v2226
    %v2315 = vpop.f32.mrb[0].mxu0
    %v2316 = vadd.f32 0.0, %v2315
    %v2317 = vpop.f32.mrb[0].mxu0
    %2318 = vmatprep.mubr.f32.mxu0 0.0
    %2319 = vmatmul.mubr.f32.gmra.mrb[0].mxu0 %v2228
    %v2320 = vpop.f32.mrb[0].mxu0
    %v2321 = vadd.f32 0.0, %v2320
    %v2322 = vpop.f32.mrb[0].mxu0
    %2323 = vmatprep.mubr.f32.mxu0 0.0
    %2324 = vmatmul.mubr.f32.gmra.mrb[0].mxu0 %v2230
    %v2325 = vpop.f32.mrb[0].mxu0
    %v2326 = vadd.f32 0.0, %v2325
    %v2327 = vpop.f32.mrb[0].mxu0
    %2328 = vmatprep.mubr.f32.mxu0 0.0
    %2329 = vmatmul.mubr.f32.gmra.mrb[0].mxu0 %v2232
    %v2330 = vpop.f32.mrb[0].mxu0
    %v2331 = vadd.f32 0.0, %v2330
    %v2332 = vpop.f32.mrb[0].mxu0
    %2333 = vmatprep.mubr.f32.mxu0 0.0
    %2334 = vmatmul.mubr.f32.gmra.mrb[0].mxu0 %v2234
    %v2335 = vpop.f32.mrb[0].mxu0
    %v2336 = vadd.f32 0.0, %v2335
    %v2337 = vpop.f32.mrb[0].mxu0
    %2338 = vmatprep.mubr.f32.mxu0 0.0
    %2339 = vmatmul.mubr.f32.gmra.mrb[0].mxu0 %v2236
    %v2340 = vpop.f32.mrb[0].mxu0
    %v2341 = vadd.f32 0.0, %v2340
    %v2342 = vpop.f32.mrb[0].mxu0
    %2343 = vmatprep.mubr.f32.mxu0 0.0
    %2344 = vmatmul.mubr.f32.gmra.mrb[0].mxu0 %v2238
    %v2345 = vpop.f32.mrb[0].mxu0
    %v2346 = vadd.f32 0.0, %v2345
    %v2347 = vpop.f32.mrb[0].mxu0
    %2348 = vdwg.mxu0
    %v2349 = vcombine.low %v651, %v665
    %v2350 = vcombine.low %v673, %v675
    %v2351 = vcombine.low %v676, %v700
    %v2352 = vcombine.low %v714, %v722
    %v2354 = vunpack.c.l.s4 1966171168
    %v2355 = vunpack.c.0.s8 %v2354
    %v2356 = vlaneseq
    %v2357 = vshrl.u32 %v2356, 7
    %v2358 = vsub.s32 %v2355, %v2357
    %v2359 = vrot.slane %v2349, %v2358
    %v2361 = vunpack.c.l.s4 1966171168
    %v2362 = vunpack.c.0.s8 %v2361
    %v2363 = vlaneseq
    %v2364 = vshrl.u32 %v2363, 7
    %v2365 = vsub.s32 %v2362, %v2364
    %v2366 = vrot.slane %v2350, %v2365
    %v2368 = vunpack.c.l.s4 1966171168
    %v2369 = vunpack.c.0.s8 %v2368
    %v2370 = vlaneseq
    %v2371 = vshrl.u32 %v2370, 7
    %v2372 = vsub.s32 %v2369, %v2371
    %v2373 = vrot.slane %v2351, %v2372
    %v2375 = vunpack.c.l.s4 1966171168
    %v2376 = vunpack.c.0.s8 %v2375
    %v2377 = vlaneseq
    %v2378 = vshrl.u32 %v2377, 7
    %v2379 = vsub.s32 %v2376, %v2378
    %v2380 = vrot.slane %v2352, %v2379
    %v2381 = vcombine.low %v2359, %v2366
    %v2382 = vcombine.low %v2373, %v2380
    %v2384 = vunpack.c.l.s4 1966171168
    %v2385 = vunpack.c.0.s8 %v2384
    %v2386 = vlaneseq
    %v2387 = vshrl.u32 %v2386, 7
    %v2388 = vsub.s32 %v2385, %v2387
    %v2389 = vrot.slane %v2381, %v2388
    %v2391 = vunpack.c.l.s4 1966171168
    %v2392 = vunpack.c.0.s8 %v2391
    %v2393 = vlaneseq
    %v2394 = vshrl.u32 %v2393, 7
    %v2395 = vsub.s32 %v2392, %v2394
    %v2396 = vrot.slane %v2382, %v2395
    %v2397 = vcombine.low %v2389, %v2396
    %v2398 = vcombine.low %v723, %v725
    %v2399 = vcombine.low %v749, %v763
    %v2400 = vcombine.low %v770, %v772
    %v2401 = vcombine.low %v774, %v798
    %v2403 = vunpack.c.l.s4 1966171168
    %v2404 = vunpack.c.0.s8 %v2403
    %v2405 = vlaneseq
    %v2406 = vshrl.u32 %v2405, 7
    %v2407 = vsub.s32 %v2404, %v2406
    %v2408 = vrot.slane %v2398, %v2407
    %v2410 = vunpack.c.l.s4 1966171168
    %v2411 = vunpack.c.0.s8 %v2410
    %v2412 = vlaneseq
    %v2413 = vshrl.u32 %v2412, 7
    %v2414 = vsub.s32 %v2411, %v2413
    %v2415 = vrot.slane %v2399, %v2414
    %v2417 = vunpack.c.l.s4 1966171168
    %v2418 = vunpack.c.0.s8 %v2417
    %v2419 = vlaneseq
    %v2420 = vshrl.u32 %v2419, 7
    %v2421 = vsub.s32 %v2418, %v2420
    %v2422 = vrot.slane %v2400, %v2421
    %v2424 = vunpack.c.l.s4 1966171168
    %v2425 = vunpack.c.0.s8 %v2424
    %v2426 = vlaneseq
    %v2427 = vshrl.u32 %v2426, 7
    %v2428 = vsub.s32 %v2425, %v2427
    %v2429 = vrot.slane %v2401, %v2428
    %v2430 = vcombine.low %v2408, %v2415
    %v2431 = vcombine.low %v2422, %v2429
    %v2433 = vunpack.c.l.s4 1966171168
    %v2434 = vunpack.c.0.s8 %v2433
    %v2435 = vlaneseq
    %v2436 = vshrl.u32 %v2435, 7
    %v2437 = vsub.s32 %v2434, %v2436
    %v2438 = vrot.slane %v2430, %v2437
    %v2440 = vunpack.c.l.s4 1966171168
    %v2441 = vunpack.c.0.s8 %v2440
    %v2442 = vlaneseq
    %v2443 = vshrl.u32 %v2442, 7
    %v2444 = vsub.s32 %v2441, %v2443
    %v2445 = vrot.slane %v2431, %v2444
    %v2446 = vcombine.low %v2438, %v2445
    %v2447 = vcombine.low %v959, %v967
    %v2448 = vcombine.low %v969, %v952
    %v2449 = vcombine.low %v994, %v1008
    %v2450 = vcombine.low %v1016, %v1018
    %v2452 = vunpack.c.l.s4 1966171168
    %v2453 = vunpack.c.0.s8 %v2452
    %v2454 = vlaneseq
    %v2455 = vshrl.u32 %v2454, 7
    %v2456 = vsub.s32 %v2453, %v2455
    %v2457 = vrot.slane %v2447, %v2456
    %v2459 = vunpack.c.l.s4 1966171168
    %v2460 = vunpack.c.0.s8 %v2459
    %v2461 = vlaneseq
    %v2462 = vshrl.u32 %v2461, 7
    %v2463 = vsub.s32 %v2460, %v2462
    %v2464 = vrot.slane %v2448, %v2463
    %v2466 = vunpack.c.l.s4 1966171168
    %v2467 = vunpack.c.0.s8 %v2466
    %v2468 = vlaneseq
    %v2469 = vshrl.u32 %v2468, 7
    %v2470 = vsub.s32 %v2467, %v2469
    %v2471 = vrot.slane %v2449, %v2470
    %v2473 = vunpack.c.l.s4 1966171168
    %v2474 = vunpack.c.0.s8 %v2473
    %v2475 = vlaneseq
    %v2476 = vshrl.u32 %v2475, 7
    %v2477 = vsub.s32 %v2474, %v2476
    %v2478 = vrot.slane %v2450, %v2477
    %v2479 = vcombine.low %v2457, %v2464
    %v2480 = vcombine.low %v2471, %v2478
    %v2482 = vunpack.c.l.s4 1966171168
    %v2483 = vunpack.c.0.s8 %v2482
    %v2484 = vlaneseq
    %v2485 = vshrl.u32 %v2484, 7
    %v2486 = vsub.s32 %v2483, %v2485
    %v2487 = vrot.slane %v2479, %v2486
    %v2489 = vunpack.c.l.s4 1966171168
    %v2490 = vunpack.c.0.s8 %v2489
    %v2491 = vlaneseq
    %v2492 = vshrl.u32 %v2491, 7
    %v2493 = vsub.s32 %v2490, %v2492
    %v2494 = vrot.slane %v2480, %v2493
    %v2495 = vcombine.low %v2487, %v2494
    %v2496 = vcombine.low %v1019, %v1043
    %v2497 = vcombine.low %v1057, %v1065
    %v2498 = vcombine.low %v1066, %v1068
    %v2499 = vcombine.low %v1092, %v1106
    %v2501 = vunpack.c.l.s4 1966171168
    %v2502 = vunpack.c.0.s8 %v2501
    %v2503 = vlaneseq
    %v2504 = vshrl.u32 %v2503, 7
    %v2505 = vsub.s32 %v2502, %v2504
    %v2506 = vrot.slane %v2496, %v2505
    %v2508 = vunpack.c.l.s4 1966171168
    %v2509 = vunpack.c.0.s8 %v2508
    %v2510 = vlaneseq
    %v2511 = vshrl.u32 %v2510, 7
    %v2512 = vsub.s32 %v2509, %v2511
    %v2513 = vrot.slane %v2497, %v2512
    %v2515 = vunpack.c.l.s4 1966171168
    %v2516 = vunpack.c.0.s8 %v2515
    %v2517 = vlaneseq
    %v2518 = vshrl.u32 %v2517, 7
    %v2519 = vsub.s32 %v2516, %v2518
    %v2520 = vrot.slane %v2498, %v2519
    %v2522 = vunpack.c.l.s4 1966171168
    %v2523 = vunpack.c.0.s8 %v2522
    %v2524 = vlaneseq
    %v2525 = vshrl.u32 %v2524, 7
    %v2526 = vsub.s32 %v2523, %v2525
    %v2527 = vrot.slane %v2499, %v2526
    %v2528 = vcombine.low %v2506, %v2513
    %v2529 = vcombine.low %v2520, %v2527
    %v2531 = vunpack.c.l.s4 1966171168
    %v2532 = vunpack.c.0.s8 %v2531
    %v2533 = vlaneseq
    %v2534 = vshrl.u32 %v2533, 7
    %v2535 = vsub.s32 %v2532, %v2534
    %v2536 = vrot.slane %v2528, %v2535
    %v2538 = vunpack.c.l.s4 1966171168
    %v2539 = vunpack.c.0.s8 %v2538
    %v2540 = vlaneseq
    %v2541 = vshrl.u32 %v2540, 7
    %v2542 = vsub.s32 %v2539, %v2541
    %v2543 = vrot.slane %v2529, %v2542
    %v2544 = vcombine.low %v2536, %v2543
    %v2545 = vcombine.low %v1261, %v1263
    %v2546 = vcombine.low %v1246, %v1260
    %v2547 = vcombine.low %v1302, %v1310
    %v2548 = vcombine.low %v1312, %v1295
    %v2550 = vunpack.c.l.s4 1966171168
    %v2551 = vunpack.c.0.s8 %v2550
    %v2552 = vlaneseq
    %v2553 = vshrl.u32 %v2552, 7
    %v2554 = vsub.s32 %v2551, %v2553
    %v2555 = vrot.slane %v2545, %v2554
    %v2557 = vunpack.c.l.s4 1966171168
    %v2558 = vunpack.c.0.s8 %v2557
    %v2559 = vlaneseq
    %v2560 = vshrl.u32 %v2559, 7
    %v2561 = vsub.s32 %v2558, %v2560
    %v2562 = vrot.slane %v2546, %v2561
    %v2564 = vunpack.c.l.s4 1966171168
    %v2565 = vunpack.c.0.s8 %v2564
    %v2566 = vlaneseq
    %v2567 = vshrl.u32 %v2566, 7
    %v2568 = vsub.s32 %v2565, %v2567
    %v2569 = vrot.slane %v2547, %v2568
    %v2571 = vunpack.c.l.s4 1966171168
    %v2572 = vunpack.c.0.s8 %v2571
    %v2573 = vlaneseq
    %v2574 = vshrl.u32 %v2573, 7
    %v2575 = vsub.s32 %v2572, %v2574
    %v2576 = vrot.slane %v2548, %v2575
    %v2577 = vcombine.low %v2555, %v2562
    %v2578 = vcombine.low %v2569, %v2576
    %v2580 = vunpack.c.l.s4 1966171168
    %v2581 = vunpack.c.0.s8 %v2580
    %v2582 = vlaneseq
    %v2583 = vshrl.u32 %v2582, 7
    %v2584 = vsub.s32 %v2581, %v2583
    %v2585 = vrot.slane %v2577, %v2584
    %v2587 = vunpack.c.l.s4 1966171168
    %v2588 = vunpack.c.0.s8 %v2587
    %v2589 = vlaneseq
    %v2590 = vshrl.u32 %v2589, 7
    %v2591 = vsub.s32 %v2588, %v2590
    %v2592 = vrot.slane %v2578, %v2591
    %v2593 = vcombine.low %v2585, %v2592
    %v2594 = vcombine.low %v1337, %v1351
    %v2595 = vcombine.low %v1359, %v1361
    %v2596 = vcombine.low %v1362, %v1386
    %v2597 = vcombine.low %v1400, %v1408
    %v2599 = vunpack.c.l.s4 1966171168
    %v2600 = vunpack.c.0.s8 %v2599
    %v2601 = vlaneseq
    %v2602 = vshrl.u32 %v2601, 7
    %v2603 = vsub.s32 %v2600, %v2602
    %v2604 = vrot.slane %v2594, %v2603
    %v2606 = vunpack.c.l.s4 1966171168
    %v2607 = vunpack.c.0.s8 %v2606
    %v2608 = vlaneseq
    %v2609 = vshrl.u32 %v2608, 7
    %v2610 = vsub.s32 %v2607, %v2609
    %v2611 = vrot.slane %v2595, %v2610
    %v2613 = vunpack.c.l.s4 1966171168
    %v2614 = vunpack.c.0.s8 %v2613
    %v2615 = vlaneseq
    %v2616 = vshrl.u32 %v2615, 7
    %v2617 = vsub.s32 %v2614, %v2616
    %v2618 = vrot.slane %v2596, %v2617
    %v2620 = vunpack.c.l.s4 1966171168
    %v2621 = vunpack.c.0.s8 %v2620
    %v2622 = vlaneseq
    %v2623 = vshrl.u32 %v2622, 7
    %v2624 = vsub.s32 %v2621, %v2623
    %v2625 = vrot.slane %v2597, %v2624
    %v2626 = vcombine.low %v2604, %v2611
    %v2627 = vcombine.low %v2618, %v2625
    %v2629 = vunpack.c.l.s4 1966171168
    %v2630 = vunpack.c.0.s8 %v2629
    %v2631 = vlaneseq
    %v2632 = vshrl.u32 %v2631, 7
    %v2633 = vsub.s32 %v2630, %v2632
    %v2634 = vrot.slane %v2626, %v2633
    %v2636 = vunpack.c.l.s4 1966171168
    %v2637 = vunpack.c.0.s8 %v2636
    %v2638 = vlaneseq
    %v2639 = vshrl.u32 %v2638, 7
    %v2640 = vsub.s32 %v2637, %v2639
    %v2641 = vrot.slane %v2627, %v2640
    %v2642 = vcombine.low %v2634, %v2641
    %v2643 = vcombine.low %v1557, %v1540
    %v2644 = vcombine.low %v1554, %v1556
    %v2645 = vcombine.low %v1604, %v1606
    %v2646 = vcombine.low %v1589, %v1603
    %v2648 = vunpack.c.l.s4 1966171168
    %v2649 = vunpack.c.0.s8 %v2648
    %v2650 = vlaneseq
    %v2651 = vshrl.u32 %v2650, 7
    %v2652 = vsub.s32 %v2649, %v2651
    %v2653 = vrot.slane %v2643, %v2652
    %v2655 = vunpack.c.l.s4 1966171168
    %v2656 = vunpack.c.0.s8 %v2655
    %v2657 = vlaneseq
    %v2658 = vshrl.u32 %v2657, 7
    %v2659 = vsub.s32 %v2656, %v2658
    %v2660 = vrot.slane %v2644, %v2659
    %v2662 = vunpack.c.l.s4 1966171168
    %v2663 = vunpack.c.0.s8 %v2662
    %v2664 = vlaneseq
    %v2665 = vshrl.u32 %v2664, 7
    %v2666 = vsub.s32 %v2663, %v2665
    %v2667 = vrot.slane %v2645, %v2666
    %v2669 = vunpack.c.l.s4 1966171168
    %v2670 = vunpack.c.0.s8 %v2669
    %v2671 = vlaneseq
    %v2672 = vshrl.u32 %v2671, 7
    %v2673 = vsub.s32 %v2670, %v2672
    %v2674 = vrot.slane %v2646, %v2673
    %v2675 = vcombine.low %v2653, %v2660
    %v2676 = vcombine.low %v2667, %v2674
    %v2678 = vunpack.c.l.s4 1966171168
    %v2679 = vunpack.c.0.s8 %v2678
    %v2680 = vlaneseq
    %v2681 = vshrl.u32 %v2680, 7
    %v2682 = vsub.s32 %v2679, %v2681
    %v2683 = vrot.slane %v2675, %v2682
    %v2685 = vunpack.c.l.s4 1966171168
    %v2686 = vunpack.c.0.s8 %v2685
    %v2687 = vlaneseq
    %v2688 = vshrl.u32 %v2687, 7
    %v2689 = vsub.s32 %v2686, %v2688
    %v2690 = vrot.slane %v2676, %v2689
    %v2691 = vcombine.low %v2683, %v2690
    %v2692 = vcombine.low %v1645, %v1653
    %v2693 = vcombine.low %v1655, %v1638
    %v2694 = vcombine.low %v1680, %v1694
    %v2695 = vcombine.low %v1702, %v1704
    %v2697 = vunpack.c.l.s4 1966171168
    %v2698 = vunpack.c.0.s8 %v2697
    %v2699 = vlaneseq
    %v2700 = vshrl.u32 %v2699, 7
    %v2701 = vsub.s32 %v2698, %v2700
    %v2702 = vrot.slane %v2692, %v2701
    %v2704 = vunpack.c.l.s4 1966171168
    %v2705 = vunpack.c.0.s8 %v2704
    %v2706 = vlaneseq
    %v2707 = vshrl.u32 %v2706, 7
    %v2708 = vsub.s32 %v2705, %v2707
    %v2709 = vrot.slane %v2693, %v2708
    %v2711 = vunpack.c.l.s4 1966171168
    %v2712 = vunpack.c.0.s8 %v2711
    %v2713 = vlaneseq
    %v2714 = vshrl.u32 %v2713, 7
    %v2715 = vsub.s32 %v2712, %v2714
    %v2716 = vrot.slane %v2694, %v2715
    %v2718 = vunpack.c.l.s4 1966171168
    %v2719 = vunpack.c.0.s8 %v2718
    %v2720 = vlaneseq
    %v2721 = vshrl.u32 %v2720, 7
    %v2722 = vsub.s32 %v2719, %v2721
    %v2723 = vrot.slane %v2695, %v2722
    %v2724 = vcombine.low %v2702, %v2709
    %v2725 = vcombine.low %v2716, %v2723
    %v2727 = vunpack.c.l.s4 1966171168
    %v2728 = vunpack.c.0.s8 %v2727
    %v2729 = vlaneseq
    %v2730 = vshrl.u32 %v2729, 7
    %v2731 = vsub.s32 %v2728, %v2730
    %v2732 = vrot.slane %v2724, %v2731
    %v2734 = vunpack.c.l.s4 1966171168
    %v2735 = vunpack.c.0.s8 %v2734
    %v2736 = vlaneseq
    %v2737 = vshrl.u32 %v2736, 7
    %v2738 = vsub.s32 %v2735, %v2737
    %v2739 = vrot.slane %v2725, %v2738
    %v2740 = vcombine.low %v2732, %v2739
    %v2741 = vsel %vm2223, %v2397, 0
    %v2743 = vsel %vm2223, %v2446, 0
    %v2745 = vsel %vm2223, %v2495, 0
    %v2747 = vsel %vm2223, %v2544, 0
    %v2749 = vsel %vm2223, %v2593, 0
    %v2751 = vsel %vm2223, %v2642, 0
    %v2753 = vsel %vm2223, %v2691, 0
    %v2755 = vsel %vm2223, %v2740, 0
    %v2758 = vsel %vm2240, %v1828, 0
    %2760 = vmatprep.subr.mxu0 0.0
    %2761 = vmatpush1.msra.mxu0 %v2758
    %2762 = vmatprep.subr.mxu0 0.0
    %2763 = vmatpush1.msra.mxu0 0.0
    %2764 = vmatprep.subr.mxu0 0.0
    %2765 = vmatpush1.msra.mxu0 0.0
    %2766 = vmatprep.subr.mxu0 0.0
    %2767 = vmatpush1.msra.mxu0 0.0
    %2768 = vmatprep.subr.mxu0 0.0
    %2769 = vmatpush1.msra.mxu0 0.0
    %2770 = vmatprep.subr.mxu0 0.0
    %2771 = vmatpush1.msra.mxu0 0.0
    %2772 = vmatprep.subr.mxu0 0.0
    %2773 = vmatpush1.msra.mxu0 0.0
    %2774 = vmatprep.subr.mxu0 0.0
    %2775 = vmatpush1.msra.mxu0 0.0
    %2776 = vmatprep.subr.mxu0 0.0
    %2777 = vmatpush1.msra.mxu0 0.0
    %2778 = vmatprep.subr.mxu0 0.0
    %2779 = vmatpush1.msra.mxu0 0.0
    %2780 = vmatprep.subr.mxu0 0.0
    %2781 = vmatpush1.msra.mxu0 0.0
    %2782 = vmatprep.subr.mxu0 0.0
    %2783 = vmatpush1.msra.mxu0 0.0
    %2784 = vmatprep.subr.mxu0 0.0
    %2785 = vmatpush1.msra.mxu0 0.0
    %2786 = vmatprep.subr.mxu0 0.0
    %2787 = vmatpush1.msra.mxu0 0.0
    %2788 = vmatprep.subr.mxu0 0.0
    %2789 = vmatpush1.msra.mxu0 0.0
    %2790 = vmatprep.subr.mxu0 0.0
    %2791 = vmatpush1.msra.mxu0 0.0
    %2792 = vmatprep.subr.mxu0 0.0
    %2793 = vmatpush1.msra.mxu0 0.0
    %2794 = vmatprep.subr.mxu0 0.0
    %2795 = vmatpush1.msra.mxu0 0.0
    %2796 = vmatprep.subr.mxu0 0.0
    %2797 = vmatpush1.msra.mxu0 0.0
    %2798 = vmatprep.subr.mxu0 0.0
    %2799 = vmatpush1.msra.mxu0 0.0
    %2800 = vmatprep.subr.mxu0 0.0
    %2801 = vmatpush1.msra.mxu0 0.0
    %2802 = vmatprep.subr.mxu0 0.0
    %2803 = vmatpush1.msra.mxu0 0.0
    %2804 = vmatprep.subr.mxu0 0.0
    %2805 = vmatpush1.msra.mxu0 0.0
    %2806 = vmatprep.subr.mxu0 0.0
    %2807 = vmatpush1.msra.mxu0 0.0
    %2808 = vmatprep.subr.mxu0 0.0
    %2809 = vmatpush1.msra.mxu0 0.0
    %2810 = vmatprep.subr.mxu0 0.0
    %2811 = vmatpush1.msra.mxu0 0.0
    %2812 = vmatprep.subr.mxu0 0.0
    %2813 = vmatpush1.msra.mxu0 0.0
    %2814 = vmatprep.subr.mxu0 0.0
    %2815 = vmatpush1.msra.mxu0 0.0
    %2816 = vmatprep.subr.mxu0 0.0
    %2817 = vmatpush1.msra.mxu0 0.0
    %2818 = vmatprep.subr.mxu0 0.0
    %2819 = vmatpush1.msra.mxu0 0.0
    %2820 = vmatprep.subr.mxu0 0.0
    %2821 = vmatpush1.msra.mxu0 0.0
    %2822 = vmatprep.subr.mxu0 0.0
    %2823 = vmatpush1.msra.mxu0 0.0
    %2824 = vmatprep.mubr.f32.mxu0 0.0
    %2825 = vmatmul.mubr.f32.gmra.mrb[0].mxu0 %v2741
    %v2826 = vpop.f32.mrb[0].mxu0
    %v2827 = vadd.f32 %v2311, %v2826
    %v2828 = vpop.f32.mrb[0].mxu0
    %2829 = vmatprep.mubr.f32.mxu0 0.0
    %2830 = vmatmul.mubr.f32.gmra.mrb[0].mxu0 %v2743
    %v2831 = vpop.f32.mrb[0].mxu0
    %v2832 = vadd.f32 %v2316, %v2831
    %v2833 = vpop.f32.mrb[0].mxu0
    %2834 = vmatprep.mubr.f32.mxu0 0.0
    %2835 = vmatmul.mubr.f32.gmra.mrb[0].mxu0 %v2745
    %v2836 = vpop.f32.mrb[0].mxu0
    %v2837 = vadd.f32 %v2321, %v2836
    %v2838 = vpop.f32.mrb[0].mxu0
    %2839 = vmatprep.mubr.f32.mxu0 0.0
    %2840 = vmatmul.mubr.f32.gmra.mrb[0].mxu0 %v2747
    %v2841 = vpop.f32.mrb[0].mxu0
    %v2842 = vadd.f32 %v2326, %v2841
    %v2843 = vpop.f32.mrb[0].mxu0
    %2844 = vmatprep.mubr.f32.mxu0 0.0
    %2845 = vmatmul.mubr.f32.gmra.mrb[0].mxu0 %v2749
    %v2846 = vpop.f32.mrb[0].mxu0
    %v2847 = vadd.f32 %v2331, %v2846
    %v2848 = vpop.f32.mrb[0].mxu0
    %2849 = vmatprep.mubr.f32.mxu0 0.0
    %2850 = vmatmul.mubr.f32.gmra.mrb[0].mxu0 %v2751
    %v2851 = vpop.f32.mrb[0].mxu0
    %v2852 = vadd.f32 %v2336, %v2851
    %v2853 = vpop.f32.mrb[0].mxu0
    %2854 = vmatprep.mubr.f32.mxu0 0.0
    %2855 = vmatmul.mubr.f32.gmra.mrb[0].mxu0 %v2753
    %v2856 = vpop.f32.mrb[0].mxu0
    %v2857 = vadd.f32 %v2341, %v2856
    %v2858 = vpop.f32.mrb[0].mxu0
    %2859 = vmatprep.mubr.f32.mxu0 0.0
    %2860 = vmatmul.mubr.f32.gmra.mrb[0].mxu0 %v2755
    %v2861 = vpop.f32.mrb[0].mxu0
    %v2862 = vadd.f32 %v2346, %v2861
    %v2863 = vpop.f32.mrb[0].mxu0
    %2864 = vdwg.mxu0
    %s2865 = scalar_lea.vmem %s4, 16
    %v2866 = vld [vmem:[%s2865] sm:$0x3f]
    %v2867 = vcombine.low %v658, %v672
    %v2868 = vcombine.low %v724, %v707
    %v2870 = vunpack.c.l.s4 1966171168
    %v2871 = vunpack.c.0.s8 %v2870
    %v2872 = vlaneseq
    %v2873 = vshrl.u32 %v2872, 7
    %v2874 = vsub.s32 %v2871, %v2873
    %v2875 = vrot.slane %v2867, %v2874
    %v2877 = vunpack.c.l.s4 1966171168
    %v2878 = vunpack.c.0.s8 %v2877
    %v2879 = vlaneseq
    %v2880 = vshrl.u32 %v2879, 7
    %v2881 = vsub.s32 %v2878, %v2880
    %v2882 = vrot.slane %v2868, %v2881
    %v2883 = vcombine.low %v2366, %v2875
    %v2884 = vcombine.low %v2380, %v2882
    %v2886 = vunpack.c.l.s4 1966171168
    %v2887 = vunpack.c.0.s8 %v2886
    %v2888 = vlaneseq
    %v2889 = vshrl.u32 %v2888, 7
    %v2890 = vsub.s32 %v2887, %v2889
    %v2891 = vrot.slane %v2883, %v2890
    %v2893 = vunpack.c.l.s4 1966171168
    %v2894 = vunpack.c.0.s8 %v2893
    %v2895 = vlaneseq
    %v2896 = vshrl.u32 %v2895, 7
    %v2897 = vsub.s32 %v2894, %v2896
    %v2898 = vrot.slane %v2884, %v2897
    %v2899 = vcombine.low %v2891, %v2898
    %v2900 = vcombine.low %v771, %v773
    %v2901 = vcombine.low %v812, %v820
    %v2903 = vunpack.c.l.s4 1966171168
    %v2904 = vunpack.c.0.s8 %v2903
    %v2905 = vlaneseq
    %v2906 = vshrl.u32 %v2905, 7
    %v2907 = vsub.s32 %v2904, %v2906
    %v2908 = vrot.slane %v2900, %v2907
    %v2910 = vunpack.c.l.s4 1966171168
    %v2911 = vunpack.c.0.s8 %v2910
    %v2912 = vlaneseq
    %v2913 = vshrl.u32 %v2912, 7
    %v2914 = vsub.s32 %v2911, %v2913
    %v2915 = vrot.slane %v2901, %v2914
    %v2916 = vcombine.low %v2415, %v2908
    %v2917 = vcombine.low %v2429, %v2915
    %v2919 = vunpack.c.l.s4 1966171168
    %v2920 = vunpack.c.0.s8 %v2919
    %v2921 = vlaneseq
    %v2922 = vshrl.u32 %v2921, 7
    %v2923 = vsub.s32 %v2920, %v2922
    %v2924 = vrot.slane %v2916, %v2923
    %v2926 = vunpack.c.l.s4 1966171168
    %v2927 = vunpack.c.0.s8 %v2926
    %v2928 = vlaneseq
    %v2929 = vshrl.u32 %v2928, 7
    %v2930 = vsub.s32 %v2927, %v2929
    %v2931 = vrot.slane %v2917, %v2930
    %v2932 = vcombine.low %v2924, %v2931
    %v2933 = vcombine.low %v966, %v968
    %v2934 = vcombine.low %v1001, %v1015
    %v2936 = vunpack.c.l.s4 1966171168
    %v2937 = vunpack.c.0.s8 %v2936
    %v2938 = vlaneseq
    %v2939 = vshrl.u32 %v2938, 7
    %v2940 = vsub.s32 %v2937, %v2939
    %v2941 = vrot.slane %v2933, %v2940
    %v2943 = vunpack.c.l.s4 1966171168
    %v2944 = vunpack.c.0.s8 %v2943
    %v2945 = vlaneseq
    %v2946 = vshrl.u32 %v2945, 7
    %v2947 = vsub.s32 %v2944, %v2946
    %v2948 = vrot.slane %v2934, %v2947
    %v2949 = vcombine.low %v2464, %v2941
    %v2950 = vcombine.low %v2478, %v2948
    %v2952 = vunpack.c.l.s4 1966171168
    %v2953 = vunpack.c.0.s8 %v2952
    %v2954 = vlaneseq
    %v2955 = vshrl.u32 %v2954, 7
    %v2956 = vsub.s32 %v2953, %v2955
    %v2957 = vrot.slane %v2949, %v2956
    %v2959 = vunpack.c.l.s4 1966171168
    %v2960 = vunpack.c.0.s8 %v2959
    %v2961 = vlaneseq
    %v2962 = vshrl.u32 %v2961, 7
    %v2963 = vsub.s32 %v2960, %v2962
    %v2964 = vrot.slane %v2950, %v2963
    %v2965 = vcombine.low %v2957, %v2964
    %v2966 = vcombine.low %v1067, %v1050
    %v2967 = vcombine.low %v1114, %v1116
    %v2969 = vunpack.c.l.s4 1966171168
    %v2970 = vunpack.c.0.s8 %v2969
    %v2971 = vlaneseq
    %v2972 = vshrl.u32 %v2971, 7
    %v2973 = vsub.s32 %v2970, %v2972
    %v2974 = vrot.slane %v2966, %v2973
    %v2976 = vunpack.c.l.s4 1966171168
    %v2977 = vunpack.c.0.s8 %v2976
    %v2978 = vlaneseq
    %v2979 = vshrl.u32 %v2978, 7
    %v2980 = vsub.s32 %v2977, %v2979
    %v2981 = vrot.slane %v2967, %v2980
    %v2982 = vcombine.low %v2513, %v2974
    %v2983 = vcombine.low %v2527, %v2981
    %v2985 = vunpack.c.l.s4 1966171168
    %v2986 = vunpack.c.0.s8 %v2985
    %v2987 = vlaneseq
    %v2988 = vshrl.u32 %v2987, 7
    %v2989 = vsub.s32 %v2986, %v2988
    %v2990 = vrot.slane %v2982, %v2989
    %v2992 = vunpack.c.l.s4 1966171168
    %v2993 = vunpack.c.0.s8 %v2992
    %v2994 = vlaneseq
    %v2995 = vshrl.u32 %v2994, 7
    %v2996 = vsub.s32 %v2993, %v2995
    %v2997 = vrot.slane %v2983, %v2996
    %v2998 = vcombine.low %v2990, %v2997
    %v2999 = vcombine.low %v1262, %v1264
    %v3000 = vcombine.low %v1309, %v1311
    %v3002 = vunpack.c.l.s4 1966171168
    %v3003 = vunpack.c.0.s8 %v3002
    %v3004 = vlaneseq
    %v3005 = vshrl.u32 %v3004, 7
    %v3006 = vsub.s32 %v3003, %v3005
    %v3007 = vrot.slane %v2999, %v3006
    %v3009 = vunpack.c.l.s4 1966171168
    %v3010 = vunpack.c.0.s8 %v3009
    %v3011 = vlaneseq
    %v3012 = vshrl.u32 %v3011, 7
    %v3013 = vsub.s32 %v3010, %v3012
    %v3014 = vrot.slane %v3000, %v3013
    %v3015 = vcombine.low %v2562, %v3007
    %v3016 = vcombine.low %v2576, %v3014
    %v3018 = vunpack.c.l.s4 1966171168
    %v3019 = vunpack.c.0.s8 %v3018
    %v3020 = vlaneseq
    %v3021 = vshrl.u32 %v3020, 7
    %v3022 = vsub.s32 %v3019, %v3021
    %v3023 = vrot.slane %v3015, %v3022
    %v3025 = vunpack.c.l.s4 1966171168
    %v3026 = vunpack.c.0.s8 %v3025
    %v3027 = vlaneseq
    %v3028 = vshrl.u32 %v3027, 7
    %v3029 = vsub.s32 %v3026, %v3028
    %v3030 = vrot.slane %v3016, %v3029
    %v3031 = vcombine.low %v3023, %v3030
    %v3032 = vcombine.low %v1344, %v1358
    %v3033 = vcombine.low %v1410, %v1393
    %v3035 = vunpack.c.l.s4 1966171168
    %v3036 = vunpack.c.0.s8 %v3035
    %v3037 = vlaneseq
    %v3038 = vshrl.u32 %v3037, 7
    %v3039 = vsub.s32 %v3036, %v3038
    %v3040 = vrot.slane %v3032, %v3039
    %v3042 = vunpack.c.l.s4 1966171168
    %v3043 = vunpack.c.0.s8 %v3042
    %v3044 = vlaneseq
    %v3045 = vshrl.u32 %v3044, 7
    %v3046 = vsub.s32 %v3043, %v3045
    %v3047 = vrot.slane %v3033, %v3046
    %v3048 = vcombine.low %v2611, %v3040
    %v3049 = vcombine.low %v2625, %v3047
    %v3051 = vunpack.c.l.s4 1966171168
    %v3052 = vunpack.c.0.s8 %v3051
    %v3053 = vlaneseq
    %v3054 = vshrl.u32 %v3053, 7
    %v3055 = vsub.s32 %v3052, %v3054
    %v3056 = vrot.slane %v3048, %v3055
    %v3058 = vunpack.c.l.s4 1966171168
    %v3059 = vunpack.c.0.s8 %v3058
    %v3060 = vlaneseq
    %v3061 = vshrl.u32 %v3060, 7
    %v3062 = vsub.s32 %v3059, %v3061
    %v3063 = vrot.slane %v3049, %v3062
    %v3064 = vcombine.low %v3056, %v3063
    %v3065 = vcombine.low %v1558, %v1582
    %v3066 = vcombine.low %v1605, %v1607
    %v3068 = vunpack.c.l.s4 1966171168
    %v3069 = vunpack.c.0.s8 %v3068
    %v3070 = vlaneseq
    %v3071 = vshrl.u32 %v3070, 7
    %v3072 = vsub.s32 %v3069, %v3071
    %v3073 = vrot.slane %v3065, %v3072
    %v3075 = vunpack.c.l.s4 1966171168
    %v3076 = vunpack.c.0.s8 %v3075
    %v3077 = vlaneseq
    %v3078 = vshrl.u32 %v3077, 7
    %v3079 = vsub.s32 %v3076, %v3078
    %v3080 = vrot.slane %v3066, %v3079
    %v3081 = vcombine.low %v2660, %v3073
    %v3082 = vcombine.low %v2674, %v3080
    %v3084 = vunpack.c.l.s4 1966171168
    %v3085 = vunpack.c.0.s8 %v3084
    %v3086 = vlaneseq
    %v3087 = vshrl.u32 %v3086, 7
    %v3088 = vsub.s32 %v3085, %v3087
    %v3089 = vrot.slane %v3081, %v3088
    %v3091 = vunpack.c.l.s4 1966171168
    %v3092 = vunpack.c.0.s8 %v3091
    %v3093 = vlaneseq
    %v3094 = vshrl.u32 %v3093, 7
    %v3095 = vsub.s32 %v3092, %v3094
    %v3096 = vrot.slane %v3082, %v3095
    %v3097 = vcombine.low %v3089, %v3096
    %v3098 = vcombine.low %v1652, %v1654
    %v3099 = vcombine.low %v1687, %v1701
    %v3101 = vunpack.c.l.s4 1966171168
    %v3102 = vunpack.c.0.s8 %v3101
    %v3103 = vlaneseq
    %v3104 = vshrl.u32 %v3103, 7
    %v3105 = vsub.s32 %v3102, %v3104
    %v3106 = vrot.slane %v3098, %v3105
    %v3108 = vunpack.c.l.s4 1966171168
    %v3109 = vunpack.c.0.s8 %v3108
    %v3110 = vlaneseq
    %v3111 = vshrl.u32 %v3110, 7
    %v3112 = vsub.s32 %v3109, %v3111
    %v3113 = vrot.slane %v3099, %v3112
    %v3114 = vcombine.low %v2709, %v3106
    %v3115 = vcombine.low %v2723, %v3113
    %v3117 = vunpack.c.l.s4 1966171168
    %v3118 = vunpack.c.0.s8 %v3117
    %v3119 = vlaneseq
    %v3120 = vshrl.u32 %v3119, 7
    %v3121 = vsub.s32 %v3118, %v3120
    %v3122 = vrot.slane %v3114, %v3121
    %v3124 = vunpack.c.l.s4 1966171168
    %v3125 = vunpack.c.0.s8 %v3124
    %v3126 = vlaneseq
    %v3127 = vshrl.u32 %v3126, 7
    %v3128 = vsub.s32 %v3125, %v3127
    %v3129 = vrot.slane %v3115, %v3128
    %v3130 = vcombine.low %v3122, %v3129
    %v3131 = vsel %vm2223, %v2899, 0
    %v3133 = vsel %vm2223, %v2932, 0
    %v3135 = vsel %vm2223, %v2965, 0
    %v3137 = vsel %vm2223, %v2998, 0
    %v3139 = vsel %vm2223, %v3031, 0
    %v3141 = vsel %vm2223, %v3064, 0
    %v3143 = vsel %vm2223, %v3097, 0
    %v3145 = vsel %vm2223, %v3130, 0
    %v3148 = vsel %vm2240, %v2866, 0
    %3150 = vmatprep.subr.mxu0 0.0
    %3151 = vmatpush1.msra.mxu0 %v3148
    %3152 = vmatprep.subr.mxu0 0.0
    %3153 = vmatpush1.msra.mxu0 0.0
    %3154 = vmatprep.subr.mxu0 0.0
    %3155 = vmatpush1.msra.mxu0 0.0
    %3156 = vmatprep.subr.mxu0 0.0
    %3157 = vmatpush1.msra.mxu0 0.0
    %3158 = vmatprep.subr.mxu0 0.0
    %3159 = vmatpush1.msra.mxu0 0.0
    %3160 = vmatprep.subr.mxu0 0.0
    %3161 = vmatpush1.msra.mxu0 0.0
    %3162 = vmatprep.subr.mxu0 0.0
    %3163 = vmatpush1.msra.mxu0 0.0
    %3164 = vmatprep.subr.mxu0 0.0
    %3165 = vmatpush1.msra.mxu0 0.0
    %3166 = vmatprep.subr.mxu0 0.0
    %3167 = vmatpush1.msra.mxu0 0.0
    %3168 = vmatprep.subr.mxu0 0.0
    %3169 = vmatpush1.msra.mxu0 0.0
    %3170 = vmatprep.subr.mxu0 0.0
    %3171 = vmatpush1.msra.mxu0 0.0
    %3172 = vmatprep.subr.mxu0 0.0
    %3173 = vmatpush1.msra.mxu0 0.0
    %3174 = vmatprep.subr.mxu0 0.0
    %3175 = vmatpush1.msra.mxu0 0.0
    %3176 = vmatprep.subr.mxu0 0.0
    %3177 = vmatpush1.msra.mxu0 0.0
    %3178 = vmatprep.subr.mxu0 0.0
    %3179 = vmatpush1.msra.mxu0 0.0
    %3180 = vmatprep.subr.mxu0 0.0
    %3181 = vmatpush1.msra.mxu0 0.0
    %3182 = vmatprep.subr.mxu0 0.0
    %3183 = vmatpush1.msra.mxu0 0.0
    %3184 = vmatprep.subr.mxu0 0.0
    %3185 = vmatpush1.msra.mxu0 0.0
    %3186 = vmatprep.subr.mxu0 0.0
    %3187 = vmatpush1.msra.mxu0 0.0
    %3188 = vmatprep.subr.mxu0 0.0
    %3189 = vmatpush1.msra.mxu0 0.0
    %3190 = vmatprep.subr.mxu0 0.0
    %3191 = vmatpush1.msra.mxu0 0.0
    %3192 = vmatprep.subr.mxu0 0.0
    %3193 = vmatpush1.msra.mxu0 0.0
    %3194 = vmatprep.subr.mxu0 0.0
    %3195 = vmatpush1.msra.mxu0 0.0
    %3196 = vmatprep.subr.mxu0 0.0
    %3197 = vmatpush1.msra.mxu0 0.0
    %3198 = vmatprep.subr.mxu0 0.0
    %3199 = vmatpush1.msra.mxu0 0.0
    %3200 = vmatprep.subr.mxu0 0.0
    %3201 = vmatpush1.msra.mxu0 0.0
    %3202 = vmatprep.subr.mxu0 0.0
    %3203 = vmatpush1.msra.mxu0 0.0
    %3204 = vmatprep.subr.mxu0 0.0
    %3205 = vmatpush1.msra.mxu0 0.0
    %3206 = vmatprep.subr.mxu0 0.0
    %3207 = vmatpush1.msra.mxu0 0.0
    %3208 = vmatprep.subr.mxu0 0.0
    %3209 = vmatpush1.msra.mxu0 0.0
    %3210 = vmatprep.subr.mxu0 0.0
    %3211 = vmatpush1.msra.mxu0 0.0
    %3212 = vmatprep.subr.mxu0 0.0
    %3213 = vmatpush1.msra.mxu0 0.0
    %3214 = vmatprep.mubr.f32.mxu0 0.0
    %3215 = vmatmul.mubr.f32.gmra.mrb[0].mxu0 %v3131
    %v3216 = vpop.f32.mrb[0].mxu0
    %v3217 = vadd.f32 0.0, %v3216
    %v3218 = vpop.f32.mrb[0].mxu0
    %3219 = vmatprep.mubr.f32.mxu0 0.0
    %3220 = vmatmul.mubr.f32.gmra.mrb[0].mxu0 %v3133
    %v3221 = vpop.f32.mrb[0].mxu0
    %v3222 = vadd.f32 0.0, %v3221
    %v3223 = vpop.f32.mrb[0].mxu0
    %3224 = vmatprep.mubr.f32.mxu0 0.0
    %3225 = vmatmul.mubr.f32.gmra.mrb[0].mxu0 %v3135
    %v3226 = vpop.f32.mrb[0].mxu0
    %v3227 = vadd.f32 0.0, %v3226
    %v3228 = vpop.f32.mrb[0].mxu0
    %3229 = vmatprep.mubr.f32.mxu0 0.0
    %3230 = vmatmul.mubr.f32.gmra.mrb[0].mxu0 %v3137
    %v3231 = vpop.f32.mrb[0].mxu0
    %v3232 = vadd.f32 0.0, %v3231
    %v3233 = vpop.f32.mrb[0].mxu0
    %3234 = vmatprep.mubr.f32.mxu0 0.0
    %3235 = vmatmul.mubr.f32.gmra.mrb[0].mxu0 %v3139
    %v3236 = vpop.f32.mrb[0].mxu0
    %v3237 = vadd.f32 0.0, %v3236
    %v3238 = vpop.f32.mrb[0].mxu0
    %3239 = vmatprep.mubr.f32.mxu0 0.0
    %3240 = vmatmul.mubr.f32.gmra.mrb[0].mxu0 %v3141
    %v3241 = vpop.f32.mrb[0].mxu0
    %v3242 = vadd.f32 0.0, %v3241
    %v3243 = vpop.f32.mrb[0].mxu0
    %3244 = vmatprep.mubr.f32.mxu0 0.0
    %3245 = vmatmul.mubr.f32.gmra.mrb[0].mxu0 %v3143
    %v3246 = vpop.f32.mrb[0].mxu0
    %v3247 = vadd.f32 0.0, %v3246
    %v3248 = vpop.f32.mrb[0].mxu0
    %3249 = vmatprep.mubr.f32.mxu0 0.0
    %3250 = vmatmul.mubr.f32.gmra.mrb[0].mxu0 %v3145
    %v3251 = vpop.f32.mrb[0].mxu0
    %v3252 = vadd.f32 0.0, %v3251
    %v3253 = vpop.f32.mrb[0].mxu0
    %3254 = vdwg.mxu0
    %v3255 = vadd.f32 %v2827, %v3217
    %v3256 = vadd.f32 %v2832, %v3222
    %v3257 = vadd.f32 %v2837, %v3227
    %v3258 = vadd.f32 %v2842, %v3232
    %v3259 = vadd.f32 %v2847, %v3237
    %v3260 = vadd.f32 %v2852, %v3242
    %v3261 = vadd.f32 %v2857, %v3247
    %v3262 = vadd.f32 %v2862, %v3252
    %s3263 = scalar_lea.vmem %s4, 24
    %v3264 = vld [vmem:[%s3263] sm:$0x3f]
    %v3265 = vcombine.low %v672, %v674
    %v3266 = vcombine.low %v707, %v721
    %v3268 = vunpack.c.l.s4 1966171168
    %v3269 = vunpack.c.0.s8 %v3268
    %v3270 = vlaneseq
    %v3271 = vshrl.u32 %v3270, 7
    %v3272 = vsub.s32 %v3269, %v3271
    %v3273 = vrot.slane %v3265, %v3272
    %v3275 = vunpack.c.l.s4 1966171168
    %v3276 = vunpack.c.0.s8 %v3275
    %v3277 = vlaneseq
    %v3278 = vshrl.u32 %v3277, 7
    %v3279 = vsub.s32 %v3276, %v3278
    %v3280 = vrot.slane %v3266, %v3279
    %v3281 = vcombine.low %v1848, %v3273
    %v3282 = vcombine.low %v1862, %v3280
    %v3284 = vunpack.c.l.s4 1966171168
    %v3285 = vunpack.c.0.s8 %v3284
    %v3286 = vlaneseq
    %v3287 = vshrl.u32 %v3286, 7
    %v3288 = vsub.s32 %v3285, %v3287
    %v3289 = vrot.slane %v3281, %v3288
    %v3291 = vunpack.c.l.s4 1966171168
    %v3292 = vunpack.c.0.s8 %v3291
    %v3293 = vlaneseq
    %v3294 = vshrl.u32 %v3293, 7
    %v3295 = vsub.s32 %v3292, %v3294
    %v3296 = vrot.slane %v3282, %v3295
    %v3297 = vcombine.low %v3289, %v3296
    %v3298 = vcombine.low %v773, %v756
    %v3299 = vcombine.low %v820, %v822
    %v3301 = vunpack.c.l.s4 1966171168
    %v3302 = vunpack.c.0.s8 %v3301
    %v3303 = vlaneseq
    %v3304 = vshrl.u32 %v3303, 7
    %v3305 = vsub.s32 %v3302, %v3304
    %v3306 = vrot.slane %v3298, %v3305
    %v3308 = vunpack.c.l.s4 1966171168
    %v3309 = vunpack.c.0.s8 %v3308
    %v3310 = vlaneseq
    %v3311 = vshrl.u32 %v3310, 7
    %v3312 = vsub.s32 %v3309, %v3311
    %v3313 = vrot.slane %v3299, %v3312
    %v3314 = vcombine.low %v1897, %v3306
    %v3315 = vcombine.low %v1911, %v3313
    %v3317 = vunpack.c.l.s4 1966171168
    %v3318 = vunpack.c.0.s8 %v3317
    %v3319 = vlaneseq
    %v3320 = vshrl.u32 %v3319, 7
    %v3321 = vsub.s32 %v3318, %v3320
    %v3322 = vrot.slane %v3314, %v3321
    %v3324 = vunpack.c.l.s4 1966171168
    %v3325 = vunpack.c.0.s8 %v3324
    %v3326 = vlaneseq
    %v3327 = vshrl.u32 %v3326, 7
    %v3328 = vsub.s32 %v3325, %v3327
    %v3329 = vrot.slane %v3315, %v3328
    %v3330 = vcombine.low %v3322, %v3329
    %v3331 = vcombine.low %v968, %v970
    %v3332 = vcombine.low %v1015, %v1017
    %v3334 = vunpack.c.l.s4 1966171168
    %v3335 = vunpack.c.0.s8 %v3334
    %v3336 = vlaneseq
    %v3337 = vshrl.u32 %v3336, 7
    %v3338 = vsub.s32 %v3335, %v3337
    %v3339 = vrot.slane %v3331, %v3338
    %v3341 = vunpack.c.l.s4 1966171168
    %v3342 = vunpack.c.0.s8 %v3341
    %v3343 = vlaneseq
    %v3344 = vshrl.u32 %v3343, 7
    %v3345 = vsub.s32 %v3342, %v3344
    %v3346 = vrot.slane %v3332, %v3345
    %v3347 = vcombine.low %v1946, %v3339
    %v3348 = vcombine.low %v1960, %v3346
    %v3350 = vunpack.c.l.s4 1966171168
    %v3351 = vunpack.c.0.s8 %v3350
    %v3352 = vlaneseq
    %v3353 = vshrl.u32 %v3352, 7
    %v3354 = vsub.s32 %v3351, %v3353
    %v3355 = vrot.slane %v3347, %v3354
    %v3357 = vunpack.c.l.s4 1966171168
    %v3358 = vunpack.c.0.s8 %v3357
    %v3359 = vlaneseq
    %v3360 = vshrl.u32 %v3359, 7
    %v3361 = vsub.s32 %v3358, %v3360
    %v3362 = vrot.slane %v3348, %v3361
    %v3363 = vcombine.low %v3355, %v3362
    %v3364 = vcombine.low %v1050, %v1064
    %v3365 = vcombine.low %v1116, %v1099
    %v3367 = vunpack.c.l.s4 1966171168
    %v3368 = vunpack.c.0.s8 %v3367
    %v3369 = vlaneseq
    %v3370 = vshrl.u32 %v3369, 7
    %v3371 = vsub.s32 %v3368, %v3370
    %v3372 = vrot.slane %v3364, %v3371
    %v3374 = vunpack.c.l.s4 1966171168
    %v3375 = vunpack.c.0.s8 %v3374
    %v3376 = vlaneseq
    %v3377 = vshrl.u32 %v3376, 7
    %v3378 = vsub.s32 %v3375, %v3377
    %v3379 = vrot.slane %v3365, %v3378
    %v3380 = vcombine.low %v1995, %v3372
    %v3381 = vcombine.low %v2009, %v3379
    %v3383 = vunpack.c.l.s4 1966171168
    %v3384 = vunpack.c.0.s8 %v3383
    %v3385 = vlaneseq
    %v3386 = vshrl.u32 %v3385, 7
    %v3387 = vsub.s32 %v3384, %v3386
    %v3388 = vrot.slane %v3380, %v3387
    %v3390 = vunpack.c.l.s4 1966171168
    %v3391 = vunpack.c.0.s8 %v3390
    %v3392 = vlaneseq
    %v3393 = vshrl.u32 %v3392, 7
    %v3394 = vsub.s32 %v3391, %v3393
    %v3395 = vrot.slane %v3381, %v3394
    %v3396 = vcombine.low %v3388, %v3395
    %v3397 = vcombine.low %v1264, %v1288
    %v3398 = vcombine.low %v1311, %v1313
    %v3400 = vunpack.c.l.s4 1966171168
    %v3401 = vunpack.c.0.s8 %v3400
    %v3402 = vlaneseq
    %v3403 = vshrl.u32 %v3402, 7
    %v3404 = vsub.s32 %v3401, %v3403
    %v3405 = vrot.slane %v3397, %v3404
    %v3407 = vunpack.c.l.s4 1966171168
    %v3408 = vunpack.c.0.s8 %v3407
    %v3409 = vlaneseq
    %v3410 = vshrl.u32 %v3409, 7
    %v3411 = vsub.s32 %v3408, %v3410
    %v3412 = vrot.slane %v3398, %v3411
    %v3413 = vcombine.low %v2044, %v3405
    %v3414 = vcombine.low %v2058, %v3412
    %v3416 = vunpack.c.l.s4 1966171168
    %v3417 = vunpack.c.0.s8 %v3416
    %v3418 = vlaneseq
    %v3419 = vshrl.u32 %v3418, 7
    %v3420 = vsub.s32 %v3417, %v3419
    %v3421 = vrot.slane %v3413, %v3420
    %v3423 = vunpack.c.l.s4 1966171168
    %v3424 = vunpack.c.0.s8 %v3423
    %v3425 = vlaneseq
    %v3426 = vshrl.u32 %v3425, 7
    %v3427 = vsub.s32 %v3424, %v3426
    %v3428 = vrot.slane %v3414, %v3427
    %v3429 = vcombine.low %v3421, %v3428
    %v3430 = vcombine.low %v1358, %v1360
    %v3431 = vcombine.low %v1393, %v1407
    %v3433 = vunpack.c.l.s4 1966171168
    %v3434 = vunpack.c.0.s8 %v3433
    %v3435 = vlaneseq
    %v3436 = vshrl.u32 %v3435, 7
    %v3437 = vsub.s32 %v3434, %v3436
    %v3438 = vrot.slane %v3430, %v3437
    %v3440 = vunpack.c.l.s4 1966171168
    %v3441 = vunpack.c.0.s8 %v3440
    %v3442 = vlaneseq
    %v3443 = vshrl.u32 %v3442, 7
    %v3444 = vsub.s32 %v3441, %v3443
    %v3445 = vrot.slane %v3431, %v3444
    %v3446 = vcombine.low %v2093, %v3438
    %v3447 = vcombine.low %v2107, %v3445
    %v3449 = vunpack.c.l.s4 1966171168
    %v3450 = vunpack.c.0.s8 %v3449
    %v3451 = vlaneseq
    %v3452 = vshrl.u32 %v3451, 7
    %v3453 = vsub.s32 %v3450, %v3452
    %v3454 = vrot.slane %v3446, %v3453
    %v3456 = vunpack.c.l.s4 1966171168
    %v3457 = vunpack.c.0.s8 %v3456
    %v3458 = vlaneseq
    %v3459 = vshrl.u32 %v3458, 7
    %v3460 = vsub.s32 %v3457, %v3459
    %v3461 = vrot.slane %v3447, %v3460
    %v3462 = vcombine.low %v3454, %v3461
    %v3463 = vcombine.low %v1582, %v1596
    %v3464 = vcombine.low %v1607, %v1631
    %v3466 = vunpack.c.l.s4 1966171168
    %v3467 = vunpack.c.0.s8 %v3466
    %v3468 = vlaneseq
    %v3469 = vshrl.u32 %v3468, 7
    %v3470 = vsub.s32 %v3467, %v3469
    %v3471 = vrot.slane %v3463, %v3470
    %v3473 = vunpack.c.l.s4 1966171168
    %v3474 = vunpack.c.0.s8 %v3473
    %v3475 = vlaneseq
    %v3476 = vshrl.u32 %v3475, 7
    %v3477 = vsub.s32 %v3474, %v3476
    %v3478 = vrot.slane %v3464, %v3477
    %v3479 = vcombine.low %v2142, %v3471
    %v3480 = vcombine.low %v2156, %v3478
    %v3482 = vunpack.c.l.s4 1966171168
    %v3483 = vunpack.c.0.s8 %v3482
    %v3484 = vlaneseq
    %v3485 = vshrl.u32 %v3484, 7
    %v3486 = vsub.s32 %v3483, %v3485
    %v3487 = vrot.slane %v3479, %v3486
    %v3489 = vunpack.c.l.s4 1966171168
    %v3490 = vunpack.c.0.s8 %v3489
    %v3491 = vlaneseq
    %v3492 = vshrl.u32 %v3491, 7
    %v3493 = vsub.s32 %v3490, %v3492
    %v3494 = vrot.slane %v3480, %v3493
    %v3495 = vcombine.low %v3487, %v3494
    %v3496 = vcombine.low %v1654, %v1656
    %v3497 = vcombine.low %v1701, %v1703
    %v3499 = vunpack.c.l.s4 1966171168
    %v3500 = vunpack.c.0.s8 %v3499
    %v3501 = vlaneseq
    %v3502 = vshrl.u32 %v3501, 7
    %v3503 = vsub.s32 %v3500, %v3502
    %v3504 = vrot.slane %v3496, %v3503
    %v3506 = vunpack.c.l.s4 1966171168
    %v3507 = vunpack.c.0.s8 %v3506
    %v3508 = vlaneseq
    %v3509 = vshrl.u32 %v3508, 7
    %v3510 = vsub.s32 %v3507, %v3509
    %v3511 = vrot.slane %v3497, %v3510
    %v3512 = vcombine.low %v2191, %v3504
    %v3513 = vcombine.low %v2205, %v3511
    %v3515 = vunpack.c.l.s4 1966171168
    %v3516 = vunpack.c.0.s8 %v3515
    %v3517 = vlaneseq
    %v3518 = vshrl.u32 %v3517, 7
    %v3519 = vsub.s32 %v3516, %v3518
    %v3520 = vrot.slane %v3512, %v3519
    %v3522 = vunpack.c.l.s4 1966171168
    %v3523 = vunpack.c.0.s8 %v3522
    %v3524 = vlaneseq
    %v3525 = vshrl.u32 %v3524, 7
    %v3526 = vsub.s32 %v3523, %v3525
    %v3527 = vrot.slane %v3513, %v3526
    %v3528 = vcombine.low %v3520, %v3527
    %v3529 = vsel %vm2223, %v3297, 0
    %v3531 = vsel %vm2223, %v3330, 0
    %v3533 = vsel %vm2223, %v3363, 0
    %v3535 = vsel %vm2223, %v3396, 0
    %v3537 = vsel %vm2223, %v3429, 0
    %v3539 = vsel %vm2223, %v3462, 0
    %v3541 = vsel %vm2223, %v3495, 0
    %v3543 = vsel %vm2223, %v3528, 0
    %v3546 = vsel %vm2240, %v3264, 0
    %3548 = vmatprep.subr.mxu0 0.0
    %3549 = vmatpush1.msra.mxu0 %v3546
    %3550 = vmatprep.subr.mxu0 0.0
    %3551 = vmatpush1.msra.mxu0 0.0
    %3552 = vmatprep.subr.mxu0 0.0
    %3553 = vmatpush1.msra.mxu0 0.0
    %3554 = vmatprep.subr.mxu0 0.0
    %3555 = vmatpush1.msra.mxu0 0.0
    %3556 = vmatprep.subr.mxu0 0.0
    %3557 = vmatpush1.msra.mxu0 0.0
    %3558 = vmatprep.subr.mxu0 0.0
    %3559 = vmatpush1.msra.mxu0 0.0
    %3560 = vmatprep.subr.mxu0 0.0
    %3561 = vmatpush1.msra.mxu0 0.0
    %3562 = vmatprep.subr.mxu0 0.0
    %3563 = vmatpush1.msra.mxu0 0.0
    %3564 = vmatprep.subr.mxu0 0.0
    %3565 = vmatpush1.msra.mxu0 0.0
    %3566 = vmatprep.subr.mxu0 0.0
    %3567 = vmatpush1.msra.mxu0 0.0
    %3568 = vmatprep.subr.mxu0 0.0
    %3569 = vmatpush1.msra.mxu0 0.0
    %3570 = vmatprep.subr.mxu0 0.0
    %3571 = vmatpush1.msra.mxu0 0.0
    %3572 = vmatprep.subr.mxu0 0.0
    %3573 = vmatpush1.msra.mxu0 0.0
    %3574 = vmatprep.subr.mxu0 0.0
    %3575 = vmatpush1.msra.mxu0 0.0
    %3576 = vmatprep.subr.mxu0 0.0
    %3577 = vmatpush1.msra.mxu0 0.0
    %3578 = vmatprep.subr.mxu0 0.0
    %3579 = vmatpush1.msra.mxu0 0.0
    %3580 = vmatprep.subr.mxu0 0.0
    %3581 = vmatpush1.msra.mxu0 0.0
    %3582 = vmatprep.subr.mxu0 0.0
    %3583 = vmatpush1.msra.mxu0 0.0
    %3584 = vmatprep.subr.mxu0 0.0
    %3585 = vmatpush1.msra.mxu0 0.0
    %3586 = vmatprep.subr.mxu0 0.0
    %3587 = vmatpush1.msra.mxu0 0.0
    %3588 = vmatprep.subr.mxu0 0.0
    %3589 = vmatpush1.msra.mxu0 0.0
    %3590 = vmatprep.subr.mxu0 0.0
    %3591 = vmatpush1.msra.mxu0 0.0
    %3592 = vmatprep.subr.mxu0 0.0
    %3593 = vmatpush1.msra.mxu0 0.0
    %3594 = vmatprep.subr.mxu0 0.0
    %3595 = vmatpush1.msra.mxu0 0.0
    %3596 = vmatprep.subr.mxu0 0.0
    %3597 = vmatpush1.msra.mxu0 0.0
    %3598 = vmatprep.subr.mxu0 0.0
    %3599 = vmatpush1.msra.mxu0 0.0
    %3600 = vmatprep.subr.mxu0 0.0
    %3601 = vmatpush1.msra.mxu0 0.0
    %3602 = vmatprep.subr.mxu0 0.0
    %3603 = vmatpush1.msra.mxu0 0.0
    %3604 = vmatprep.subr.mxu0 0.0
    %3605 = vmatpush1.msra.mxu0 0.0
    %3606 = vmatprep.subr.mxu0 0.0
    %3607 = vmatpush1.msra.mxu0 0.0
    %3608 = vmatprep.subr.mxu0 0.0
    %3609 = vmatpush1.msra.mxu0 0.0
    %3610 = vmatprep.subr.mxu0 0.0
    %3611 = vmatpush1.msra.mxu0 0.0
    %3612 = vmatprep.mubr.f32.mxu0 0.0
    %3613 = vmatmul.mubr.f32.gmra.mrb[0].mxu0 %v3529
    %v3614 = vpop.f32.mrb[0].mxu0
    %v3615 = vadd.f32 0.0, %v3614
    %v3616 = vpop.f32.mrb[0].mxu0
    %3617 = vmatprep.mubr.f32.mxu0 0.0
    %3618 = vmatmul.mubr.f32.gmra.mrb[0].mxu0 %v3531
    %v3619 = vpop.f32.mrb[0].mxu0
    %v3620 = vadd.f32 0.0, %v3619
    %v3621 = vpop.f32.mrb[0].mxu0
    %3622 = vmatprep.mubr.f32.mxu0 0.0
    %3623 = vmatmul.mubr.f32.gmra.mrb[0].mxu0 %v3533
    %v3624 = vpop.f32.mrb[0].mxu0
    %v3625 = vadd.f32 0.0, %v3624
    %v3626 = vpop.f32.mrb[0].mxu0
    %3627 = vmatprep.mubr.f32.mxu0 0.0
    %3628 = vmatmul.mubr.f32.gmra.mrb[0].mxu0 %v3535
    %v3629 = vpop.f32.mrb[0].mxu0
    %v3630 = vadd.f32 0.0, %v3629
    %v3631 = vpop.f32.mrb[0].mxu0
    %3632 = vmatprep.mubr.f32.mxu0 0.0
    %3633 = vmatmul.mubr.f32.gmra.mrb[0].mxu0 %v3537
    %v3634 = vpop.f32.mrb[0].mxu0
    %v3635 = vadd.f32 0.0, %v3634
    %v3636 = vpop.f32.mrb[0].mxu0
    %3637 = vmatprep.mubr.f32.mxu0 0.0
    %3638 = vmatmul.mubr.f32.gmra.mrb[0].mxu0 %v3539
    %v3639 = vpop.f32.mrb[0].mxu0
    %v3640 = vadd.f32 0.0, %v3639
    %v3641 = vpop.f32.mrb[0].mxu0
    %3642 = vmatprep.mubr.f32.mxu0 0.0
    %3643 = vmatmul.mubr.f32.gmra.mrb[0].mxu0 %v3541
    %v3644 = vpop.f32.mrb[0].mxu0
    %v3645 = vadd.f32 0.0, %v3644
    %v3646 = vpop.f32.mrb[0].mxu0
    %3647 = vmatprep.mubr.f32.mxu0 0.0
    %3648 = vmatmul.mubr.f32.gmra.mrb[0].mxu0 %v3543
    %v3649 = vpop.f32.mrb[0].mxu0
    %v3650 = vadd.f32 0.0, %v3649
    %v3651 = vpop.f32.mrb[0].mxu0
    %3652 = vdwg.mxu0
    %v3653 = vadd.f32 %v3255, %v3615
    %v3654 = vadd.f32 %v3256, %v3620
    %v3655 = vadd.f32 %v3257, %v3625
    %v3656 = vadd.f32 %v3258, %v3630
    %v3657 = vadd.f32 %v3259, %v3635
    %v3658 = vadd.f32 %v3260, %v3640
    %v3659 = vadd.f32 %v3261, %v3645
    %v3660 = vadd.f32 %v3262, %v3650
    %s3661 = scalar_lea.vmem %s4, 32
    %v3662 = vld [vmem:[%s3661] sm:$0x3f]
    %v3663 = vcombine.low %v2396, %v2438
    %v3664 = vcombine.low %v805, %v819
    %v3665 = vcombine.low %v821, %v823
    %v3667 = vunpack.c.l.s4 1966171168
    %v3668 = vunpack.c.0.s8 %v3667
    %v3669 = vlaneseq
    %v3670 = vshrl.u32 %v3669, 7
    %v3671 = vsub.s32 %v3668, %v3670
    %v3672 = vrot.slane %v3664, %v3671
    %v3674 = vunpack.c.l.s4 1966171168
    %v3675 = vunpack.c.0.s8 %v3674
    %v3676 = vlaneseq
    %v3677 = vshrl.u32 %v3676, 7
    %v3678 = vsub.s32 %v3675, %v3677
    %v3679 = vrot.slane %v3665, %v3678
    %v3680 = vcombine.low %v3672, %v3679
    %v3682 = vunpack.c.l.s4 1966171168
    %v3683 = vunpack.c.0.s8 %v3682
    %v3684 = vlaneseq
    %v3685 = vshrl.u32 %v3684, 7
    %v3686 = vsub.s32 %v3683, %v3685
    %v3687 = vrot.slane %v3680, %v3686
    %v3688 = vcombine.low %v2445, %v3687
    %v3689 = vcombine.low %v2494, %v2536
    %v3690 = vcombine.low %v1113, %v1115
    %v3691 = vcombine.low %v1117, %v1141
    %v3693 = vunpack.c.l.s4 1966171168
    %v3694 = vunpack.c.0.s8 %v3693
    %v3695 = vlaneseq
    %v3696 = vshrl.u32 %v3695, 7
    %v3697 = vsub.s32 %v3694, %v3696
    %v3698 = vrot.slane %v3690, %v3697
    %v3700 = vunpack.c.l.s4 1966171168
    %v3701 = vunpack.c.0.s8 %v3700
    %v3702 = vlaneseq
    %v3703 = vshrl.u32 %v3702, 7
    %v3704 = vsub.s32 %v3701, %v3703
    %v3705 = vrot.slane %v3691, %v3704
    %v3706 = vcombine.low %v3698, %v3705
    %v3708 = vunpack.c.l.s4 1966171168
    %v3709 = vunpack.c.0.s8 %v3708
    %v3710 = vlaneseq
    %v3711 = vshrl.u32 %v3710, 7
    %v3712 = vsub.s32 %v3709, %v3711
    %v3713 = vrot.slane %v3706, %v3712
    %v3714 = vcombine.low %v2543, %v3713
    %v3715 = vcombine.low %v2592, %v2634
    %v3716 = vcombine.low %v1409, %v1411
    %v3717 = vcombine.low %v1435, %v1449
    %v3719 = vunpack.c.l.s4 1966171168
    %v3720 = vunpack.c.0.s8 %v3719
    %v3721 = vlaneseq
    %v3722 = vshrl.u32 %v3721, 7
    %v3723 = vsub.s32 %v3720, %v3722
    %v3724 = vrot.slane %v3716, %v3723
    %v3726 = vunpack.c.l.s4 1966171168
    %v3727 = vunpack.c.0.s8 %v3726
    %v3728 = vlaneseq
    %v3729 = vshrl.u32 %v3728, 7
    %v3730 = vsub.s32 %v3727, %v3729
    %v3731 = vrot.slane %v3717, %v3730
    %v3732 = vcombine.low %v3724, %v3731
    %v3734 = vunpack.c.l.s4 1966171168
    %v3735 = vunpack.c.0.s8 %v3734
    %v3736 = vlaneseq
    %v3737 = vshrl.u32 %v3736, 7
    %v3738 = vsub.s32 %v3735, %v3737
    %v3739 = vrot.slane %v3732, %v3738
    %v3740 = vcombine.low %v2641, %v3739
    %v3741 = vcombine.low %v2690, %v2732
    %v3742 = vcombine.low %v1705, %v1729
    %v3743 = vcombine.low %v1743, %v1751
    %v3745 = vunpack.c.l.s4 1966171168
    %v3746 = vunpack.c.0.s8 %v3745
    %v3747 = vlaneseq
    %v3748 = vshrl.u32 %v3747, 7
    %v3749 = vsub.s32 %v3746, %v3748
    %v3750 = vrot.slane %v3742, %v3749
    %v3752 = vunpack.c.l.s4 1966171168
    %v3753 = vunpack.c.0.s8 %v3752
    %v3754 = vlaneseq
    %v3755 = vshrl.u32 %v3754, 7
    %v3756 = vsub.s32 %v3753, %v3755
    %v3757 = vrot.slane %v3743, %v3756
    %v3758 = vcombine.low %v3750, %v3757
    %v3760 = vunpack.c.l.s4 1966171168
    %v3761 = vunpack.c.0.s8 %v3760
    %v3762 = vlaneseq
    %v3763 = vshrl.u32 %v3762, 7
    %v3764 = vsub.s32 %v3761, %v3763
    %v3765 = vrot.slane %v3758, %v3764
    %v3766 = vcombine.low %v2739, %v3765
    %v3767 = vsel %vm2223, %v3663, 0
    %v3769 = vsel %vm2223, %v3688, 0
    %v3771 = vsel %vm2223, %v3689, 0
    %v3773 = vsel %vm2223, %v3714, 0
    %v3775 = vsel %vm2223, %v3715, 0
    %v3777 = vsel %vm2223, %v3740, 0
    %v3779 = vsel %vm2223, %v3741, 0
    %v3781 = vsel %vm2223, %v3766, 0
    %v3784 = vsel %vm2240, %v3662, 0
    %3786 = vmatprep.subr.mxu0 0.0
    %3787 = vmatpush1.msra.mxu0 %v3784
    %3788 = vmatprep.subr.mxu0 0.0
    %3789 = vmatpush1.msra.mxu0 0.0
    %3790 = vmatprep.subr.mxu0 0.0
    %3791 = vmatpush1.msra.mxu0 0.0
    %3792 = vmatprep.subr.mxu0 0.0
    %3793 = vmatpush1.msra.mxu0 0.0
    %3794 = vmatprep.subr.mxu0 0.0
    %3795 = vmatpush1.msra.mxu0 0.0
    %3796 = vmatprep.subr.mxu0 0.0
    %3797 = vmatpush1.msra.mxu0 0.0
    %3798 = vmatprep.subr.mxu0 0.0
    %3799 = vmatpush1.msra.mxu0 0.0
    %3800 = vmatprep.subr.mxu0 0.0
    %3801 = vmatpush1.msra.mxu0 0.0
    %3802 = vmatprep.subr.mxu0 0.0
    %3803 = vmatpush1.msra.mxu0 0.0
    %3804 = vmatprep.subr.mxu0 0.0
    %3805 = vmatpush1.msra.mxu0 0.0
    %3806 = vmatprep.subr.mxu0 0.0
    %3807 = vmatpush1.msra.mxu0 0.0
    %3808 = vmatprep.subr.mxu0 0.0
    %3809 = vmatpush1.msra.mxu0 0.0
    %3810 = vmatprep.subr.mxu0 0.0
    %3811 = vmatpush1.msra.mxu0 0.0
    %3812 = vmatprep.subr.mxu0 0.0
    %3813 = vmatpush1.msra.mxu0 0.0
    %3814 = vmatprep.subr.mxu0 0.0
    %3815 = vmatpush1.msra.mxu0 0.0
    %3816 = vmatprep.subr.mxu0 0.0
    %3817 = vmatpush1.msra.mxu0 0.0
    %3818 = vmatprep.subr.mxu0 0.0
    %3819 = vmatpush1.msra.mxu0 0.0
    %3820 = vmatprep.subr.mxu0 0.0
    %3821 = vmatpush1.msra.mxu0 0.0
    %3822 = vmatprep.subr.mxu0 0.0
    %3823 = vmatpush1.msra.mxu0 0.0
    %3824 = vmatprep.subr.mxu0 0.0
    %3825 = vmatpush1.msra.mxu0 0.0
    %3826 = vmatprep.subr.mxu0 0.0
    %3827 = vmatpush1.msra.mxu0 0.0
    %3828 = vmatprep.subr.mxu0 0.0
    %3829 = vmatpush1.msra.mxu0 0.0
    %3830 = vmatprep.subr.mxu0 0.0
    %3831 = vmatpush1.msra.mxu0 0.0
    %3832 = vmatprep.subr.mxu0 0.0
    %3833 = vmatpush1.msra.mxu0 0.0
    %3834 = vmatprep.subr.mxu0 0.0
    %3835 = vmatpush1.msra.mxu0 0.0
    %3836 = vmatprep.subr.mxu0 0.0
    %3837 = vmatpush1.msra.mxu0 0.0
    %3838 = vmatprep.subr.mxu0 0.0
    %3839 = vmatpush1.msra.mxu0 0.0
    %3840 = vmatprep.subr.mxu0 0.0
    %3841 = vmatpush1.msra.mxu0 0.0
    %3842 = vmatprep.subr.mxu0 0.0
    %3843 = vmatpush1.msra.mxu0 0.0
    %3844 = vmatprep.subr.mxu0 0.0
    %3845 = vmatpush1.msra.mxu0 0.0
    %3846 = vmatprep.subr.mxu0 0.0
    %3847 = vmatpush1.msra.mxu0 0.0
    %3848 = vmatprep.subr.mxu0 0.0
    %3849 = vmatpush1.msra.mxu0 0.0
    %3850 = vmatprep.mubr.f32.mxu0 0.0
    %3851 = vmatmul.mubr.f32.gmra.mrb[0].mxu0 %v3767
    %v3852 = vpop.f32.mrb[0].mxu0
    %v3853 = vadd.f32 0.0, %v3852
    %v3854 = vpop.f32.mrb[0].mxu0
    %3855 = vmatprep.mubr.f32.mxu0 0.0
    %3856 = vmatmul.mubr.f32.gmra.mrb[0].mxu0 %v3769
    %v3857 = vpop.f32.mrb[0].mxu0
    %v3858 = vadd.f32 0.0, %v3857
    %v3859 = vpop.f32.mrb[0].mxu0
    %3860 = vmatprep.mubr.f32.mxu0 0.0
    %3861 = vmatmul.mubr.f32.gmra.mrb[0].mxu0 %v3771
    %v3862 = vpop.f32.mrb[0].mxu0
    %v3863 = vadd.f32 0.0, %v3862
    %v3864 = vpop.f32.mrb[0].mxu0
    %3865 = vmatprep.mubr.f32.mxu0 0.0
    %3866 = vmatmul.mubr.f32.gmra.mrb[0].mxu0 %v3773
    %v3867 = vpop.f32.mrb[0].mxu0
    %v3868 = vadd.f32 0.0, %v3867
    %v3869 = vpop.f32.mrb[0].mxu0
    %3870 = vmatprep.mubr.f32.mxu0 0.0
    %3871 = vmatmul.mubr.f32.gmra.mrb[0].mxu0 %v3775
    %v3872 = vpop.f32.mrb[0].mxu0
    %v3873 = vadd.f32 0.0, %v3872
    %v3874 = vpop.f32.mrb[0].mxu0
    %3875 = vmatprep.mubr.f32.mxu0 0.0
    %3876 = vmatmul.mubr.f32.gmra.mrb[0].mxu0 %v3777
    %v3877 = vpop.f32.mrb[0].mxu0
    %v3878 = vadd.f32 0.0, %v3877
    %v3879 = vpop.f32.mrb[0].mxu0
    %3880 = vmatprep.mubr.f32.mxu0 0.0
    %3881 = vmatmul.mubr.f32.gmra.mrb[0].mxu0 %v3779
    %v3882 = vpop.f32.mrb[0].mxu0
    %v3883 = vadd.f32 0.0, %v3882
    %v3884 = vpop.f32.mrb[0].mxu0
    %3885 = vmatprep.mubr.f32.mxu0 0.0
    %3886 = vmatmul.mubr.f32.gmra.mrb[0].mxu0 %v3781
    %v3887 = vpop.f32.mrb[0].mxu0
    %v3888 = vadd.f32 0.0, %v3887
    %v3889 = vpop.f32.mrb[0].mxu0
    %3890 = vdwg.mxu0
    %v3891 = vadd.f32 %v3653, %v3853
    %v3892 = vadd.f32 %v3654, %v3858
    %v3893 = vadd.f32 %v3655, %v3863
    %v3894 = vadd.f32 %v3656, %v3868
    %v3895 = vadd.f32 %v3657, %v3873
    %v3896 = vadd.f32 %v3658, %v3878
    %v3897 = vadd.f32 %v3659, %v3883
    %v3898 = vadd.f32 %v3660, %v3888
    %s3899 = scalar_lea.vmem %s4, 40
    %v3900 = vld [vmem:[%s3899] sm:$0x3f]
    %v3901 = vcombine.low %v1878, %v1920
    %v3902 = vcombine.low %v819, %v821
    %v3903 = vcombine.low %v823, %v847
    %v3905 = vunpack.c.l.s4 1966171168
    %v3906 = vunpack.c.0.s8 %v3905
    %v3907 = vlaneseq
    %v3908 = vshrl.u32 %v3907, 7
    %v3909 = vsub.s32 %v3906, %v3908
    %v3910 = vrot.slane %v3902, %v3909
    %v3912 = vunpack.c.l.s4 1966171168
    %v3913 = vunpack.c.0.s8 %v3912
    %v3914 = vlaneseq
    %v3915 = vshrl.u32 %v3914, 7
    %v3916 = vsub.s32 %v3913, %v3915
    %v3917 = vrot.slane %v3903, %v3916
    %v3918 = vcombine.low %v3910, %v3917
    %v3920 = vunpack.c.l.s4 1966171168
    %v3921 = vunpack.c.0.s8 %v3920
    %v3922 = vlaneseq
    %v3923 = vshrl.u32 %v3922, 7
    %v3924 = vsub.s32 %v3921, %v3923
    %v3925 = vrot.slane %v3918, %v3924
    %v3926 = vcombine.low %v1927, %v3925
    %v3927 = vcombine.low %v1976, %v2018
    %v3928 = vcombine.low %v1115, %v1117
    %v3929 = vcombine.low %v1141, %v1155
    %v3931 = vunpack.c.l.s4 1966171168
    %v3932 = vunpack.c.0.s8 %v3931
    %v3933 = vlaneseq
    %v3934 = vshrl.u32 %v3933, 7
    %v3935 = vsub.s32 %v3932, %v3934
    %v3936 = vrot.slane %v3928, %v3935
    %v3938 = vunpack.c.l.s4 1966171168
    %v3939 = vunpack.c.0.s8 %v3938
    %v3940 = vlaneseq
    %v3941 = vshrl.u32 %v3940, 7
    %v3942 = vsub.s32 %v3939, %v3941
    %v3943 = vrot.slane %v3929, %v3942
    %v3944 = vcombine.low %v3936, %v3943
    %v3946 = vunpack.c.l.s4 1966171168
    %v3947 = vunpack.c.0.s8 %v3946
    %v3948 = vlaneseq
    %v3949 = vshrl.u32 %v3948, 7
    %v3950 = vsub.s32 %v3947, %v3949
    %v3951 = vrot.slane %v3944, %v3950
    %v3952 = vcombine.low %v2025, %v3951
    %v3953 = vcombine.low %v2074, %v2116
    %v3954 = vcombine.low %v1411, %v1435
    %v3955 = vcombine.low %v1449, %v1457
    %v3957 = vunpack.c.l.s4 1966171168
    %v3958 = vunpack.c.0.s8 %v3957
    %v3959 = vlaneseq
    %v3960 = vshrl.u32 %v3959, 7
    %v3961 = vsub.s32 %v3958, %v3960
    %v3962 = vrot.slane %v3954, %v3961
    %v3964 = vunpack.c.l.s4 1966171168
    %v3965 = vunpack.c.0.s8 %v3964
    %v3966 = vlaneseq
    %v3967 = vshrl.u32 %v3966, 7
    %v3968 = vsub.s32 %v3965, %v3967
    %v3969 = vrot.slane %v3955, %v3968
    %v3970 = vcombine.low %v3962, %v3969
    %v3972 = vunpack.c.l.s4 1966171168
    %v3973 = vunpack.c.0.s8 %v3972
    %v3974 = vlaneseq
    %v3975 = vshrl.u32 %v3974, 7
    %v3976 = vsub.s32 %v3973, %v3975
    %v3977 = vrot.slane %v3970, %v3976
    %v3978 = vcombine.low %v2123, %v3977
    %v3979 = vcombine.low %v2172, %v2214
    %v3980 = vcombine.low %v1729, %v1743
    %v3981 = vcombine.low %v1751, %v1753
    %v3983 = vunpack.c.l.s4 1966171168
    %v3984 = vunpack.c.0.s8 %v3983
    %v3985 = vlaneseq
    %v3986 = vshrl.u32 %v3985, 7
    %v3987 = vsub.s32 %v3984, %v3986
    %v3988 = vrot.slane %v3980, %v3987
    %v3990 = vunpack.c.l.s4 1966171168
    %v3991 = vunpack.c.0.s8 %v3990
    %v3992 = vlaneseq
    %v3993 = vshrl.u32 %v3992, 7
    %v3994 = vsub.s32 %v3991, %v3993
    %v3995 = vrot.slane %v3981, %v3994
    %v3996 = vcombine.low %v3988, %v3995
    %v3998 = vunpack.c.l.s4 1966171168
    %v3999 = vunpack.c.0.s8 %v3998
    %v4000 = vlaneseq
    %v4001 = vshrl.u32 %v4000, 7
    %v4002 = vsub.s32 %v3999, %v4001
    %v4003 = vrot.slane %v3996, %v4002
    %v4004 = vcombine.low %v2221, %v4003
    %v4005 = vsel %vm2223, %v3901, 0
    %v4007 = vsel %vm2223, %v3926, 0
    %v4009 = vsel %vm2223, %v3927, 0
    %v4011 = vsel %vm2223, %v3952, 0
    %v4013 = vsel %vm2223, %v3953, 0
    %v4015 = vsel %vm2223, %v3978, 0
    %v4017 = vsel %vm2223, %v3979, 0
    %v4019 = vsel %vm2223, %v4004, 0
    %v4022 = vsel %vm2240, %v3900, 0
    %4024 = vmatprep.subr.mxu0 0.0
    %4025 = vmatpush1.msra.mxu0 %v4022
    %4026 = vmatprep.subr.mxu0 0.0
    %4027 = vmatpush1.msra.mxu0 0.0
    %4028 = vmatprep.subr.mxu0 0.0
    %4029 = vmatpush1.msra.mxu0 0.0
    %4030 = vmatprep.subr.mxu0 0.0
    %4031 = vmatpush1.msra.mxu0 0.0
    %4032 = vmatprep.subr.mxu0 0.0
    %4033 = vmatpush1.msra.mxu0 0.0
    %4034 = vmatprep.subr.mxu0 0.0
    %4035 = vmatpush1.msra.mxu0 0.0
    %4036 = vmatprep.subr.mxu0 0.0
    %4037 = vmatpush1.msra.mxu0 0.0
    %4038 = vmatprep.subr.mxu0 0.0
    %4039 = vmatpush1.msra.mxu0 0.0
    %4040 = vmatprep.subr.mxu0 0.0
    %4041 = vmatpush1.msra.mxu0 0.0
    %4042 = vmatprep.subr.mxu0 0.0
    %4043 = vmatpush1.msra.mxu0 0.0
    %4044 = vmatprep.subr.mxu0 0.0
    %4045 = vmatpush1.msra.mxu0 0.0
    %4046 = vmatprep.subr.mxu0 0.0
    %4047 = vmatpush1.msra.mxu0 0.0
    %4048 = vmatprep.subr.mxu0 0.0
    %4049 = vmatpush1.msra.mxu0 0.0
    %4050 = vmatprep.subr.mxu0 0.0
    %4051 = vmatpush1.msra.mxu0 0.0
    %4052 = vmatprep.subr.mxu0 0.0
    %4053 = vmatpush1.msra.mxu0 0.0
    %4054 = vmatprep.subr.mxu0 0.0
    %4055 = vmatpush1.msra.mxu0 0.0
    %4056 = vmatprep.subr.mxu0 0.0
    %4057 = vmatpush1.msra.mxu0 0.0
    %4058 = vmatprep.subr.mxu0 0.0
    %4059 = vmatpush1.msra.mxu0 0.0
    %4060 = vmatprep.subr.mxu0 0.0
    %4061 = vmatpush1.msra.mxu0 0.0
    %4062 = vmatprep.subr.mxu0 0.0
    %4063 = vmatpush1.msra.mxu0 0.0
    %4064 = vmatprep.subr.mxu0 0.0
    %4065 = vmatpush1.msra.mxu0 0.0
    %4066 = vmatprep.subr.mxu0 0.0
    %4067 = vmatpush1.msra.mxu0 0.0
    %4068 = vmatprep.subr.mxu0 0.0
    %4069 = vmatpush1.msra.mxu0 0.0
    %4070 = vmatprep.subr.mxu0 0.0
    %4071 = vmatpush1.msra.mxu0 0.0
    %4072 = vmatprep.subr.mxu0 0.0
    %4073 = vmatpush1.msra.mxu0 0.0
    %4074 = vmatprep.subr.mxu0 0.0
    %4075 = vmatpush1.msra.mxu0 0.0
    %4076 = vmatprep.subr.mxu0 0.0
    %4077 = vmatpush1.msra.mxu0 0.0
    %4078 = vmatprep.subr.mxu0 0.0
    %4079 = vmatpush1.msra.mxu0 0.0
    %4080 = vmatprep.subr.mxu0 0.0
    %4081 = vmatpush1.msra.mxu0 0.0
    %4082 = vmatprep.subr.mxu0 0.0
    %4083 = vmatpush1.msra.mxu0 0.0
    %4084 = vmatprep.subr.mxu0 0.0
    %4085 = vmatpush1.msra.mxu0 0.0
    %4086 = vmatprep.subr.mxu0 0.0
    %4087 = vmatpush1.msra.mxu0 0.0
    %4088 = vmatprep.mubr.f32.mxu0 0.0
    %4089 = vmatmul.mubr.f32.gmra.mrb[0].mxu0 %v4005
    %v4090 = vpop.f32.mrb[0].mxu0
    %v4091 = vadd.f32 0.0, %v4090
    %v4092 = vpop.f32.mrb[0].mxu0
    %4093 = vmatprep.mubr.f32.mxu0 0.0
    %4094 = vmatmul.mubr.f32.gmra.mrb[0].mxu0 %v4007
    %v4095 = vpop.f32.mrb[0].mxu0
    %v4096 = vadd.f32 0.0, %v4095
    %v4097 = vpop.f32.mrb[0].mxu0
    %4098 = vmatprep.mubr.f32.mxu0 0.0
    %4099 = vmatmul.mubr.f32.gmra.mrb[0].mxu0 %v4009
    %v4100 = vpop.f32.mrb[0].mxu0
    %v4101 = vadd.f32 0.0, %v4100
    %v4102 = vpop.f32.mrb[0].mxu0
    %4103 = vmatprep.mubr.f32.mxu0 0.0
    %4104 = vmatmul.mubr.f32.gmra.mrb[0].mxu0 %v4011
    %v4105 = vpop.f32.mrb[0].mxu0
    %v4106 = vadd.f32 0.0, %v4105
    %v4107 = vpop.f32.mrb[0].mxu0
    %4108 = vmatprep.mubr.f32.mxu0 0.0
    %4109 = vmatmul.mubr.f32.gmra.mrb[0].mxu0 %v4013
    %v4110 = vpop.f32.mrb[0].mxu0
    %v4111 = vadd.f32 0.0, %v4110
    %v4112 = vpop.f32.mrb[0].mxu0
    %4113 = vmatprep.mubr.f32.mxu0 0.0
    %4114 = vmatmul.mubr.f32.gmra.mrb[0].mxu0 %v4015
    %v4115 = vpop.f32.mrb[0].mxu0
    %v4116 = vadd.f32 0.0, %v4115
    %v4117 = vpop.f32.mrb[0].mxu0
    %4118 = vmatprep.mubr.f32.mxu0 0.0
    %4119 = vmatmul.mubr.f32.gmra.mrb[0].mxu0 %v4017
    %v4120 = vpop.f32.mrb[0].mxu0
    %v4121 = vadd.f32 0.0, %v4120
    %v4122 = vpop.f32.mrb[0].mxu0
    %4123 = vmatprep.mubr.f32.mxu0 0.0
    %4124 = vmatmul.mubr.f32.gmra.mrb[0].mxu0 %v4019
    %v4125 = vpop.f32.mrb[0].mxu0
    %v4126 = vadd.f32 0.0, %v4125
    %v4127 = vpop.f32.mrb[0].mxu0
    %4128 = vdwg.mxu0
    %v4129 = vadd.f32 %v3891, %v4091
    %v4130 = vadd.f32 %v3892, %v4096
    %v4131 = vadd.f32 %v3893, %v4101
    %v4132 = vadd.f32 %v3894, %v4106
    %v4133 = vadd.f32 %v3895, %v4111
    %v4134 = vadd.f32 %v3896, %v4116
    %v4135 = vadd.f32 %v3897, %v4121
    %v4136 = vadd.f32 %v3898, %v4126
    %s4137 = scalar_lea.vmem %s4, 48
    %v4138 = vld [vmem:[%s4137] sm:$0x3f]
    %v4139 = vcombine.low %v2898, %v2924
    %v4140 = vcombine.low %v847, %v861
    %v4142 = vunpack.c.l.s4 1966171168
    %v4143 = vunpack.c.0.s8 %v4142
    %v4144 = vlaneseq
    %v4145 = vshrl.u32 %v4144, 7
    %v4146 = vsub.s32 %v4143, %v4145
    %v4147 = vrot.slane %v4140, %v4146
    %v4148 = vcombine.low %v3679, %v4147
    %v4150 = vunpack.c.l.s4 1966171168
    %v4151 = vunpack.c.0.s8 %v4150
    %v4152 = vlaneseq
    %v4153 = vshrl.u32 %v4152, 7
    %v4154 = vsub.s32 %v4151, %v4153
    %v4155 = vrot.slane %v4148, %v4154
    %v4156 = vcombine.low %v2931, %v4155
    %v4157 = vcombine.low %v2964, %v2990
    %v4158 = vcombine.low %v1155, %v1163
    %v4160 = vunpack.c.l.s4 1966171168
    %v4161 = vunpack.c.0.s8 %v4160
    %v4162 = vlaneseq
    %v4163 = vshrl.u32 %v4162, 7
    %v4164 = vsub.s32 %v4161, %v4163
    %v4165 = vrot.slane %v4158, %v4164
    %v4166 = vcombine.low %v3705, %v4165
    %v4168 = vunpack.c.l.s4 1966171168
    %v4169 = vunpack.c.0.s8 %v4168
    %v4170 = vlaneseq
    %v4171 = vshrl.u32 %v4170, 7
    %v4172 = vsub.s32 %v4169, %v4171
    %v4173 = vrot.slane %v4166, %v4172
    %v4174 = vcombine.low %v2997, %v4173
    %v4175 = vcombine.low %v3030, %v3056
    %v4176 = vcombine.low %v1457, %v1459
    %v4178 = vunpack.c.l.s4 1966171168
    %v4179 = vunpack.c.0.s8 %v4178
    %v4180 = vlaneseq
    %v4181 = vshrl.u32 %v4180, 7
    %v4182 = vsub.s32 %v4179, %v4181
    %v4183 = vrot.slane %v4176, %v4182
    %v4184 = vcombine.low %v3731, %v4183
    %v4186 = vunpack.c.l.s4 1966171168
    %v4187 = vunpack.c.0.s8 %v4186
    %v4188 = vlaneseq
    %v4189 = vshrl.u32 %v4188, 7
    %v4190 = vsub.s32 %v4187, %v4189
    %v4191 = vrot.slane %v4184, %v4190
    %v4192 = vcombine.low %v3063, %v4191
    %v4193 = vcombine.low %v3096, %v3122
    %v4194 = vcombine.low %v1753, %v1736
    %v4196 = vunpack.c.l.s4 1966171168
    %v4197 = vunpack.c.0.s8 %v4196
    %v4198 = vlaneseq
    %v4199 = vshrl.u32 %v4198, 7
    %v4200 = vsub.s32 %v4197, %v4199
    %v4201 = vrot.slane %v4194, %v4200
    %v4202 = vcombine.low %v3757, %v4201
    %v4204 = vunpack.c.l.s4 1966171168
    %v4205 = vunpack.c.0.s8 %v4204
    %v4206 = vlaneseq
    %v4207 = vshrl.u32 %v4206, 7
    %v4208 = vsub.s32 %v4205, %v4207
    %v4209 = vrot.slane %v4202, %v4208
    %v4210 = vcombine.low %v3129, %v4209
    %v4211 = vsel %vm2223, %v4139, 0
    %v4213 = vsel %vm2223, %v4156, 0
    %v4215 = vsel %vm2223, %v4157, 0
    %v4217 = vsel %vm2223, %v4174, 0
    %v4219 = vsel %vm2223, %v4175, 0
    %v4221 = vsel %vm2223, %v4192, 0
    %v4223 = vsel %vm2223, %v4193, 0
    %v4225 = vsel %vm2223, %v4210, 0
    %v4228 = vsel %vm2240, %v4138, 0
    %4230 = vmatprep.subr.mxu0 0.0
    %4231 = vmatpush1.msra.mxu0 %v4228
    %4232 = vmatprep.subr.mxu0 0.0
    %4233 = vmatpush1.msra.mxu0 0.0
    %4234 = vmatprep.subr.mxu0 0.0
    %4235 = vmatpush1.msra.mxu0 0.0
    %4236 = vmatprep.subr.mxu0 0.0
    %4237 = vmatpush1.msra.mxu0 0.0
    %4238 = vmatprep.subr.mxu0 0.0
    %4239 = vmatpush1.msra.mxu0 0.0
    %4240 = vmatprep.subr.mxu0 0.0
    %4241 = vmatpush1.msra.mxu0 0.0
    %4242 = vmatprep.subr.mxu0 0.0
    %4243 = vmatpush1.msra.mxu0 0.0
    %4244 = vmatprep.subr.mxu0 0.0
    %4245 = vmatpush1.msra.mxu0 0.0
    %4246 = vmatprep.subr.mxu0 0.0
    %4247 = vmatpush1.msra.mxu0 0.0
    %4248 = vmatprep.subr.mxu0 0.0
    %4249 = vmatpush1.msra.mxu0 0.0
    %4250 = vmatprep.subr.mxu0 0.0
    %4251 = vmatpush1.msra.mxu0 0.0
    %4252 = vmatprep.subr.mxu0 0.0
    %4253 = vmatpush1.msra.mxu0 0.0
    %4254 = vmatprep.subr.mxu0 0.0
    %4255 = vmatpush1.msra.mxu0 0.0
    %4256 = vmatprep.subr.mxu0 0.0
    %4257 = vmatpush1.msra.mxu0 0.0
    %4258 = vmatprep.subr.mxu0 0.0
    %4259 = vmatpush1.msra.mxu0 0.0
    %4260 = vmatprep.subr.mxu0 0.0
    %4261 = vmatpush1.msra.mxu0 0.0
    %4262 = vmatprep.subr.mxu0 0.0
    %4263 = vmatpush1.msra.mxu0 0.0
    %4264 = vmatprep.subr.mxu0 0.0
    %4265 = vmatpush1.msra.mxu0 0.0
    %4266 = vmatprep.subr.mxu0 0.0
    %4267 = vmatpush1.msra.mxu0 0.0
    %4268 = vmatprep.subr.mxu0 0.0
    %4269 = vmatpush1.msra.mxu0 0.0
    %4270 = vmatprep.subr.mxu0 0.0
    %4271 = vmatpush1.msra.mxu0 0.0
    %4272 = vmatprep.subr.mxu0 0.0
    %4273 = vmatpush1.msra.mxu0 0.0
    %4274 = vmatprep.subr.mxu0 0.0
    %4275 = vmatpush1.msra.mxu0 0.0
    %4276 = vmatprep.subr.mxu0 0.0
    %4277 = vmatpush1.msra.mxu0 0.0
    %4278 = vmatprep.subr.mxu0 0.0
    %4279 = vmatpush1.msra.mxu0 0.0
    %4280 = vmatprep.subr.mxu0 0.0
    %4281 = vmatpush1.msra.mxu0 0.0
    %4282 = vmatprep.subr.mxu0 0.0
    %4283 = vmatpush1.msra.mxu0 0.0
    %4284 = vmatprep.subr.mxu0 0.0
    %4285 = vmatpush1.msra.mxu0 0.0
    %4286 = vmatprep.subr.mxu0 0.0
    %4287 = vmatpush1.msra.mxu0 0.0
    %4288 = vmatprep.subr.mxu0 0.0
    %4289 = vmatpush1.msra.mxu0 0.0
    %4290 = vmatprep.subr.mxu0 0.0
    %4291 = vmatpush1.msra.mxu0 0.0
    %4292 = vmatprep.subr.mxu0 0.0
    %4293 = vmatpush1.msra.mxu0 0.0
    %4294 = vmatprep.mubr.f32.mxu0 0.0
    %4295 = vmatmul.mubr.f32.gmra.mrb[0].mxu0 %v4211
    %v4296 = vpop.f32.mrb[0].mxu0
    %v4297 = vadd.f32 0.0, %v4296
    %v4298 = vpop.f32.mrb[0].mxu0
    %4299 = vmatprep.mubr.f32.mxu0 0.0
    %4300 = vmatmul.mubr.f32.gmra.mrb[0].mxu0 %v4213
    %v4301 = vpop.f32.mrb[0].mxu0
    %v4302 = vadd.f32 0.0, %v4301
    %v4303 = vpop.f32.mrb[0].mxu0
    %4304 = vmatprep.mubr.f32.mxu0 0.0
    %4305 = vmatmul.mubr.f32.gmra.mrb[0].mxu0 %v4215
    %v4306 = vpop.f32.mrb[0].mxu0
    %v4307 = vadd.f32 0.0, %v4306
    %v4308 = vpop.f32.mrb[0].mxu0
    %4309 = vmatprep.mubr.f32.mxu0 0.0
    %4310 = vmatmul.mubr.f32.gmra.mrb[0].mxu0 %v4217
    %v4311 = vpop.f32.mrb[0].mxu0
    %v4312 = vadd.f32 0.0, %v4311
    %v4313 = vpop.f32.mrb[0].mxu0
    %4314 = vmatprep.mubr.f32.mxu0 0.0
    %4315 = vmatmul.mubr.f32.gmra.mrb[0].mxu0 %v4219
    %v4316 = vpop.f32.mrb[0].mxu0
    %v4317 = vadd.f32 0.0, %v4316
    %v4318 = vpop.f32.mrb[0].mxu0
    %4319 = vmatprep.mubr.f32.mxu0 0.0
    %4320 = vmatmul.mubr.f32.gmra.mrb[0].mxu0 %v4221
    %v4321 = vpop.f32.mrb[0].mxu0
    %v4322 = vadd.f32 0.0, %v4321
    %v4323 = vpop.f32.mrb[0].mxu0
    %4324 = vmatprep.mubr.f32.mxu0 0.0
    %4325 = vmatmul.mubr.f32.gmra.mrb[0].mxu0 %v4223
    %v4326 = vpop.f32.mrb[0].mxu0
    %v4327 = vadd.f32 0.0, %v4326
    %v4328 = vpop.f32.mrb[0].mxu0
    %4329 = vmatprep.mubr.f32.mxu0 0.0
    %4330 = vmatmul.mubr.f32.gmra.mrb[0].mxu0 %v4225
    %v4331 = vpop.f32.mrb[0].mxu0
    %v4332 = vadd.f32 0.0, %v4331
    %v4333 = vpop.f32.mrb[0].mxu0
    %4334 = vdwg.mxu0
    %v4335 = vadd.f32 %v4129, %v4297
    %v4336 = vadd.f32 %v4130, %v4302
    %v4337 = vadd.f32 %v4131, %v4307
    %v4338 = vadd.f32 %v4132, %v4312
    %v4339 = vadd.f32 %v4133, %v4317
    %v4340 = vadd.f32 %v4134, %v4322
    %v4341 = vadd.f32 %v4135, %v4327
    %v4342 = vadd.f32 %v4136, %v4332
    %s4343 = scalar_lea.vmem %s4, 56
    %v4344 = vld [vmem:[%s4343] sm:$0x3f]
    %v4345 = vcombine.low %v3296, %v3322
    %v4346 = vcombine.low %v861, %v869
    %v4348 = vunpack.c.l.s4 1966171168
    %v4349 = vunpack.c.0.s8 %v4348
    %v4350 = vlaneseq
    %v4351 = vshrl.u32 %v4350, 7
    %v4352 = vsub.s32 %v4349, %v4351
    %v4353 = vrot.slane %v4346, %v4352
    %v4354 = vcombine.low %v3917, %v4353
    %v4356 = vunpack.c.l.s4 1966171168
    %v4357 = vunpack.c.0.s8 %v4356
    %v4358 = vlaneseq
    %v4359 = vshrl.u32 %v4358, 7
    %v4360 = vsub.s32 %v4357, %v4359
    %v4361 = vrot.slane %v4354, %v4360
    %v4362 = vcombine.low %v3329, %v4361
    %v4363 = vcombine.low %v3362, %v3388
    %v4364 = vcombine.low %v1163, %v1165
    %v4366 = vunpack.c.l.s4 1966171168
    %v4367 = vunpack.c.0.s8 %v4366
    %v4368 = vlaneseq
    %v4369 = vshrl.u32 %v4368, 7
    %v4370 = vsub.s32 %v4367, %v4369
    %v4371 = vrot.slane %v4364, %v4370
    %v4372 = vcombine.low %v3943, %v4371
    %v4374 = vunpack.c.l.s4 1966171168
    %v4375 = vunpack.c.0.s8 %v4374
    %v4376 = vlaneseq
    %v4377 = vshrl.u32 %v4376, 7
    %v4378 = vsub.s32 %v4375, %v4377
    %v4379 = vrot.slane %v4372, %v4378
    %v4380 = vcombine.low %v3395, %v4379
    %v4381 = vcombine.low %v3428, %v3454
    %v4382 = vcombine.low %v1459, %v1442
    %v4384 = vunpack.c.l.s4 1966171168
    %v4385 = vunpack.c.0.s8 %v4384
    %v4386 = vlaneseq
    %v4387 = vshrl.u32 %v4386, 7
    %v4388 = vsub.s32 %v4385, %v4387
    %v4389 = vrot.slane %v4382, %v4388
    %v4390 = vcombine.low %v3969, %v4389
    %v4392 = vunpack.c.l.s4 1966171168
    %v4393 = vunpack.c.0.s8 %v4392
    %v4394 = vlaneseq
    %v4395 = vshrl.u32 %v4394, 7
    %v4396 = vsub.s32 %v4393, %v4395
    %v4397 = vrot.slane %v4390, %v4396
    %v4398 = vcombine.low %v3461, %v4397
    %v4399 = vcombine.low %v3494, %v3520
    %v4400 = vcombine.low %v1736, %v1750
    %v4402 = vunpack.c.l.s4 1966171168
    %v4403 = vunpack.c.0.s8 %v4402
    %v4404 = vlaneseq
    %v4405 = vshrl.u32 %v4404, 7
    %v4406 = vsub.s32 %v4403, %v4405
    %v4407 = vrot.slane %v4400, %v4406
    %v4408 = vcombine.low %v3995, %v4407
    %v4410 = vunpack.c.l.s4 1966171168
    %v4411 = vunpack.c.0.s8 %v4410
    %v4412 = vlaneseq
    %v4413 = vshrl.u32 %v4412, 7
    %v4414 = vsub.s32 %v4411, %v4413
    %v4415 = vrot.slane %v4408, %v4414
    %v4416 = vcombine.low %v3527, %v4415
    %v4417 = vsel %vm2223, %v4345, 0
    %v4419 = vsel %vm2223, %v4362, 0
    %v4421 = vsel %vm2223, %v4363, 0
    %v4423 = vsel %vm2223, %v4380, 0
    %v4425 = vsel %vm2223, %v4381, 0
    %v4427 = vsel %vm2223, %v4398, 0
    %v4429 = vsel %vm2223, %v4399, 0
    %v4431 = vsel %vm2223, %v4416, 0
    %v4434 = vsel %vm2240, %v4344, 0
    %4436 = vmatprep.subr.mxu0 0.0
    %4437 = vmatpush1.msra.mxu0 %v4434
    %4438 = vmatprep.subr.mxu0 0.0
    %4439 = vmatpush1.msra.mxu0 0.0
    %4440 = vmatprep.subr.mxu0 0.0
    %4441 = vmatpush1.msra.mxu0 0.0
    %4442 = vmatprep.subr.mxu0 0.0
    %4443 = vmatpush1.msra.mxu0 0.0
    %4444 = vmatprep.subr.mxu0 0.0
    %4445 = vmatpush1.msra.mxu0 0.0
    %4446 = vmatprep.subr.mxu0 0.0
    %4447 = vmatpush1.msra.mxu0 0.0
    %4448 = vmatprep.subr.mxu0 0.0
    %4449 = vmatpush1.msra.mxu0 0.0
    %4450 = vmatprep.subr.mxu0 0.0
    %4451 = vmatpush1.msra.mxu0 0.0
    %4452 = vmatprep.subr.mxu0 0.0
    %4453 = vmatpush1.msra.mxu0 0.0
    %4454 = vmatprep.subr.mxu0 0.0
    %4455 = vmatpush1.msra.mxu0 0.0
    %4456 = vmatprep.subr.mxu0 0.0
    %4457 = vmatpush1.msra.mxu0 0.0
    %4458 = vmatprep.subr.mxu0 0.0
    %4459 = vmatpush1.msra.mxu0 0.0
    %4460 = vmatprep.subr.mxu0 0.0
    %4461 = vmatpush1.msra.mxu0 0.0
    %4462 = vmatprep.subr.mxu0 0.0
    %4463 = vmatpush1.msra.mxu0 0.0
    %4464 = vmatprep.subr.mxu0 0.0
    %4465 = vmatpush1.msra.mxu0 0.0
    %4466 = vmatprep.subr.mxu0 0.0
    %4467 = vmatpush1.msra.mxu0 0.0
    %4468 = vmatprep.subr.mxu0 0.0
    %4469 = vmatpush1.msra.mxu0 0.0
    %4470 = vmatprep.subr.mxu0 0.0
    %4471 = vmatpush1.msra.mxu0 0.0
    %4472 = vmatprep.subr.mxu0 0.0
    %4473 = vmatpush1.msra.mxu0 0.0
    %4474 = vmatprep.subr.mxu0 0.0
    %4475 = vmatpush1.msra.mxu0 0.0
    %4476 = vmatprep.subr.mxu0 0.0
    %4477 = vmatpush1.msra.mxu0 0.0
    %4478 = vmatprep.subr.mxu0 0.0
    %4479 = vmatpush1.msra.mxu0 0.0
    %4480 = vmatprep.subr.mxu0 0.0
    %4481 = vmatpush1.msra.mxu0 0.0
    %4482 = vmatprep.subr.mxu0 0.0
    %4483 = vmatpush1.msra.mxu0 0.0
    %4484 = vmatprep.subr.mxu0 0.0
    %4485 = vmatpush1.msra.mxu0 0.0
    %4486 = vmatprep.subr.mxu0 0.0
    %4487 = vmatpush1.msra.mxu0 0.0
    %4488 = vmatprep.subr.mxu0 0.0
    %4489 = vmatpush1.msra.mxu0 0.0
    %4490 = vmatprep.subr.mxu0 0.0
    %4491 = vmatpush1.msra.mxu0 0.0
    %4492 = vmatprep.subr.mxu0 0.0
    %4493 = vmatpush1.msra.mxu0 0.0
    %4494 = vmatprep.subr.mxu0 0.0
    %4495 = vmatpush1.msra.mxu0 0.0
    %4496 = vmatprep.subr.mxu0 0.0
    %4497 = vmatpush1.msra.mxu0 0.0
    %4498 = vmatprep.subr.mxu0 0.0
    %4499 = vmatpush1.msra.mxu0 0.0
    %4500 = vmatprep.mubr.f32.mxu0 0.0
    %4501 = vmatmul.mubr.f32.gmra.mrb[0].mxu0 %v4417
    %v4502 = vpop.f32.mrb[0].mxu0
    %v4503 = vadd.f32 0.0, %v4502
    %v4504 = vpop.f32.mrb[0].mxu0
    %4505 = vmatprep.mubr.f32.mxu0 0.0
    %4506 = vmatmul.mubr.f32.gmra.mrb[0].mxu0 %v4419
    %v4507 = vpop.f32.mrb[0].mxu0
    %v4508 = vadd.f32 0.0, %v4507
    %v4509 = vpop.f32.mrb[0].mxu0
    %4510 = vmatprep.mubr.f32.mxu0 0.0
    %4511 = vmatmul.mubr.f32.gmra.mrb[0].mxu0 %v4421
    %v4512 = vpop.f32.mrb[0].mxu0
    %v4513 = vadd.f32 0.0, %v4512
    %v4514 = vpop.f32.mrb[0].mxu0
    %4515 = vmatprep.mubr.f32.mxu0 0.0
    %4516 = vmatmul.mubr.f32.gmra.mrb[0].mxu0 %v4423
    %v4517 = vpop.f32.mrb[0].mxu0
    %v4518 = vadd.f32 0.0, %v4517
    %v4519 = vpop.f32.mrb[0].mxu0
    %4520 = vmatprep.mubr.f32.mxu0 0.0
    %4521 = vmatmul.mubr.f32.gmra.mrb[0].mxu0 %v4425
    %v4522 = vpop.f32.mrb[0].mxu0
    %v4523 = vadd.f32 0.0, %v4522
    %v4524 = vpop.f32.mrb[0].mxu0
    %4525 = vmatprep.mubr.f32.mxu0 0.0
    %4526 = vmatmul.mubr.f32.gmra.mrb[0].mxu0 %v4427
    %v4527 = vpop.f32.mrb[0].mxu0
    %v4528 = vadd.f32 0.0, %v4527
    %v4529 = vpop.f32.mrb[0].mxu0
    %4530 = vmatprep.mubr.f32.mxu0 0.0
    %4531 = vmatmul.mubr.f32.gmra.mrb[0].mxu0 %v4429
    %v4532 = vpop.f32.mrb[0].mxu0
    %v4533 = vadd.f32 0.0, %v4532
    %v4534 = vpop.f32.mrb[0].mxu0
    %4535 = vmatprep.mubr.f32.mxu0 0.0
    %4536 = vmatmul.mubr.f32.gmra.mrb[0].mxu0 %v4431
    %v4537 = vpop.f32.mrb[0].mxu0
    %v4538 = vadd.f32 0.0, %v4537
    %v4539 = vpop.f32.mrb[0].mxu0
    %4540 = vdwg.mxu0
    %v4541 = vadd.f32 %v4335, %v4503
    %v4542 = vadd.f32 %v4336, %v4508
    %v4543 = vadd.f32 %v4337, %v4513
    %v4544 = vadd.f32 %v4338, %v4518
    %v4545 = vadd.f32 %v4339, %v4523
    %v4546 = vadd.f32 %v4340, %v4528
    %v4547 = vadd.f32 %v4341, %v4533
    %v4548 = vadd.f32 %v4342, %v4538
    %s4549 = scalar_lea.vmem %s4, 64
    %v4550 = vld [vmem:[%s4549] sm:$0x3f]
    %v4551 = vcombine.low %v871, %v854
    %v4552 = vcombine.low %v868, %v870
    %v4554 = vunpack.c.l.s4 1966171168
    %v4555 = vunpack.c.0.s8 %v4554
    %v4556 = vlaneseq
    %v4557 = vshrl.u32 %v4556, 7
    %v4558 = vsub.s32 %v4555, %v4557
    %v4559 = vrot.slane %v4551, %v4558
    %v4561 = vunpack.c.l.s4 1966171168
    %v4562 = vunpack.c.0.s8 %v4561
    %v4563 = vlaneseq
    %v4564 = vshrl.u32 %v4563, 7
    %v4565 = vsub.s32 %v4562, %v4564
    %v4566 = vrot.slane %v4552, %v4565
    %v4567 = vcombine.low %v4559, %v4566
    %v4569 = vunpack.c.l.s4 1966171168
    %v4570 = vunpack.c.0.s8 %v4569
    %v4571 = vlaneseq
    %v4572 = vshrl.u32 %v4571, 7
    %v4573 = vsub.s32 %v4570, %v4572
    %v4574 = vrot.slane %v4567, %v4573
    %v4575 = vcombine.low %v3687, %v4574
    %v4576 = vcombine.low %v1148, %v1162
    %v4577 = vcombine.low %v1164, %v1166
    %v4579 = vunpack.c.l.s4 1966171168
    %v4580 = vunpack.c.0.s8 %v4579
    %v4581 = vlaneseq
    %v4582 = vshrl.u32 %v4581, 7
    %v4583 = vsub.s32 %v4580, %v4582
    %v4584 = vrot.slane %v4576, %v4583
    %v4586 = vunpack.c.l.s4 1966171168
    %v4587 = vunpack.c.0.s8 %v4586
    %v4588 = vlaneseq
    %v4589 = vshrl.u32 %v4588, 7
    %v4590 = vsub.s32 %v4587, %v4589
    %v4591 = vrot.slane %v4577, %v4590
    %v4592 = vcombine.low %v4584, %v4591
    %v4594 = vunpack.c.l.s4 1966171168
    %v4595 = vunpack.c.0.s8 %v4594
    %v4596 = vlaneseq
    %v4597 = vshrl.u32 %v4596, 7
    %v4598 = vsub.s32 %v4595, %v4597
    %v4599 = vrot.slane %v4592, %v4598
    %v4600 = vcombine.low %v3713, %v4599
    %v4601 = vcombine.low %v1456, %v1458
    %v4602 = vcombine.low %v1460, %v1484
    %v4604 = vunpack.c.l.s4 1966171168
    %v4605 = vunpack.c.0.s8 %v4604
    %v4606 = vlaneseq
    %v4607 = vshrl.u32 %v4606, 7
    %v4608 = vsub.s32 %v4605, %v4607
    %v4609 = vrot.slane %v4601, %v4608
    %v4611 = vunpack.c.l.s4 1966171168
    %v4612 = vunpack.c.0.s8 %v4611
    %v4613 = vlaneseq
    %v4614 = vshrl.u32 %v4613, 7
    %v4615 = vsub.s32 %v4612, %v4614
    %v4616 = vrot.slane %v4602, %v4615
    %v4617 = vcombine.low %v4609, %v4616
    %v4619 = vunpack.c.l.s4 1966171168
    %v4620 = vunpack.c.0.s8 %v4619
    %v4621 = vlaneseq
    %v4622 = vshrl.u32 %v4621, 7
    %v4623 = vsub.s32 %v4620, %v4622
    %v4624 = vrot.slane %v4617, %v4623
    %v4625 = vcombine.low %v3739, %v4624
    %v4626 = vcombine.low %v1752, %v1754
    %v4627 = vcombine.low %v1778, %v1792
    %v4629 = vunpack.c.l.s4 1966171168
    %v4630 = vunpack.c.0.s8 %v4629
    %v4631 = vlaneseq
    %v4632 = vshrl.u32 %v4631, 7
    %v4633 = vsub.s32 %v4630, %v4632
    %v4634 = vrot.slane %v4626, %v4633
    %v4636 = vunpack.c.l.s4 1966171168
    %v4637 = vunpack.c.0.s8 %v4636
    %v4638 = vlaneseq
    %v4639 = vshrl.u32 %v4638, 7
    %v4640 = vsub.s32 %v4637, %v4639
    %v4641 = vrot.slane %v4627, %v4640
    %v4642 = vcombine.low %v4634, %v4641
    %v4644 = vunpack.c.l.s4 1966171168
    %v4645 = vunpack.c.0.s8 %v4644
    %v4646 = vlaneseq
    %v4647 = vshrl.u32 %v4646, 7
    %v4648 = vsub.s32 %v4645, %v4647
    %v4649 = vrot.slane %v4642, %v4648
    %v4650 = vcombine.low %v3765, %v4649
    %v4651 = vsel %vm2223, %v4575, 0
    %v4653 = vsel %vm2223, %v4600, 0
    %v4655 = vsel %vm2223, %v4625, 0
    %v4657 = vsel %vm2223, %v4650, 0
    %v4660 = vsel %vm2240, %v4550, 0
    %4662 = vmatprep.subr.mxu0 0.0
    %4663 = vmatpush1.msra.mxu0 %v4660
    %4664 = vmatprep.subr.mxu0 0.0
    %4665 = vmatpush1.msra.mxu0 0.0
    %4666 = vmatprep.subr.mxu0 0.0
    %4667 = vmatpush1.msra.mxu0 0.0
    %4668 = vmatprep.subr.mxu0 0.0
    %4669 = vmatpush1.msra.mxu0 0.0
    %4670 = vmatprep.subr.mxu0 0.0
    %4671 = vmatpush1.msra.mxu0 0.0
    %4672 = vmatprep.subr.mxu0 0.0
    %4673 = vmatpush1.msra.mxu0 0.0
    %4674 = vmatprep.subr.mxu0 0.0
    %4675 = vmatpush1.msra.mxu0 0.0
    %4676 = vmatprep.subr.mxu0 0.0
    %4677 = vmatpush1.msra.mxu0 0.0
    %4678 = vmatprep.subr.mxu0 0.0
    %4679 = vmatpush1.msra.mxu0 0.0
    %4680 = vmatprep.subr.mxu0 0.0
    %4681 = vmatpush1.msra.mxu0 0.0
    %4682 = vmatprep.subr.mxu0 0.0
    %4683 = vmatpush1.msra.mxu0 0.0
    %4684 = vmatprep.subr.mxu0 0.0
    %4685 = vmatpush1.msra.mxu0 0.0
    %4686 = vmatprep.subr.mxu0 0.0
    %4687 = vmatpush1.msra.mxu0 0.0
    %4688 = vmatprep.subr.mxu0 0.0
    %4689 = vmatpush1.msra.mxu0 0.0
    %4690 = vmatprep.subr.mxu0 0.0
    %4691 = vmatpush1.msra.mxu0 0.0
    %4692 = vmatprep.subr.mxu0 0.0
    %4693 = vmatpush1.msra.mxu0 0.0
    %4694 = vmatprep.subr.mxu0 0.0
    %4695 = vmatpush1.msra.mxu0 0.0
    %4696 = vmatprep.subr.mxu0 0.0
    %4697 = vmatpush1.msra.mxu0 0.0
    %4698 = vmatprep.subr.mxu0 0.0
    %4699 = vmatpush1.msra.mxu0 0.0
    %4700 = vmatprep.subr.mxu0 0.0
    %4701 = vmatpush1.msra.mxu0 0.0
    %4702 = vmatprep.subr.mxu0 0.0
    %4703 = vmatpush1.msra.mxu0 0.0
    %4704 = vmatprep.subr.mxu0 0.0
    %4705 = vmatpush1.msra.mxu0 0.0
    %4706 = vmatprep.subr.mxu0 0.0
    %4707 = vmatpush1.msra.mxu0 0.0
    %4708 = vmatprep.subr.mxu0 0.0
    %4709 = vmatpush1.msra.mxu0 0.0
    %4710 = vmatprep.subr.mxu0 0.0
    %4711 = vmatpush1.msra.mxu0 0.0
    %4712 = vmatprep.subr.mxu0 0.0
    %4713 = vmatpush1.msra.mxu0 0.0
    %4714 = vmatprep.subr.mxu0 0.0
    %4715 = vmatpush1.msra.mxu0 0.0
    %4716 = vmatprep.subr.mxu0 0.0
    %4717 = vmatpush1.msra.mxu0 0.0
    %4718 = vmatprep.subr.mxu0 0.0
    %4719 = vmatpush1.msra.mxu0 0.0
    %4720 = vmatprep.subr.mxu0 0.0
    %4721 = vmatpush1.msra.mxu0 0.0
    %4722 = vmatprep.subr.mxu0 0.0
    %4723 = vmatpush1.msra.mxu0 0.0
    %4724 = vmatprep.subr.mxu0 0.0
    %4725 = vmatpush1.msra.mxu0 0.0
    %4726 = vmatprep.mubr.f32.mxu0 0.0
    %4727 = vmatmul.mubr.f32.gmra.mrb[0].mxu0 %v2743
    %v4728 = vpop.f32.mrb[0].mxu0
    %v4729 = vadd.f32 0.0, %v4728
    %v4730 = vpop.f32.mrb[0].mxu0
    %4731 = vmatprep.mubr.f32.mxu0 0.0
    %4732 = vmatmul.mubr.f32.gmra.mrb[0].mxu0 %v4651
    %v4733 = vpop.f32.mrb[0].mxu0
    %v4734 = vadd.f32 0.0, %v4733
    %v4735 = vpop.f32.mrb[0].mxu0
    %4736 = vmatprep.mubr.f32.mxu0 0.0
    %4737 = vmatmul.mubr.f32.gmra.mrb[0].mxu0 %v2747
    %v4738 = vpop.f32.mrb[0].mxu0
    %v4739 = vadd.f32 0.0, %v4738
    %v4740 = vpop.f32.mrb[0].mxu0
    %4741 = vmatprep.mubr.f32.mxu0 0.0
    %4742 = vmatmul.mubr.f32.gmra.mrb[0].mxu0 %v4653
    %v4743 = vpop.f32.mrb[0].mxu0
    %v4744 = vadd.f32 0.0, %v4743
    %v4745 = vpop.f32.mrb[0].mxu0
    %4746 = vmatprep.mubr.f32.mxu0 0.0
    %4747 = vmatmul.mubr.f32.gmra.mrb[0].mxu0 %v2751
    %v4748 = vpop.f32.mrb[0].mxu0
    %v4749 = vadd.f32 0.0, %v4748
    %v4750 = vpop.f32.mrb[0].mxu0
    %4751 = vmatprep.mubr.f32.mxu0 0.0
    %4752 = vmatmul.mubr.f32.gmra.mrb[0].mxu0 %v4655
    %v4753 = vpop.f32.mrb[0].mxu0
    %v4754 = vadd.f32 0.0, %v4753
    %v4755 = vpop.f32.mrb[0].mxu0
    %4756 = vmatprep.mubr.f32.mxu0 0.0
    %4757 = vmatmul.mubr.f32.gmra.mrb[0].mxu0 %v2755
    %v4758 = vpop.f32.mrb[0].mxu0
    %v4759 = vadd.f32 0.0, %v4758
    %v4760 = vpop.f32.mrb[0].mxu0
    %4761 = vmatprep.mubr.f32.mxu0 0.0
    %4762 = vmatmul.mubr.f32.gmra.mrb[0].mxu0 %v4657
    %v4763 = vpop.f32.mrb[0].mxu0
    %v4764 = vadd.f32 0.0, %v4763
    %v4765 = vpop.f32.mrb[0].mxu0
    %4766 = vdwg.mxu0
    %v4767 = vadd.f32 %v4541, %v4729
    %v4768 = vadd.f32 %v4542, %v4734
    %v4769 = vadd.f32 %v4543, %v4739
    %v4770 = vadd.f32 %v4544, %v4744
    %v4771 = vadd.f32 %v4545, %v4749
    %v4772 = vadd.f32 %v4546, %v4754
    %v4773 = vadd.f32 %v4547, %v4759
    %v4774 = vadd.f32 %v4548, %v4764
    %s4775 = scalar_lea.vmem %s4, 72
    %v4776 = vld [vmem:[%s4775] sm:$0x3f]
    %v4777 = vcombine.low %v854, %v868
    %v4778 = vcombine.low %v870, %v872
    %v4780 = vunpack.c.l.s4 1966171168
    %v4781 = vunpack.c.0.s8 %v4780
    %v4782 = vlaneseq
    %v4783 = vshrl.u32 %v4782, 7
    %v4784 = vsub.s32 %v4781, %v4783
    %v4785 = vrot.slane %v4777, %v4784
    %v4787 = vunpack.c.l.s4 1966171168
    %v4788 = vunpack.c.0.s8 %v4787
    %v4789 = vlaneseq
    %v4790 = vshrl.u32 %v4789, 7
    %v4791 = vsub.s32 %v4788, %v4790
    %v4792 = vrot.slane %v4778, %v4791
    %v4793 = vcombine.low %v4785, %v4792
    %v4795 = vunpack.c.l.s4 1966171168
    %v4796 = vunpack.c.0.s8 %v4795
    %v4797 = vlaneseq
    %v4798 = vshrl.u32 %v4797, 7
    %v4799 = vsub.s32 %v4796, %v4798
    %v4800 = vrot.slane %v4793, %v4799
    %v4801 = vcombine.low %v3925, %v4800
    %v4802 = vcombine.low %v1162, %v1164
    %v4803 = vcombine.low %v1166, %v1190
    %v4805 = vunpack.c.l.s4 1966171168
    %v4806 = vunpack.c.0.s8 %v4805
    %v4807 = vlaneseq
    %v4808 = vshrl.u32 %v4807, 7
    %v4809 = vsub.s32 %v4806, %v4808
    %v4810 = vrot.slane %v4802, %v4809
    %v4812 = vunpack.c.l.s4 1966171168
    %v4813 = vunpack.c.0.s8 %v4812
    %v4814 = vlaneseq
    %v4815 = vshrl.u32 %v4814, 7
    %v4816 = vsub.s32 %v4813, %v4815
    %v4817 = vrot.slane %v4803, %v4816
    %v4818 = vcombine.low %v4810, %v4817
    %v4820 = vunpack.c.l.s4 1966171168
    %v4821 = vunpack.c.0.s8 %v4820
    %v4822 = vlaneseq
    %v4823 = vshrl.u32 %v4822, 7
    %v4824 = vsub.s32 %v4821, %v4823
    %v4825 = vrot.slane %v4818, %v4824
    %v4826 = vcombine.low %v3951, %v4825
    %v4827 = vcombine.low %v1458, %v1460
    %v4828 = vcombine.low %v1484, %v1498
    %v4830 = vunpack.c.l.s4 1966171168
    %v4831 = vunpack.c.0.s8 %v4830
    %v4832 = vlaneseq
    %v4833 = vshrl.u32 %v4832, 7
    %v4834 = vsub.s32 %v4831, %v4833
    %v4835 = vrot.slane %v4827, %v4834
    %v4837 = vunpack.c.l.s4 1966171168
    %v4838 = vunpack.c.0.s8 %v4837
    %v4839 = vlaneseq
    %v4840 = vshrl.u32 %v4839, 7
    %v4841 = vsub.s32 %v4838, %v4840
    %v4842 = vrot.slane %v4828, %v4841
    %v4843 = vcombine.low %v4835, %v4842
    %v4845 = vunpack.c.l.s4 1966171168
    %v4846 = vunpack.c.0.s8 %v4845
    %v4847 = vlaneseq
    %v4848 = vshrl.u32 %v4847, 7
    %v4849 = vsub.s32 %v4846, %v4848
    %v4850 = vrot.slane %v4843, %v4849
    %v4851 = vcombine.low %v3977, %v4850
    %v4852 = vcombine.low %v1754, %v1778
    %v4853 = vcombine.low %v1792, %v1800
    %v4855 = vunpack.c.l.s4 1966171168
    %v4856 = vunpack.c.0.s8 %v4855
    %v4857 = vlaneseq
    %v4858 = vshrl.u32 %v4857, 7
    %v4859 = vsub.s32 %v4856, %v4858
    %v4860 = vrot.slane %v4852, %v4859
    %v4862 = vunpack.c.l.s4 1966171168
    %v4863 = vunpack.c.0.s8 %v4862
    %v4864 = vlaneseq
    %v4865 = vshrl.u32 %v4864, 7
    %v4866 = vsub.s32 %v4863, %v4865
    %v4867 = vrot.slane %v4853, %v4866
    %v4868 = vcombine.low %v4860, %v4867
    %v4870 = vunpack.c.l.s4 1966171168
    %v4871 = vunpack.c.0.s8 %v4870
    %v4872 = vlaneseq
    %v4873 = vshrl.u32 %v4872, 7
    %v4874 = vsub.s32 %v4871, %v4873
    %v4875 = vrot.slane %v4868, %v4874
    %v4876 = vcombine.low %v4003, %v4875
    %v4877 = vsel %vm2223, %v4801, 0
    %v4879 = vsel %vm2223, %v4826, 0
    %v4881 = vsel %vm2223, %v4851, 0
    %v4883 = vsel %vm2223, %v4876, 0
    %v4886 = vsel %vm2240, %v4776, 0
    %4888 = vmatprep.subr.mxu0 0.0
    %4889 = vmatpush1.msra.mxu0 %v4886
    %4890 = vmatprep.subr.mxu0 0.0
    %4891 = vmatpush1.msra.mxu0 0.0
    %4892 = vmatprep.subr.mxu0 0.0
    %4893 = vmatpush1.msra.mxu0 0.0
    %4894 = vmatprep.subr.mxu0 0.0
    %4895 = vmatpush1.msra.mxu0 0.0
    %4896 = vmatprep.subr.mxu0 0.0
    %4897 = vmatpush1.msra.mxu0 0.0
    %4898 = vmatprep.subr.mxu0 0.0
    %4899 = vmatpush1.msra.mxu0 0.0
    %4900 = vmatprep.subr.mxu0 0.0
    %4901 = vmatpush1.msra.mxu0 0.0
    %4902 = vmatprep.subr.mxu0 0.0
    %4903 = vmatpush1.msra.mxu0 0.0
    %4904 = vmatprep.subr.mxu0 0.0
    %4905 = vmatpush1.msra.mxu0 0.0
    %4906 = vmatprep.subr.mxu0 0.0
    %4907 = vmatpush1.msra.mxu0 0.0
    %4908 = vmatprep.subr.mxu0 0.0
    %4909 = vmatpush1.msra.mxu0 0.0
    %4910 = vmatprep.subr.mxu0 0.0
    %4911 = vmatpush1.msra.mxu0 0.0
    %4912 = vmatprep.subr.mxu0 0.0
    %4913 = vmatpush1.msra.mxu0 0.0
    %4914 = vmatprep.subr.mxu0 0.0
    %4915 = vmatpush1.msra.mxu0 0.0
    %4916 = vmatprep.subr.mxu0 0.0
    %4917 = vmatpush1.msra.mxu0 0.0
    %4918 = vmatprep.subr.mxu0 0.0
    %4919 = vmatpush1.msra.mxu0 0.0
    %4920 = vmatprep.subr.mxu0 0.0
    %4921 = vmatpush1.msra.mxu0 0.0
    %4922 = vmatprep.subr.mxu0 0.0
    %4923 = vmatpush1.msra.mxu0 0.0
    %4924 = vmatprep.subr.mxu0 0.0
    %4925 = vmatpush1.msra.mxu0 0.0
    %4926 = vmatprep.subr.mxu0 0.0
    %4927 = vmatpush1.msra.mxu0 0.0
    %4928 = vmatprep.subr.mxu0 0.0
    %4929 = vmatpush1.msra.mxu0 0.0
    %4930 = vmatprep.subr.mxu0 0.0
    %4931 = vmatpush1.msra.mxu0 0.0
    %4932 = vmatprep.subr.mxu0 0.0
    %4933 = vmatpush1.msra.mxu0 0.0
    %4934 = vmatprep.subr.mxu0 0.0
    %4935 = vmatpush1.msra.mxu0 0.0
    %4936 = vmatprep.subr.mxu0 0.0
    %4937 = vmatpush1.msra.mxu0 0.0
    %4938 = vmatprep.subr.mxu0 0.0
    %4939 = vmatpush1.msra.mxu0 0.0
    %4940 = vmatprep.subr.mxu0 0.0
    %4941 = vmatpush1.msra.mxu0 0.0
    %4942 = vmatprep.subr.mxu0 0.0
    %4943 = vmatpush1.msra.mxu0 0.0
    %4944 = vmatprep.subr.mxu0 0.0
    %4945 = vmatpush1.msra.mxu0 0.0
    %4946 = vmatprep.subr.mxu0 0.0
    %4947 = vmatpush1.msra.mxu0 0.0
    %4948 = vmatprep.subr.mxu0 0.0
    %4949 = vmatpush1.msra.mxu0 0.0
    %4950 = vmatprep.subr.mxu0 0.0
    %4951 = vmatpush1.msra.mxu0 0.0
    %4952 = vmatprep.mubr.f32.mxu0 0.0
    %4953 = vmatmul.mubr.f32.gmra.mrb[0].mxu0 %v2226
    %v4954 = vpop.f32.mrb[0].mxu0
    %v4955 = vadd.f32 0.0, %v4954
    %v4956 = vpop.f32.mrb[0].mxu0
    %4957 = vmatprep.mubr.f32.mxu0 0.0
    %4958 = vmatmul.mubr.f32.gmra.mrb[0].mxu0 %v4877
    %v4959 = vpop.f32.mrb[0].mxu0
    %v4960 = vadd.f32 0.0, %v4959
    %v4961 = vpop.f32.mrb[0].mxu0
    %4962 = vmatprep.mubr.f32.mxu0 0.0
    %4963 = vmatmul.mubr.f32.gmra.mrb[0].mxu0 %v2230
    %v4964 = vpop.f32.mrb[0].mxu0
    %v4965 = vadd.f32 0.0, %v4964
    %v4966 = vpop.f32.mrb[0].mxu0
    %4967 = vmatprep.mubr.f32.mxu0 0.0
    %4968 = vmatmul.mubr.f32.gmra.mrb[0].mxu0 %v4879
    %v4969 = vpop.f32.mrb[0].mxu0
    %v4970 = vadd.f32 0.0, %v4969
    %v4971 = vpop.f32.mrb[0].mxu0
    %4972 = vmatprep.mubr.f32.mxu0 0.0
    %4973 = vmatmul.mubr.f32.gmra.mrb[0].mxu0 %v2234
    %v4974 = vpop.f32.mrb[0].mxu0
    %v4975 = vadd.f32 0.0, %v4974
    %v4976 = vpop.f32.mrb[0].mxu0
    %4977 = vmatprep.mubr.f32.mxu0 0.0
    %4978 = vmatmul.mubr.f32.gmra.mrb[0].mxu0 %v4881
    %v4979 = vpop.f32.mrb[0].mxu0
    %v4980 = vadd.f32 0.0, %v4979
    %v4981 = vpop.f32.mrb[0].mxu0
    %4982 = vmatprep.mubr.f32.mxu0 0.0
    %4983 = vmatmul.mubr.f32.gmra.mrb[0].mxu0 %v2238
    %v4984 = vpop.f32.mrb[0].mxu0
    %v4985 = vadd.f32 0.0, %v4984
    %v4986 = vpop.f32.mrb[0].mxu0
    %4987 = vmatprep.mubr.f32.mxu0 0.0
    %4988 = vmatmul.mubr.f32.gmra.mrb[0].mxu0 %v4883
    %v4989 = vpop.f32.mrb[0].mxu0
    %v4990 = vadd.f32 0.0, %v4989
    %v4991 = vpop.f32.mrb[0].mxu0
    %4992 = vdwg.mxu0
    %v4993 = vadd.f32 %v4767, %v4955
    %v4994 = vadd.f32 %v4768, %v4960
    %v4995 = vadd.f32 %v4769, %v4965
    %v4996 = vadd.f32 %v4770, %v4970
    %v4997 = vadd.f32 %v4771, %v4975
    %v4998 = vadd.f32 %v4772, %v4980
    %v4999 = vadd.f32 %v4773, %v4985
    %v5000 = vadd.f32 %v4774, %v4990
    %s5001 = scalar_lea.vmem %s4, 80
    %v5002 = vld [vmem:[%s5001] sm:$0x3f]
    %v5003 = vcombine.low %v872, %v896
    %v5005 = vunpack.c.l.s4 1966171168
    %v5006 = vunpack.c.0.s8 %v5005
    %v5007 = vlaneseq
    %v5008 = vshrl.u32 %v5007, 7
    %v5009 = vsub.s32 %v5006, %v5008
    %v5010 = vrot.slane %v5003, %v5009
    %v5011 = vcombine.low %v4566, %v5010
    %v5013 = vunpack.c.l.s4 1966171168
    %v5014 = vunpack.c.0.s8 %v5013
    %v5015 = vlaneseq
    %v5016 = vshrl.u32 %v5015, 7
    %v5017 = vsub.s32 %v5014, %v5016
    %v5018 = vrot.slane %v5011, %v5017
    %v5019 = vcombine.low %v4155, %v5018
    %v5020 = vcombine.low %v1190, %v1204
    %v5022 = vunpack.c.l.s4 1966171168
    %v5023 = vunpack.c.0.s8 %v5022
    %v5024 = vlaneseq
    %v5025 = vshrl.u32 %v5024, 7
    %v5026 = vsub.s32 %v5023, %v5025
    %v5027 = vrot.slane %v5020, %v5026
    %v5028 = vcombine.low %v4591, %v5027
    %v5030 = vunpack.c.l.s4 1966171168
    %v5031 = vunpack.c.0.s8 %v5030
    %v5032 = vlaneseq
    %v5033 = vshrl.u32 %v5032, 7
    %v5034 = vsub.s32 %v5031, %v5033
    %v5035 = vrot.slane %v5028, %v5034
    %v5036 = vcombine.low %v4173, %v5035
    %v5037 = vcombine.low %v1498, %v1506
    %v5039 = vunpack.c.l.s4 1966171168
    %v5040 = vunpack.c.0.s8 %v5039
    %v5041 = vlaneseq
    %v5042 = vshrl.u32 %v5041, 7
    %v5043 = vsub.s32 %v5040, %v5042
    %v5044 = vrot.slane %v5037, %v5043
    %v5045 = vcombine.low %v4616, %v5044
    %v5047 = vunpack.c.l.s4 1966171168
    %v5048 = vunpack.c.0.s8 %v5047
    %v5049 = vlaneseq
    %v5050 = vshrl.u32 %v5049, 7
    %v5051 = vsub.s32 %v5048, %v5050
    %v5052 = vrot.slane %v5045, %v5051
    %v5053 = vcombine.low %v4191, %v5052
    %v5054 = vcombine.low %v1800, %v1802
    %v5056 = vunpack.c.l.s4 1966171168
    %v5057 = vunpack.c.0.s8 %v5056
    %v5058 = vlaneseq
    %v5059 = vshrl.u32 %v5058, 7
    %v5060 = vsub.s32 %v5057, %v5059
    %v5061 = vrot.slane %v5054, %v5060
    %v5062 = vcombine.low %v4641, %v5061
    %v5064 = vunpack.c.l.s4 1966171168
    %v5065 = vunpack.c.0.s8 %v5064
    %v5066 = vlaneseq
    %v5067 = vshrl.u32 %v5066, 7
    %v5068 = vsub.s32 %v5065, %v5067
    %v5069 = vrot.slane %v5062, %v5068
    %v5070 = vcombine.low %v4209, %v5069
    %v5071 = vsel %vm2223, %v5019, 0
    %v5073 = vsel %vm2223, %v5036, 0
    %v5075 = vsel %vm2223, %v5053, 0
    %v5077 = vsel %vm2223, %v5070, 0
    %v5080 = vsel %vm2240, %v5002, 0
    %5082 = vmatprep.subr.mxu0 0.0
    %5083 = vmatpush1.msra.mxu0 %v5080
    %5084 = vmatprep.subr.mxu0 0.0
    %5085 = vmatpush1.msra.mxu0 0.0
    %5086 = vmatprep.subr.mxu0 0.0
    %5087 = vmatpush1.msra.mxu0 0.0
    %5088 = vmatprep.subr.mxu0 0.0
    %5089 = vmatpush1.msra.mxu0 0.0
    %5090 = vmatprep.subr.mxu0 0.0
    %5091 = vmatpush1.msra.mxu0 0.0
    %5092 = vmatprep.subr.mxu0 0.0
    %5093 = vmatpush1.msra.mxu0 0.0
    %5094 = vmatprep.subr.mxu0 0.0
    %5095 = vmatpush1.msra.mxu0 0.0
    %5096 = vmatprep.subr.mxu0 0.0
    %5097 = vmatpush1.msra.mxu0 0.0
    %5098 = vmatprep.subr.mxu0 0.0
    %5099 = vmatpush1.msra.mxu0 0.0
    %5100 = vmatprep.subr.mxu0 0.0
    %5101 = vmatpush1.msra.mxu0 0.0
    %5102 = vmatprep.subr.mxu0 0.0
    %5103 = vmatpush1.msra.mxu0 0.0
    %5104 = vmatprep.subr.mxu0 0.0
    %5105 = vmatpush1.msra.mxu0 0.0
    %5106 = vmatprep.subr.mxu0 0.0
    %5107 = vmatpush1.msra.mxu0 0.0
    %5108 = vmatprep.subr.mxu0 0.0
    %5109 = vmatpush1.msra.mxu0 0.0
    %5110 = vmatprep.subr.mxu0 0.0
    %5111 = vmatpush1.msra.mxu0 0.0
    %5112 = vmatprep.subr.mxu0 0.0
    %5113 = vmatpush1.msra.mxu0 0.0
    %5114 = vmatprep.subr.mxu0 0.0
    %5115 = vmatpush1.msra.mxu0 0.0
    %5116 = vmatprep.subr.mxu0 0.0
    %5117 = vmatpush1.msra.mxu0 0.0
    %5118 = vmatprep.subr.mxu0 0.0
    %5119 = vmatpush1.msra.mxu0 0.0
    %5120 = vmatprep.subr.mxu0 0.0
    %5121 = vmatpush1.msra.mxu0 0.0
    %5122 = vmatprep.subr.mxu0 0.0
    %5123 = vmatpush1.msra.mxu0 0.0
    %5124 = vmatprep.subr.mxu0 0.0
    %5125 = vmatpush1.msra.mxu0 0.0
    %5126 = vmatprep.subr.mxu0 0.0
    %5127 = vmatpush1.msra.mxu0 0.0
    %5128 = vmatprep.subr.mxu0 0.0
    %5129 = vmatpush1.msra.mxu0 0.0
    %5130 = vmatprep.subr.mxu0 0.0
    %5131 = vmatpush1.msra.mxu0 0.0
    %5132 = vmatprep.subr.mxu0 0.0
    %5133 = vmatpush1.msra.mxu0 0.0
    %5134 = vmatprep.subr.mxu0 0.0
    %5135 = vmatpush1.msra.mxu0 0.0
    %5136 = vmatprep.subr.mxu0 0.0
    %5137 = vmatpush1.msra.mxu0 0.0
    %5138 = vmatprep.subr.mxu0 0.0
    %5139 = vmatpush1.msra.mxu0 0.0
    %5140 = vmatprep.subr.mxu0 0.0
    %5141 = vmatpush1.msra.mxu0 0.0
    %5142 = vmatprep.subr.mxu0 0.0
    %5143 = vmatpush1.msra.mxu0 0.0
    %5144 = vmatprep.subr.mxu0 0.0
    %5145 = vmatpush1.msra.mxu0 0.0
    %5146 = vmatprep.mubr.f32.mxu0 0.0
    %5147 = vmatmul.mubr.f32.gmra.mrb[0].mxu0 %v3133
    %v5148 = vpop.f32.mrb[0].mxu0
    %v5149 = vadd.f32 0.0, %v5148
    %v5150 = vpop.f32.mrb[0].mxu0
    %5151 = vmatprep.mubr.f32.mxu0 0.0
    %5152 = vmatmul.mubr.f32.gmra.mrb[0].mxu0 %v5071
    %v5153 = vpop.f32.mrb[0].mxu0
    %v5154 = vadd.f32 0.0, %v5153
    %v5155 = vpop.f32.mrb[0].mxu0
    %5156 = vmatprep.mubr.f32.mxu0 0.0
    %5157 = vmatmul.mubr.f32.gmra.mrb[0].mxu0 %v3137
    %v5158 = vpop.f32.mrb[0].mxu0
    %v5159 = vadd.f32 0.0, %v5158
    %v5160 = vpop.f32.mrb[0].mxu0
    %5161 = vmatprep.mubr.f32.mxu0 0.0
    %5162 = vmatmul.mubr.f32.gmra.mrb[0].mxu0 %v5073
    %v5163 = vpop.f32.mrb[0].mxu0
    %v5164 = vadd.f32 0.0, %v5163
    %v5165 = vpop.f32.mrb[0].mxu0
    %5166 = vmatprep.mubr.f32.mxu0 0.0
    %5167 = vmatmul.mubr.f32.gmra.mrb[0].mxu0 %v3141
    %v5168 = vpop.f32.mrb[0].mxu0
    %v5169 = vadd.f32 0.0, %v5168
    %v5170 = vpop.f32.mrb[0].mxu0
    %5171 = vmatprep.mubr.f32.mxu0 0.0
    %5172 = vmatmul.mubr.f32.gmra.mrb[0].mxu0 %v5075
    %v5173 = vpop.f32.mrb[0].mxu0
    %v5174 = vadd.f32 0.0, %v5173
    %v5175 = vpop.f32.mrb[0].mxu0
    %5176 = vmatprep.mubr.f32.mxu0 0.0
    %5177 = vmatmul.mubr.f32.gmra.mrb[0].mxu0 %v3145
    %v5178 = vpop.f32.mrb[0].mxu0
    %v5179 = vadd.f32 0.0, %v5178
    %v5180 = vpop.f32.mrb[0].mxu0
    %5181 = vmatprep.mubr.f32.mxu0 0.0
    %5182 = vmatmul.mubr.f32.gmra.mrb[0].mxu0 %v5077
    %v5183 = vpop.f32.mrb[0].mxu0
    %v5184 = vadd.f32 0.0, %v5183
    %v5185 = vpop.f32.mrb[0].mxu0
    %5186 = vdwg.mxu0
    %v5187 = vadd.f32 %v4993, %v5149
    %v5188 = vadd.f32 %v4994, %v5154
    %v5189 = vadd.f32 %v4995, %v5159
    %v5190 = vadd.f32 %v4996, %v5164
    %v5191 = vadd.f32 %v4997, %v5169
    %v5192 = vadd.f32 %v4998, %v5174
    %v5193 = vadd.f32 %v4999, %v5179
    %v5194 = vadd.f32 %v5000, %v5184
    %s5195 = scalar_lea.vmem %s4, 88
    %v5196 = vld [vmem:[%s5195] sm:$0x3f]
    %v5197 = vcombine.low %v896, %v910
    %v5199 = vunpack.c.l.s4 1966171168
    %v5200 = vunpack.c.0.s8 %v5199
    %v5201 = vlaneseq
    %v5202 = vshrl.u32 %v5201, 7
    %v5203 = vsub.s32 %v5200, %v5202
    %v5204 = vrot.slane %v5197, %v5203
    %v5205 = vcombine.low %v4792, %v5204
    %v5207 = vunpack.c.l.s4 1966171168
    %v5208 = vunpack.c.0.s8 %v5207
    %v5209 = vlaneseq
    %v5210 = vshrl.u32 %v5209, 7
    %v5211 = vsub.s32 %v5208, %v5210
    %v5212 = vrot.slane %v5205, %v5211
    %v5213 = vcombine.low %v4361, %v5212
    %v5214 = vcombine.low %v1204, %v1212
    %v5216 = vunpack.c.l.s4 1966171168
    %v5217 = vunpack.c.0.s8 %v5216
    %v5218 = vlaneseq
    %v5219 = vshrl.u32 %v5218, 7
    %v5220 = vsub.s32 %v5217, %v5219
    %v5221 = vrot.slane %v5214, %v5220
    %v5222 = vcombine.low %v4817, %v5221
    %v5224 = vunpack.c.l.s4 1966171168
    %v5225 = vunpack.c.0.s8 %v5224
    %v5226 = vlaneseq
    %v5227 = vshrl.u32 %v5226, 7
    %v5228 = vsub.s32 %v5225, %v5227
    %v5229 = vrot.slane %v5222, %v5228
    %v5230 = vcombine.low %v4379, %v5229
    %v5231 = vcombine.low %v1506, %v1508
    %v5233 = vunpack.c.l.s4 1966171168
    %v5234 = vunpack.c.0.s8 %v5233
    %v5235 = vlaneseq
    %v5236 = vshrl.u32 %v5235, 7
    %v5237 = vsub.s32 %v5234, %v5236
    %v5238 = vrot.slane %v5231, %v5237
    %v5239 = vcombine.low %v4842, %v5238
    %v5241 = vunpack.c.l.s4 1966171168
    %v5242 = vunpack.c.0.s8 %v5241
    %v5243 = vlaneseq
    %v5244 = vshrl.u32 %v5243, 7
    %v5245 = vsub.s32 %v5242, %v5244
    %v5246 = vrot.slane %v5239, %v5245
    %v5247 = vcombine.low %v4397, %v5246
    %v5248 = vcombine.low %v1802, %v1785
    %v5250 = vunpack.c.l.s4 1966171168
    %v5251 = vunpack.c.0.s8 %v5250
    %v5252 = vlaneseq
    %v5253 = vshrl.u32 %v5252, 7
    %v5254 = vsub.s32 %v5251, %v5253
    %v5255 = vrot.slane %v5248, %v5254
    %v5256 = vcombine.low %v4867, %v5255
    %v5258 = vunpack.c.l.s4 1966171168
    %v5259 = vunpack.c.0.s8 %v5258
    %v5260 = vlaneseq
    %v5261 = vshrl.u32 %v5260, 7
    %v5262 = vsub.s32 %v5259, %v5261
    %v5263 = vrot.slane %v5256, %v5262
    %v5264 = vcombine.low %v4415, %v5263
    %v5265 = vsel %vm2223, %v5213, 0
    %v5267 = vsel %vm2223, %v5230, 0
    %v5269 = vsel %vm2223, %v5247, 0
    %v5271 = vsel %vm2223, %v5264, 0
    %v5274 = vsel %vm2240, %v5196, 0
    %5276 = vmatprep.subr.mxu0 0.0
    %5277 = vmatpush1.msra.mxu0 %v5274
    %5278 = vmatprep.subr.mxu0 0.0
    %5279 = vmatpush1.msra.mxu0 0.0
    %5280 = vmatprep.subr.mxu0 0.0
    %5281 = vmatpush1.msra.mxu0 0.0
    %5282 = vmatprep.subr.mxu0 0.0
    %5283 = vmatpush1.msra.mxu0 0.0
    %5284 = vmatprep.subr.mxu0 0.0
    %5285 = vmatpush1.msra.mxu0 0.0
    %5286 = vmatprep.subr.mxu0 0.0
    %5287 = vmatpush1.msra.mxu0 0.0
    %5288 = vmatprep.subr.mxu0 0.0
    %5289 = vmatpush1.msra.mxu0 0.0
    %5290 = vmatprep.subr.mxu0 0.0
    %5291 = vmatpush1.msra.mxu0 0.0
    %5292 = vmatprep.subr.mxu0 0.0
    %5293 = vmatpush1.msra.mxu0 0.0
    %5294 = vmatprep.subr.mxu0 0.0
    %5295 = vmatpush1.msra.mxu0 0.0
    %5296 = vmatprep.subr.mxu0 0.0
    %5297 = vmatpush1.msra.mxu0 0.0
    %5298 = vmatprep.subr.mxu0 0.0
    %5299 = vmatpush1.msra.mxu0 0.0
    %5300 = vmatprep.subr.mxu0 0.0
    %5301 = vmatpush1.msra.mxu0 0.0
    %5302 = vmatprep.subr.mxu0 0.0
    %5303 = vmatpush1.msra.mxu0 0.0
    %5304 = vmatprep.subr.mxu0 0.0
    %5305 = vmatpush1.msra.mxu0 0.0
    %5306 = vmatprep.subr.mxu0 0.0
    %5307 = vmatpush1.msra.mxu0 0.0
    %5308 = vmatprep.subr.mxu0 0.0
    %5309 = vmatpush1.msra.mxu0 0.0
    %5310 = vmatprep.subr.mxu0 0.0
    %5311 = vmatpush1.msra.mxu0 0.0
    %5312 = vmatprep.subr.mxu0 0.0
    %5313 = vmatpush1.msra.mxu0 0.0
    %5314 = vmatprep.subr.mxu0 0.0
    %5315 = vmatpush1.msra.mxu0 0.0
    %5316 = vmatprep.subr.mxu0 0.0
    %5317 = vmatpush1.msra.mxu0 0.0
    %5318 = vmatprep.subr.mxu0 0.0
    %5319 = vmatpush1.msra.mxu0 0.0
    %5320 = vmatprep.subr.mxu0 0.0
    %5321 = vmatpush1.msra.mxu0 0.0
    %5322 = vmatprep.subr.mxu0 0.0
    %5323 = vmatpush1.msra.mxu0 0.0
    %5324 = vmatprep.subr.mxu0 0.0
    %5325 = vmatpush1.msra.mxu0 0.0
    %5326 = vmatprep.subr.mxu0 0.0
    %5327 = vmatpush1.msra.mxu0 0.0
    %5328 = vmatprep.subr.mxu0 0.0
    %5329 = vmatpush1.msra.mxu0 0.0
    %5330 = vmatprep.subr.mxu0 0.0
    %5331 = vmatpush1.msra.mxu0 0.0
    %5332 = vmatprep.subr.mxu0 0.0
    %5333 = vmatpush1.msra.mxu0 0.0
    %5334 = vmatprep.subr.mxu0 0.0
    %5335 = vmatpush1.msra.mxu0 0.0
    %5336 = vmatprep.subr.mxu0 0.0
    %5337 = vmatpush1.msra.mxu0 0.0
    %5338 = vmatprep.subr.mxu0 0.0
    %5339 = vmatpush1.msra.mxu0 0.0
    %5340 = vmatprep.mubr.f32.mxu0 0.0
    %5341 = vmatmul.mubr.f32.gmra.mrb[0].mxu0 %v3531
    %v5342 = vpop.f32.mrb[0].mxu0
    %v5343 = vadd.f32 0.0, %v5342
    %v5344 = vpop.f32.mrb[0].mxu0
    %5345 = vmatprep.mubr.f32.mxu0 0.0
    %5346 = vmatmul.mubr.f32.gmra.mrb[0].mxu0 %v5265
    %v5347 = vpop.f32.mrb[0].mxu0
    %v5348 = vadd.f32 0.0, %v5347
    %v5349 = vpop.f32.mrb[0].mxu0
    %5350 = vmatprep.mubr.f32.mxu0 0.0
    %5351 = vmatmul.mubr.f32.gmra.mrb[0].mxu0 %v3535
    %v5352 = vpop.f32.mrb[0].mxu0
    %v5353 = vadd.f32 0.0, %v5352
    %v5354 = vpop.f32.mrb[0].mxu0
    %5355 = vmatprep.mubr.f32.mxu0 0.0
    %5356 = vmatmul.mubr.f32.gmra.mrb[0].mxu0 %v5267
    %v5357 = vpop.f32.mrb[0].mxu0
    %v5358 = vadd.f32 0.0, %v5357
    %v5359 = vpop.f32.mrb[0].mxu0
    %5360 = vmatprep.mubr.f32.mxu0 0.0
    %5361 = vmatmul.mubr.f32.gmra.mrb[0].mxu0 %v3539
    %v5362 = vpop.f32.mrb[0].mxu0
    %v5363 = vadd.f32 0.0, %v5362
    %v5364 = vpop.f32.mrb[0].mxu0
    %5365 = vmatprep.mubr.f32.mxu0 0.0
    %5366 = vmatmul.mubr.f32.gmra.mrb[0].mxu0 %v5269
    %v5367 = vpop.f32.mrb[0].mxu0
    %v5368 = vadd.f32 0.0, %v5367
    %v5369 = vpop.f32.mrb[0].mxu0
    %5370 = vmatprep.mubr.f32.mxu0 0.0
    %5371 = vmatmul.mubr.f32.gmra.mrb[0].mxu0 %v3543
    %v5372 = vpop.f32.mrb[0].mxu0
    %v5373 = vadd.f32 0.0, %v5372
    %v5374 = vpop.f32.mrb[0].mxu0
    %5375 = vmatprep.mubr.f32.mxu0 0.0
    %5376 = vmatmul.mubr.f32.gmra.mrb[0].mxu0 %v5271
    %v5377 = vpop.f32.mrb[0].mxu0
    %v5378 = vadd.f32 0.0, %v5377
    %v5379 = vpop.f32.mrb[0].mxu0
    %5380 = vdwg.mxu0
    %v5381 = vadd.f32 %v5187, %v5343
    %v5382 = vadd.f32 %v5188, %v5348
    %v5383 = vadd.f32 %v5189, %v5353
    %v5384 = vadd.f32 %v5190, %v5358
    %v5385 = vadd.f32 %v5191, %v5363
    %v5386 = vadd.f32 %v5192, %v5368
    %v5387 = vadd.f32 %v5193, %v5373
    %v5388 = vadd.f32 %v5194, %v5378
    %s5389 = scalar_lea.vmem %s4, 96
    %v5390 = vld [vmem:[%s5389] sm:$0x3f]
    %v5391 = vcombine.low %v918, %v920
    %v5392 = vcombine.low %v903, %v917
    %v5394 = vunpack.c.l.s4 1966171168
    %v5395 = vunpack.c.0.s8 %v5394
    %v5396 = vlaneseq
    %v5397 = vshrl.u32 %v5396, 7
    %v5398 = vsub.s32 %v5395, %v5397
    %v5399 = vrot.slane %v5391, %v5398
    %v5401 = vunpack.c.l.s4 1966171168
    %v5402 = vunpack.c.0.s8 %v5401
    %v5403 = vlaneseq
    %v5404 = vshrl.u32 %v5403, 7
    %v5405 = vsub.s32 %v5402, %v5404
    %v5406 = vrot.slane %v5392, %v5405
    %v5407 = vcombine.low %v5399, %v5406
    %v5409 = vunpack.c.l.s4 1966171168
    %v5410 = vunpack.c.0.s8 %v5409
    %v5411 = vlaneseq
    %v5412 = vshrl.u32 %v5411, 7
    %v5413 = vsub.s32 %v5410, %v5412
    %v5414 = vrot.slane %v5407, %v5413
    %v5415 = vcombine.low %v4574, %v5414
    %v5416 = vcombine.low %v1214, %v1197
    %v5417 = vcombine.low %v1211, %v1213
    %v5419 = vunpack.c.l.s4 1966171168
    %v5420 = vunpack.c.0.s8 %v5419
    %v5421 = vlaneseq
    %v5422 = vshrl.u32 %v5421, 7
    %v5423 = vsub.s32 %v5420, %v5422
    %v5424 = vrot.slane %v5416, %v5423
    %v5426 = vunpack.c.l.s4 1966171168
    %v5427 = vunpack.c.0.s8 %v5426
    %v5428 = vlaneseq
    %v5429 = vshrl.u32 %v5428, 7
    %v5430 = vsub.s32 %v5427, %v5429
    %v5431 = vrot.slane %v5417, %v5430
    %v5432 = vcombine.low %v5424, %v5431
    %v5434 = vunpack.c.l.s4 1966171168
    %v5435 = vunpack.c.0.s8 %v5434
    %v5436 = vlaneseq
    %v5437 = vshrl.u32 %v5436, 7
    %v5438 = vsub.s32 %v5435, %v5437
    %v5439 = vrot.slane %v5432, %v5438
    %v5440 = vcombine.low %v4599, %v5439
    %v5441 = vcombine.low %v1491, %v1505
    %v5442 = vcombine.low %v1507, %v1509
    %v5444 = vunpack.c.l.s4 1966171168
    %v5445 = vunpack.c.0.s8 %v5444
    %v5446 = vlaneseq
    %v5447 = vshrl.u32 %v5446, 7
    %v5448 = vsub.s32 %v5445, %v5447
    %v5449 = vrot.slane %v5441, %v5448
    %v5451 = vunpack.c.l.s4 1966171168
    %v5452 = vunpack.c.0.s8 %v5451
    %v5453 = vlaneseq
    %v5454 = vshrl.u32 %v5453, 7
    %v5455 = vsub.s32 %v5452, %v5454
    %v5456 = vrot.slane %v5442, %v5455
    %v5457 = vcombine.low %v5449, %v5456
    %v5459 = vunpack.c.l.s4 1966171168
    %v5460 = vunpack.c.0.s8 %v5459
    %v5461 = vlaneseq
    %v5462 = vshrl.u32 %v5461, 7
    %v5463 = vsub.s32 %v5460, %v5462
    %v5464 = vrot.slane %v5457, %v5463
    %v5465 = vcombine.low %v4624, %v5464
    %v5466 = vcombine.low %v1799, %v1801
    %v5467 = vcombine.low %v1803, %v1818
    %v5469 = vunpack.c.l.s4 1966171168
    %v5470 = vunpack.c.0.s8 %v5469
    %v5471 = vlaneseq
    %v5472 = vshrl.u32 %v5471, 7
    %v5473 = vsub.s32 %v5470, %v5472
    %v5474 = vrot.slane %v5466, %v5473
    %v5476 = vunpack.c.l.s4 1966171168
    %v5477 = vunpack.c.0.s8 %v5476
    %v5478 = vlaneseq
    %v5479 = vshrl.u32 %v5478, 7
    %v5480 = vsub.s32 %v5477, %v5479
    %v5481 = vrot.slane %v5467, %v5480
    %v5482 = vcombine.low %v5474, %v5481
    %v5484 = vunpack.c.l.s4 1966171168
    %v5485 = vunpack.c.0.s8 %v5484
    %v5486 = vlaneseq
    %v5487 = vshrl.u32 %v5486, 7
    %v5488 = vsub.s32 %v5485, %v5487
    %v5489 = vrot.slane %v5482, %v5488
    %v5490 = vcombine.low %v4649, %v5489
    %v5491 = vsel %vm2223, %v5415, 0
    %v5493 = vsel %vm2223, %v5440, 0
    %v5495 = vsel %vm2223, %v5465, 0
    %v5497 = vsel %vm2223, %v5490, 0
    %v5500 = vsel %vm2240, %v5390, 0
    %5502 = vmatprep.subr.mxu0 0.0
    %5503 = vmatpush1.msra.mxu0 %v5500
    %5504 = vmatprep.subr.mxu0 0.0
    %5505 = vmatpush1.msra.mxu0 0.0
    %5506 = vmatprep.subr.mxu0 0.0
    %5507 = vmatpush1.msra.mxu0 0.0
    %5508 = vmatprep.subr.mxu0 0.0
    %5509 = vmatpush1.msra.mxu0 0.0
    %5510 = vmatprep.subr.mxu0 0.0
    %5511 = vmatpush1.msra.mxu0 0.0
    %5512 = vmatprep.subr.mxu0 0.0
    %5513 = vmatpush1.msra.mxu0 0.0
    %5514 = vmatprep.subr.mxu0 0.0
    %5515 = vmatpush1.msra.mxu0 0.0
    %5516 = vmatprep.subr.mxu0 0.0
    %5517 = vmatpush1.msra.mxu0 0.0
    %5518 = vmatprep.subr.mxu0 0.0
    %5519 = vmatpush1.msra.mxu0 0.0
    %5520 = vmatprep.subr.mxu0 0.0
    %5521 = vmatpush1.msra.mxu0 0.0
    %5522 = vmatprep.subr.mxu0 0.0
    %5523 = vmatpush1.msra.mxu0 0.0
    %5524 = vmatprep.subr.mxu0 0.0
    %5525 = vmatpush1.msra.mxu0 0.0
    %5526 = vmatprep.subr.mxu0 0.0
    %5527 = vmatpush1.msra.mxu0 0.0
    %5528 = vmatprep.subr.mxu0 0.0
    %5529 = vmatpush1.msra.mxu0 0.0
    %5530 = vmatprep.subr.mxu0 0.0
    %5531 = vmatpush1.msra.mxu0 0.0
    %5532 = vmatprep.subr.mxu0 0.0
    %5533 = vmatpush1.msra.mxu0 0.0
    %5534 = vmatprep.subr.mxu0 0.0
    %5535 = vmatpush1.msra.mxu0 0.0
    %5536 = vmatprep.subr.mxu0 0.0
    %5537 = vmatpush1.msra.mxu0 0.0
    %5538 = vmatprep.subr.mxu0 0.0
    %5539 = vmatpush1.msra.mxu0 0.0
    %5540 = vmatprep.subr.mxu0 0.0
    %5541 = vmatpush1.msra.mxu0 0.0
    %5542 = vmatprep.subr.mxu0 0.0
    %5543 = vmatpush1.msra.mxu0 0.0
    %5544 = vmatprep.subr.mxu0 0.0
    %5545 = vmatpush1.msra.mxu0 0.0
    %5546 = vmatprep.subr.mxu0 0.0
    %5547 = vmatpush1.msra.mxu0 0.0
    %5548 = vmatprep.subr.mxu0 0.0
    %5549 = vmatpush1.msra.mxu0 0.0
    %5550 = vmatprep.subr.mxu0 0.0
    %5551 = vmatpush1.msra.mxu0 0.0
    %5552 = vmatprep.subr.mxu0 0.0
    %5553 = vmatpush1.msra.mxu0 0.0
    %5554 = vmatprep.subr.mxu0 0.0
    %5555 = vmatpush1.msra.mxu0 0.0
    %5556 = vmatprep.subr.mxu0 0.0
    %5557 = vmatpush1.msra.mxu0 0.0
    %5558 = vmatprep.subr.mxu0 0.0
    %5559 = vmatpush1.msra.mxu0 0.0
    %5560 = vmatprep.subr.mxu0 0.0
    %5561 = vmatpush1.msra.mxu0 0.0
    %5562 = vmatprep.subr.mxu0 0.0
    %5563 = vmatpush1.msra.mxu0 0.0
    %5564 = vmatprep.subr.mxu0 0.0
    %5565 = vmatpush1.msra.mxu0 0.0
    %5566 = vmatprep.mubr.f32.mxu0 0.0
    %5567 = vmatmul.mubr.f32.gmra.mrb[0].mxu0 %v3769
    %v5568 = vpop.f32.mrb[0].mxu0
    %v5569 = vadd.f32 0.0, %v5568
    %v5570 = vpop.f32.mrb[0].mxu0
    %5571 = vmatprep.mubr.f32.mxu0 0.0
    %5572 = vmatmul.mubr.f32.gmra.mrb[0].mxu0 %v5491
    %v5573 = vpop.f32.mrb[0].mxu0
    %v5574 = vadd.f32 0.0, %v5573
    %v5575 = vpop.f32.mrb[0].mxu0
    %5576 = vmatprep.mubr.f32.mxu0 0.0
    %5577 = vmatmul.mubr.f32.gmra.mrb[0].mxu0 %v3773
    %v5578 = vpop.f32.mrb[0].mxu0
    %v5579 = vadd.f32 0.0, %v5578
    %v5580 = vpop.f32.mrb[0].mxu0
    %5581 = vmatprep.mubr.f32.mxu0 0.0
    %5582 = vmatmul.mubr.f32.gmra.mrb[0].mxu0 %v5493
    %v5583 = vpop.f32.mrb[0].mxu0
    %v5584 = vadd.f32 0.0, %v5583
    %v5585 = vpop.f32.mrb[0].mxu0
    %5586 = vmatprep.mubr.f32.mxu0 0.0
    %5587 = vmatmul.mubr.f32.gmra.mrb[0].mxu0 %v3777
    %v5588 = vpop.f32.mrb[0].mxu0
    %v5589 = vadd.f32 0.0, %v5588
    %v5590 = vpop.f32.mrb[0].mxu0
    %5591 = vmatprep.mubr.f32.mxu0 0.0
    %5592 = vmatmul.mubr.f32.gmra.mrb[0].mxu0 %v5495
    %v5593 = vpop.f32.mrb[0].mxu0
    %v5594 = vadd.f32 0.0, %v5593
    %v5595 = vpop.f32.mrb[0].mxu0
    %5596 = vmatprep.mubr.f32.mxu0 0.0
    %5597 = vmatmul.mubr.f32.gmra.mrb[0].mxu0 %v3781
    %v5598 = vpop.f32.mrb[0].mxu0
    %v5599 = vadd.f32 0.0, %v5598
    %v5600 = vpop.f32.mrb[0].mxu0
    %5601 = vmatprep.mubr.f32.mxu0 0.0
    %5602 = vmatmul.mubr.f32.gmra.mrb[0].mxu0 %v5497
    %v5603 = vpop.f32.mrb[0].mxu0
    %v5604 = vadd.f32 0.0, %v5603
    %v5605 = vpop.f32.mrb[0].mxu0
    %5606 = vdwg.mxu0
    %v5607 = vadd.f32 %v5381, %v5569
    %v5608 = vadd.f32 %v5382, %v5574
    %v5609 = vadd.f32 %v5383, %v5579
    %v5610 = vadd.f32 %v5384, %v5584
    %v5611 = vadd.f32 %v5385, %v5589
    %v5612 = vadd.f32 %v5386, %v5594
    %v5613 = vadd.f32 %v5387, %v5599
    %v5614 = vadd.f32 %v5388, %v5604
    %s5615 = scalar_lea.vmem %s4, 104
    %v5616 = vld [vmem:[%s5615] sm:$0x3f]
    %v5617 = vcombine.low %v920, %v903
    %v5618 = vcombine.low %v917, %v919
    %v5620 = vunpack.c.l.s4 1966171168
    %v5621 = vunpack.c.0.s8 %v5620
    %v5622 = vlaneseq
    %v5623 = vshrl.u32 %v5622, 7
    %v5624 = vsub.s32 %v5621, %v5623
    %v5625 = vrot.slane %v5617, %v5624
    %v5627 = vunpack.c.l.s4 1966171168
    %v5628 = vunpack.c.0.s8 %v5627
    %v5629 = vlaneseq
    %v5630 = vshrl.u32 %v5629, 7
    %v5631 = vsub.s32 %v5628, %v5630
    %v5632 = vrot.slane %v5618, %v5631
    %v5633 = vcombine.low %v5625, %v5632
    %v5635 = vunpack.c.l.s4 1966171168
    %v5636 = vunpack.c.0.s8 %v5635
    %v5637 = vlaneseq
    %v5638 = vshrl.u32 %v5637, 7
    %v5639 = vsub.s32 %v5636, %v5638
    %v5640 = vrot.slane %v5633, %v5639
    %v5641 = vcombine.low %v4800, %v5640
    %v5642 = vcombine.low %v1197, %v1211
    %v5643 = vcombine.low %v1213, %v1215
    %v5645 = vunpack.c.l.s4 1966171168
    %v5646 = vunpack.c.0.s8 %v5645
    %v5647 = vlaneseq
    %v5648 = vshrl.u32 %v5647, 7
    %v5649 = vsub.s32 %v5646, %v5648
    %v5650 = vrot.slane %v5642, %v5649
    %v5652 = vunpack.c.l.s4 1966171168
    %v5653 = vunpack.c.0.s8 %v5652
    %v5654 = vlaneseq
    %v5655 = vshrl.u32 %v5654, 7
    %v5656 = vsub.s32 %v5653, %v5655
    %v5657 = vrot.slane %v5643, %v5656
    %v5658 = vcombine.low %v5650, %v5657
    %v5660 = vunpack.c.l.s4 1966171168
    %v5661 = vunpack.c.0.s8 %v5660
    %v5662 = vlaneseq
    %v5663 = vshrl.u32 %v5662, 7
    %v5664 = vsub.s32 %v5661, %v5663
    %v5665 = vrot.slane %v5658, %v5664
    %v5666 = vcombine.low %v4825, %v5665
    %v5667 = vcombine.low %v1505, %v1507
    %v5668 = vcombine.low %v1509, %v1533
    %v5670 = vunpack.c.l.s4 1966171168
    %v5671 = vunpack.c.0.s8 %v5670
    %v5672 = vlaneseq
    %v5673 = vshrl.u32 %v5672, 7
    %v5674 = vsub.s32 %v5671, %v5673
    %v5675 = vrot.slane %v5667, %v5674
    %v5677 = vunpack.c.l.s4 1966171168
    %v5678 = vunpack.c.0.s8 %v5677
    %v5679 = vlaneseq
    %v5680 = vshrl.u32 %v5679, 7
    %v5681 = vsub.s32 %v5678, %v5680
    %v5682 = vrot.slane %v5668, %v5681
    %v5683 = vcombine.low %v5675, %v5682
    %v5685 = vunpack.c.l.s4 1966171168
    %v5686 = vunpack.c.0.s8 %v5685
    %v5687 = vlaneseq
    %v5688 = vshrl.u32 %v5687, 7
    %v5689 = vsub.s32 %v5686, %v5688
    %v5690 = vrot.slane %v5683, %v5689
    %v5691 = vcombine.low %v4850, %v5690
    %v5692 = vcombine.low %v1801, %v1803
    %v5693 = vcombine.low %v1818, %v1825
    %v5695 = vunpack.c.l.s4 1966171168
    %v5696 = vunpack.c.0.s8 %v5695
    %v5697 = vlaneseq
    %v5698 = vshrl.u32 %v5697, 7
    %v5699 = vsub.s32 %v5696, %v5698
    %v5700 = vrot.slane %v5692, %v5699
    %v5702 = vunpack.c.l.s4 1966171168
    %v5703 = vunpack.c.0.s8 %v5702
    %v5704 = vlaneseq
    %v5705 = vshrl.u32 %v5704, 7
    %v5706 = vsub.s32 %v5703, %v5705
    %v5707 = vrot.slane %v5693, %v5706
    %v5708 = vcombine.low %v5700, %v5707
    %v5710 = vunpack.c.l.s4 1966171168
    %v5711 = vunpack.c.0.s8 %v5710
    %v5712 = vlaneseq
    %v5713 = vshrl.u32 %v5712, 7
    %v5714 = vsub.s32 %v5711, %v5713
    %v5715 = vrot.slane %v5708, %v5714
    %v5716 = vcombine.low %v4875, %v5715
    %v5717 = vsel %vm2223, %v5641, 0
    %v5719 = vsel %vm2223, %v5666, 0
    %v5721 = vsel %vm2223, %v5691, 0
    %v5723 = vsel %vm2223, %v5716, 0
    %v5726 = vsel %vm2240, %v5616, 0
    %5728 = vmatprep.subr.mxu0 0.0
    %5729 = vmatpush1.msra.mxu0 %v5726
    %5730 = vmatprep.subr.mxu0 0.0
    %5731 = vmatpush1.msra.mxu0 0.0
    %5732 = vmatprep.subr.mxu0 0.0
    %5733 = vmatpush1.msra.mxu0 0.0
    %5734 = vmatprep.subr.mxu0 0.0
    %5735 = vmatpush1.msra.mxu0 0.0
    %5736 = vmatprep.subr.mxu0 0.0
    %5737 = vmatpush1.msra.mxu0 0.0
    %5738 = vmatprep.subr.mxu0 0.0
    %5739 = vmatpush1.msra.mxu0 0.0
    %5740 = vmatprep.subr.mxu0 0.0
    %5741 = vmatpush1.msra.mxu0 0.0
    %5742 = vmatprep.subr.mxu0 0.0
    %5743 = vmatpush1.msra.mxu0 0.0
    %5744 = vmatprep.subr.mxu0 0.0
    %5745 = vmatpush1.msra.mxu0 0.0
    %5746 = vmatprep.subr.mxu0 0.0
    %5747 = vmatpush1.msra.mxu0 0.0
    %5748 = vmatprep.subr.mxu0 0.0
    %5749 = vmatpush1.msra.mxu0 0.0
    %5750 = vmatprep.subr.mxu0 0.0
    %5751 = vmatpush1.msra.mxu0 0.0
    %5752 = vmatprep.subr.mxu0 0.0
    %5753 = vmatpush1.msra.mxu0 0.0
    %5754 = vmatprep.subr.mxu0 0.0
    %5755 = vmatpush1.msra.mxu0 0.0
    %5756 = vmatprep.subr.mxu0 0.0
    %5757 = vmatpush1.msra.mxu0 0.0
    %5758 = vmatprep.subr.mxu0 0.0
    %5759 = vmatpush1.msra.mxu0 0.0
    %5760 = vmatprep.subr.mxu0 0.0
    %5761 = vmatpush1.msra.mxu0 0.0
    %5762 = vmatprep.subr.mxu0 0.0
    %5763 = vmatpush1.msra.mxu0 0.0
    %5764 = vmatprep.subr.mxu0 0.0
    %5765 = vmatpush1.msra.mxu0 0.0
    %5766 = vmatprep.subr.mxu0 0.0
    %5767 = vmatpush1.msra.mxu0 0.0
    %5768 = vmatprep.subr.mxu0 0.0
    %5769 = vmatpush1.msra.mxu0 0.0
    %5770 = vmatprep.subr.mxu0 0.0
    %5771 = vmatpush1.msra.mxu0 0.0
    %5772 = vmatprep.subr.mxu0 0.0
    %5773 = vmatpush1.msra.mxu0 0.0
    %5774 = vmatprep.subr.mxu0 0.0
    %5775 = vmatpush1.msra.mxu0 0.0
    %5776 = vmatprep.subr.mxu0 0.0
    %5777 = vmatpush1.msra.mxu0 0.0
    %5778 = vmatprep.subr.mxu0 0.0
    %5779 = vmatpush1.msra.mxu0 0.0
    %5780 = vmatprep.subr.mxu0 0.0
    %5781 = vmatpush1.msra.mxu0 0.0
    %5782 = vmatprep.subr.mxu0 0.0
    %5783 = vmatpush1.msra.mxu0 0.0
    %5784 = vmatprep.subr.mxu0 0.0
    %5785 = vmatpush1.msra.mxu0 0.0
    %5786 = vmatprep.subr.mxu0 0.0
    %5787 = vmatpush1.msra.mxu0 0.0
    %5788 = vmatprep.subr.mxu0 0.0
    %5789 = vmatpush1.msra.mxu0 0.0
    %5790 = vmatprep.subr.mxu0 0.0
    %5791 = vmatpush1.msra.mxu0 0.0
    %5792 = vmatprep.mubr.f32.mxu0 0.0
    %5793 = vmatmul.mubr.f32.gmra.mrb[0].mxu0 %v4007
    %v5794 = vpop.f32.mrb[0].mxu0
    %v5795 = vadd.f32 0.0, %v5794
    %v5796 = vpop.f32.mrb[0].mxu0
    %5797 = vmatprep.mubr.f32.mxu0 0.0
    %5798 = vmatmul.mubr.f32.gmra.mrb[0].mxu0 %v5717
    %v5799 = vpop.f32.mrb[0].mxu0
    %v5800 = vadd.f32 0.0, %v5799
    %v5801 = vpop.f32.mrb[0].mxu0
    %5802 = vmatprep.mubr.f32.mxu0 0.0
    %5803 = vmatmul.mubr.f32.gmra.mrb[0].mxu0 %v4011
    %v5804 = vpop.f32.mrb[0].mxu0
    %v5805 = vadd.f32 0.0, %v5804
    %v5806 = vpop.f32.mrb[0].mxu0
    %5807 = vmatprep.mubr.f32.mxu0 0.0
    %5808 = vmatmul.mubr.f32.gmra.mrb[0].mxu0 %v5719
    %v5809 = vpop.f32.mrb[0].mxu0
    %v5810 = vadd.f32 0.0, %v5809
    %v5811 = vpop.f32.mrb[0].mxu0
    %5812 = vmatprep.mubr.f32.mxu0 0.0
    %5813 = vmatmul.mubr.f32.gmra.mrb[0].mxu0 %v4015
    %v5814 = vpop.f32.mrb[0].mxu0
    %v5815 = vadd.f32 0.0, %v5814
    %v5816 = vpop.f32.mrb[0].mxu0
    %5817 = vmatprep.mubr.f32.mxu0 0.0
    %5818 = vmatmul.mubr.f32.gmra.mrb[0].mxu0 %v5721
    %v5819 = vpop.f32.mrb[0].mxu0
    %v5820 = vadd.f32 0.0, %v5819
    %v5821 = vpop.f32.mrb[0].mxu0
    %5822 = vmatprep.mubr.f32.mxu0 0.0
    %5823 = vmatmul.mubr.f32.gmra.mrb[0].mxu0 %v4019
    %v5824 = vpop.f32.mrb[0].mxu0
    %v5825 = vadd.f32 0.0, %v5824
    %v5826 = vpop.f32.mrb[0].mxu0
    %5827 = vmatprep.mubr.f32.mxu0 0.0
    %5828 = vmatmul.mubr.f32.gmra.mrb[0].mxu0 %v5723
    %v5829 = vpop.f32.mrb[0].mxu0
    %v5830 = vadd.f32 0.0, %v5829
    %v5831 = vpop.f32.mrb[0].mxu0
    %5832 = vdwg.mxu0
    %v5833 = vadd.f32 %v5607, %v5795
    %v5834 = vadd.f32 %v5608, %v5800
    %v5835 = vadd.f32 %v5609, %v5805
    %v5836 = vadd.f32 %v5610, %v5810
    %v5837 = vadd.f32 %v5611, %v5815
    %v5838 = vadd.f32 %v5612, %v5820
    %v5839 = vadd.f32 %v5613, %v5825
    %v5840 = vadd.f32 %v5614, %v5830
    %s5841 = scalar_lea.vmem %s4, 112
    %v5842 = vld [vmem:[%s5841] sm:$0x3f]
    %v5843 = vcombine.low %v919, %v921
    %v5845 = vunpack.c.l.s4 1966171168
    %v5846 = vunpack.c.0.s8 %v5845
    %v5847 = vlaneseq
    %v5848 = vshrl.u32 %v5847, 7
    %v5849 = vsub.s32 %v5846, %v5848
    %v5850 = vrot.slane %v5843, %v5849
    %v5851 = vcombine.low %v5406, %v5850
    %v5853 = vunpack.c.l.s4 1966171168
    %v5854 = vunpack.c.0.s8 %v5853
    %v5855 = vlaneseq
    %v5856 = vshrl.u32 %v5855, 7
    %v5857 = vsub.s32 %v5854, %v5856
    %v5858 = vrot.slane %v5851, %v5857
    %v5859 = vcombine.low %v5018, %v5858
    %v5860 = vcombine.low %v1215, %v1239
    %v5862 = vunpack.c.l.s4 1966171168
    %v5863 = vunpack.c.0.s8 %v5862
    %v5864 = vlaneseq
    %v5865 = vshrl.u32 %v5864, 7
    %v5866 = vsub.s32 %v5863, %v5865
    %v5867 = vrot.slane %v5860, %v5866
    %v5868 = vcombine.low %v5431, %v5867
    %v5870 = vunpack.c.l.s4 1966171168
    %v5871 = vunpack.c.0.s8 %v5870
    %v5872 = vlaneseq
    %v5873 = vshrl.u32 %v5872, 7
    %v5874 = vsub.s32 %v5871, %v5873
    %v5875 = vrot.slane %v5868, %v5874
    %v5876 = vcombine.low %v5035, %v5875
    %v5877 = vcombine.low %v1533, %v1547
    %v5879 = vunpack.c.l.s4 1966171168
    %v5880 = vunpack.c.0.s8 %v5879
    %v5881 = vlaneseq
    %v5882 = vshrl.u32 %v5881, 7
    %v5883 = vsub.s32 %v5880, %v5882
    %v5884 = vrot.slane %v5877, %v5883
    %v5885 = vcombine.low %v5456, %v5884
    %v5887 = vunpack.c.l.s4 1966171168
    %v5888 = vunpack.c.0.s8 %v5887
    %v5889 = vlaneseq
    %v5890 = vshrl.u32 %v5889, 7
    %v5891 = vsub.s32 %v5888, %v5890
    %v5892 = vrot.slane %v5885, %v5891
    %v5893 = vcombine.low %v5052, %v5892
    %v5894 = vcombine.low %v1825, %v1826
    %v5896 = vunpack.c.l.s4 1966171168
    %v5897 = vunpack.c.0.s8 %v5896
    %v5898 = vlaneseq
    %v5899 = vshrl.u32 %v5898, 7
    %v5900 = vsub.s32 %v5897, %v5899
    %v5901 = vrot.slane %v5894, %v5900
    %v5902 = vcombine.low %v5481, %v5901
    %v5904 = vunpack.c.l.s4 1966171168
    %v5905 = vunpack.c.0.s8 %v5904
    %v5906 = vlaneseq
    %v5907 = vshrl.u32 %v5906, 7
    %v5908 = vsub.s32 %v5905, %v5907
    %v5909 = vrot.slane %v5902, %v5908
    %v5910 = vcombine.low %v5069, %v5909
    %v5911 = vsel %vm2223, %v5859, 0
    %v5913 = vsel %vm2223, %v5876, 0
    %v5915 = vsel %vm2223, %v5893, 0
    %v5917 = vsel %vm2223, %v5910, 0
    %v5920 = vsel %vm2240, %v5842, 0
    %5922 = vmatprep.subr.mxu0 0.0
    %5923 = vmatpush1.msra.mxu0 %v5920
    %5924 = vmatprep.subr.mxu0 0.0
    %5925 = vmatpush1.msra.mxu0 0.0
    %5926 = vmatprep.subr.mxu0 0.0
    %5927 = vmatpush1.msra.mxu0 0.0
    %5928 = vmatprep.subr.mxu0 0.0
    %5929 = vmatpush1.msra.mxu0 0.0
    %5930 = vmatprep.subr.mxu0 0.0
    %5931 = vmatpush1.msra.mxu0 0.0
    %5932 = vmatprep.subr.mxu0 0.0
    %5933 = vmatpush1.msra.mxu0 0.0
    %5934 = vmatprep.subr.mxu0 0.0
    %5935 = vmatpush1.msra.mxu0 0.0
    %5936 = vmatprep.subr.mxu0 0.0
    %5937 = vmatpush1.msra.mxu0 0.0
    %5938 = vmatprep.subr.mxu0 0.0
    %5939 = vmatpush1.msra.mxu0 0.0
    %5940 = vmatprep.subr.mxu0 0.0
    %5941 = vmatpush1.msra.mxu0 0.0
    %5942 = vmatprep.subr.mxu0 0.0
    %5943 = vmatpush1.msra.mxu0 0.0
    %5944 = vmatprep.subr.mxu0 0.0
    %5945 = vmatpush1.msra.mxu0 0.0
    %5946 = vmatprep.subr.mxu0 0.0
    %5947 = vmatpush1.msra.mxu0 0.0
    %5948 = vmatprep.subr.mxu0 0.0
    %5949 = vmatpush1.msra.mxu0 0.0
    %5950 = vmatprep.subr.mxu0 0.0
    %5951 = vmatpush1.msra.mxu0 0.0
    %5952 = vmatprep.subr.mxu0 0.0
    %5953 = vmatpush1.msra.mxu0 0.0
    %5954 = vmatprep.subr.mxu0 0.0
    %5955 = vmatpush1.msra.mxu0 0.0
    %5956 = vmatprep.subr.mxu0 0.0
    %5957 = vmatpush1.msra.mxu0 0.0
    %5958 = vmatprep.subr.mxu0 0.0
    %5959 = vmatpush1.msra.mxu0 0.0
    %5960 = vmatprep.subr.mxu0 0.0
    %5961 = vmatpush1.msra.mxu0 0.0
    %5962 = vmatprep.subr.mxu0 0.0
    %5963 = vmatpush1.msra.mxu0 0.0
    %5964 = vmatprep.subr.mxu0 0.0
    %5965 = vmatpush1.msra.mxu0 0.0
    %5966 = vmatprep.subr.mxu0 0.0
    %5967 = vmatpush1.msra.mxu0 0.0
    %5968 = vmatprep.subr.mxu0 0.0
    %5969 = vmatpush1.msra.mxu0 0.0
    %5970 = vmatprep.subr.mxu0 0.0
    %5971 = vmatpush1.msra.mxu0 0.0
    %5972 = vmatprep.subr.mxu0 0.0
    %5973 = vmatpush1.msra.mxu0 0.0
    %5974 = vmatprep.subr.mxu0 0.0
    %5975 = vmatpush1.msra.mxu0 0.0
    %5976 = vmatprep.subr.mxu0 0.0
    %5977 = vmatpush1.msra.mxu0 0.0
    %5978 = vmatprep.subr.mxu0 0.0
    %5979 = vmatpush1.msra.mxu0 0.0
    %5980 = vmatprep.subr.mxu0 0.0
    %5981 = vmatpush1.msra.mxu0 0.0
    %5982 = vmatprep.subr.mxu0 0.0
    %5983 = vmatpush1.msra.mxu0 0.0
    %5984 = vmatprep.subr.mxu0 0.0
    %5985 = vmatpush1.msra.mxu0 0.0
    %5986 = vmatprep.mubr.f32.mxu0 0.0
    %5987 = vmatmul.mubr.f32.gmra.mrb[0].mxu0 %v4213
    %v5988 = vpop.f32.mrb[0].mxu0
    %v5989 = vadd.f32 0.0, %v5988
    %v5990 = vpop.f32.mrb[0].mxu0
    %5991 = vmatprep.mubr.f32.mxu0 0.0
    %5992 = vmatmul.mubr.f32.gmra.mrb[0].mxu0 %v5911
    %v5993 = vpop.f32.mrb[0].mxu0
    %v5994 = vadd.f32 0.0, %v5993
    %v5995 = vpop.f32.mrb[0].mxu0
    %5996 = vmatprep.mubr.f32.mxu0 0.0
    %5997 = vmatmul.mubr.f32.gmra.mrb[0].mxu0 %v4217
    %v5998 = vpop.f32.mrb[0].mxu0
    %v5999 = vadd.f32 0.0, %v5998
    %v6000 = vpop.f32.mrb[0].mxu0
    %6001 = vmatprep.mubr.f32.mxu0 0.0
    %6002 = vmatmul.mubr.f32.gmra.mrb[0].mxu0 %v5913
    %v6003 = vpop.f32.mrb[0].mxu0
    %v6004 = vadd.f32 0.0, %v6003
    %v6005 = vpop.f32.mrb[0].mxu0
    %6006 = vmatprep.mubr.f32.mxu0 0.0
    %6007 = vmatmul.mubr.f32.gmra.mrb[0].mxu0 %v4221
    %v6008 = vpop.f32.mrb[0].mxu0
    %v6009 = vadd.f32 0.0, %v6008
    %v6010 = vpop.f32.mrb[0].mxu0
    %6011 = vmatprep.mubr.f32.mxu0 0.0
    %6012 = vmatmul.mubr.f32.gmra.mrb[0].mxu0 %v5915
    %v6013 = vpop.f32.mrb[0].mxu0
    %v6014 = vadd.f32 0.0, %v6013
    %v6015 = vpop.f32.mrb[0].mxu0
    %6016 = vmatprep.mubr.f32.mxu0 0.0
    %6017 = vmatmul.mubr.f32.gmra.mrb[0].mxu0 %v4225
    %v6018 = vpop.f32.mrb[0].mxu0
    %v6019 = vadd.f32 0.0, %v6018
    %v6020 = vpop.f32.mrb[0].mxu0
    %6021 = vmatprep.mubr.f32.mxu0 0.0
    %6022 = vmatmul.mubr.f32.gmra.mrb[0].mxu0 %v5917
    %v6023 = vpop.f32.mrb[0].mxu0
    %v6024 = vadd.f32 0.0, %v6023
    %v6025 = vpop.f32.mrb[0].mxu0
    %6026 = vdwg.mxu0
    %v6027 = vadd.f32 %v5833, %v5989
    %v6028 = vadd.f32 %v5834, %v5994
    %v6029 = vadd.f32 %v5835, %v5999
    %v6030 = vadd.f32 %v5836, %v6004
    %v6031 = vadd.f32 %v5837, %v6009
    %v6032 = vadd.f32 %v5838, %v6014
    %v6033 = vadd.f32 %v5839, %v6019
    %v6034 = vadd.f32 %v5840, %v6024
    %s6035 = scalar_lea.vmem %s4, 120
    %v6036 = vld [vmem:[%s6035] sm:$0x3f]
    %v6037 = vcombine.low %v921, %v945
    %v6039 = vunpack.c.l.s4 1966171168
    %v6040 = vunpack.c.0.s8 %v6039
    %v6041 = vlaneseq
    %v6042 = vshrl.u32 %v6041, 7
    %v6043 = vsub.s32 %v6040, %v6042
    %v6044 = vrot.slane %v6037, %v6043
    %v6045 = vcombine.low %v5632, %v6044
    %v6047 = vunpack.c.l.s4 1966171168
    %v6048 = vunpack.c.0.s8 %v6047
    %v6049 = vlaneseq
    %v6050 = vshrl.u32 %v6049, 7
    %v6051 = vsub.s32 %v6048, %v6050
    %v6052 = vrot.slane %v6045, %v6051
    %v6053 = vcombine.low %v5212, %v6052
    %v6054 = vcombine.low %v1239, %v1253
    %v6056 = vunpack.c.l.s4 1966171168
    %v6057 = vunpack.c.0.s8 %v6056
    %v6058 = vlaneseq
    %v6059 = vshrl.u32 %v6058, 7
    %v6060 = vsub.s32 %v6057, %v6059
    %v6061 = vrot.slane %v6054, %v6060
    %v6062 = vcombine.low %v5657, %v6061
    %v6064 = vunpack.c.l.s4 1966171168
    %v6065 = vunpack.c.0.s8 %v6064
    %v6066 = vlaneseq
    %v6067 = vshrl.u32 %v6066, 7
    %v6068 = vsub.s32 %v6065, %v6067
    %v6069 = vrot.slane %v6062, %v6068
    %v6070 = vcombine.low %v5229, %v6069
    %v6071 = vcombine.low %v1547, %v1555
    %v6073 = vunpack.c.l.s4 1966171168
    %v6074 = vunpack.c.0.s8 %v6073
    %v6075 = vlaneseq
    %v6076 = vshrl.u32 %v6075, 7
    %v6077 = vsub.s32 %v6074, %v6076
    %v6078 = vrot.slane %v6071, %v6077
    %v6079 = vcombine.low %v5682, %v6078
    %v6081 = vunpack.c.l.s4 1966171168
    %v6082 = vunpack.c.0.s8 %v6081
    %v6083 = vlaneseq
    %v6084 = vshrl.u32 %v6083, 7
    %v6085 = vsub.s32 %v6082, %v6084
    %v6086 = vrot.slane %v6079, %v6085
    %v6087 = vcombine.low %v5246, %v6086
    %v6088 = vcombine.low %v1826, %v1827
    %v6090 = vunpack.c.l.s4 1966171168
    %v6091 = vunpack.c.0.s8 %v6090
    %v6092 = vlaneseq
    %v6093 = vshrl.u32 %v6092, 7
    %v6094 = vsub.s32 %v6091, %v6093
    %v6095 = vrot.slane %v6088, %v6094
    %v6096 = vcombine.low %v5707, %v6095
    %v6098 = vunpack.c.l.s4 1966171168
    %v6099 = vunpack.c.0.s8 %v6098
    %v6100 = vlaneseq
    %v6101 = vshrl.u32 %v6100, 7
    %v6102 = vsub.s32 %v6099, %v6101
    %v6103 = vrot.slane %v6096, %v6102
    %v6104 = vcombine.low %v5263, %v6103
    %v6105 = vsel %vm2223, %v6053, 0
    %v6107 = vsel %vm2223, %v6070, 0
    %v6109 = vsel %vm2223, %v6087, 0
    %v6111 = vsel %vm2223, %v6104, 0
    %v6114 = vsel %vm2240, %v6036, 0
    %6116 = vmatprep.subr.mxu0 0.0
    %6117 = vmatpush1.msra.mxu0 %v6114
    %6118 = vmatprep.subr.mxu0 0.0
    %6119 = vmatpush1.msra.mxu0 0.0
    %6120 = vmatprep.subr.mxu0 0.0
    %6121 = vmatpush1.msra.mxu0 0.0
    %6122 = vmatprep.subr.mxu0 0.0
    %6123 = vmatpush1.msra.mxu0 0.0
    %6124 = vmatprep.subr.mxu0 0.0
    %6125 = vmatpush1.msra.mxu0 0.0
    %6126 = vmatprep.subr.mxu0 0.0
    %6127 = vmatpush1.msra.mxu0 0.0
    %6128 = vmatprep.subr.mxu0 0.0
    %6129 = vmatpush1.msra.mxu0 0.0
    %6130 = vmatprep.subr.mxu0 0.0
    %6131 = vmatpush1.msra.mxu0 0.0
    %6132 = vmatprep.subr.mxu0 0.0
    %6133 = vmatpush1.msra.mxu0 0.0
    %6134 = vmatprep.subr.mxu0 0.0
    %6135 = vmatpush1.msra.mxu0 0.0
    %6136 = vmatprep.subr.mxu0 0.0
    %6137 = vmatpush1.msra.mxu0 0.0
    %6138 = vmatprep.subr.mxu0 0.0
    %6139 = vmatpush1.msra.mxu0 0.0
    %6140 = vmatprep.subr.mxu0 0.0
    %6141 = vmatpush1.msra.mxu0 0.0
    %6142 = vmatprep.subr.mxu0 0.0
    %6143 = vmatpush1.msra.mxu0 0.0
    %6144 = vmatprep.subr.mxu0 0.0
    %6145 = vmatpush1.msra.mxu0 0.0
    %6146 = vmatprep.subr.mxu0 0.0
    %6147 = vmatpush1.msra.mxu0 0.0
    %6148 = vmatprep.subr.mxu0 0.0
    %6149 = vmatpush1.msra.mxu0 0.0
    %6150 = vmatprep.subr.mxu0 0.0
    %6151 = vmatpush1.msra.mxu0 0.0
    %6152 = vmatprep.subr.mxu0 0.0
    %6153 = vmatpush1.msra.mxu0 0.0
    %6154 = vmatprep.subr.mxu0 0.0
    %6155 = vmatpush1.msra.mxu0 0.0
    %6156 = vmatprep.subr.mxu0 0.0
    %6157 = vmatpush1.msra.mxu0 0.0
    %6158 = vmatprep.subr.mxu0 0.0
    %6159 = vmatpush1.msra.mxu0 0.0
    %6160 = vmatprep.subr.mxu0 0.0
    %6161 = vmatpush1.msra.mxu0 0.0
    %6162 = vmatprep.subr.mxu0 0.0
    %6163 = vmatpush1.msra.mxu0 0.0
    %6164 = vmatprep.subr.mxu0 0.0
    %6165 = vmatpush1.msra.mxu0 0.0
    %6166 = vmatprep.subr.mxu0 0.0
    %6167 = vmatpush1.msra.mxu0 0.0
    %6168 = vmatprep.subr.mxu0 0.0
    %6169 = vmatpush1.msra.mxu0 0.0
    %6170 = vmatprep.subr.mxu0 0.0
    %6171 = vmatpush1.msra.mxu0 0.0
    %6172 = vmatprep.subr.mxu0 0.0
    %6173 = vmatpush1.msra.mxu0 0.0
    %6174 = vmatprep.subr.mxu0 0.0
    %6175 = vmatpush1.msra.mxu0 0.0
    %6176 = vmatprep.subr.mxu0 0.0
    %6177 = vmatpush1.msra.mxu0 0.0
    %6178 = vmatprep.subr.mxu0 0.0
    %6179 = vmatpush1.msra.mxu0 0.0
    %6180 = vmatprep.mubr.f32.mxu0 0.0
    %6181 = vmatmul.mubr.f32.gmra.mrb[0].mxu0 %v4419
    %v6182 = vpop.f32.mrb[0].mxu0
    %v6183 = vadd.f32 0.0, %v6182
    %v6184 = vpop.f32.mrb[0].mxu0
    %6185 = vmatprep.mubr.f32.mxu0 0.0
    %6186 = vmatmul.mubr.f32.gmra.mrb[0].mxu0 %v6105
    %v6187 = vpop.f32.mrb[0].mxu0
    %v6188 = vadd.f32 0.0, %v6187
    %v6189 = vpop.f32.mrb[0].mxu0
    %6190 = vmatprep.mubr.f32.mxu0 0.0
    %6191 = vmatmul.mubr.f32.gmra.mrb[0].mxu0 %v4423
    %v6192 = vpop.f32.mrb[0].mxu0
    %v6193 = vadd.f32 0.0, %v6192
    %v6194 = vpop.f32.mrb[0].mxu0
    %6195 = vmatprep.mubr.f32.mxu0 0.0
    %6196 = vmatmul.mubr.f32.gmra.mrb[0].mxu0 %v6107
    %v6197 = vpop.f32.mrb[0].mxu0
    %v6198 = vadd.f32 0.0, %v6197
    %v6199 = vpop.f32.mrb[0].mxu0
    %6200 = vmatprep.mubr.f32.mxu0 0.0
    %6201 = vmatmul.mubr.f32.gmra.mrb[0].mxu0 %v4427
    %v6202 = vpop.f32.mrb[0].mxu0
    %v6203 = vadd.f32 0.0, %v6202
    %v6204 = vpop.f32.mrb[0].mxu0
    %6205 = vmatprep.mubr.f32.mxu0 0.0
    %6206 = vmatmul.mubr.f32.gmra.mrb[0].mxu0 %v6109
    %v6207 = vpop.f32.mrb[0].mxu0
    %v6208 = vadd.f32 0.0, %v6207
    %v6209 = vpop.f32.mrb[0].mxu0
    %6210 = vmatprep.mubr.f32.mxu0 0.0
    %6211 = vmatmul.mubr.f32.gmra.mrb[0].mxu0 %v4431
    %v6212 = vpop.f32.mrb[0].mxu0
    %v6213 = vadd.f32 0.0, %v6212
    %v6214 = vpop.f32.mrb[0].mxu0
    %6215 = vmatprep.mubr.f32.mxu0 0.0
    %6216 = vmatmul.mubr.f32.gmra.mrb[0].mxu0 %v6111
    %v6217 = vpop.f32.mrb[0].mxu0
    %v6218 = vadd.f32 0.0, %v6217
    %v6219 = vpop.f32.mrb[0].mxu0
    %6220 = vdwg.mxu0
    %v6221 = vadd.f32 %v6027, %v6183
    %v6222 = vadd.f32 %v6028, %v6188
    %v6223 = vadd.f32 %v6029, %v6193
    %v6224 = vadd.f32 %v6030, %v6198
    %v6225 = vadd.f32 %v6031, %v6203
    %v6226 = vadd.f32 %v6032, %v6208
    %v6227 = vadd.f32 %v6033, %v6213
    %v6228 = vadd.f32 %v6034, %v6218
    %vm6229 = vcmp.gt.f32.partialorder %v6221, 0.0
    %vm6230 = vcmp.gt.f32.partialorder %v6222, 0.0
    %vm6231 = vcmp.gt.f32.partialorder %v6223, 0.0
    %vm6232 = vcmp.gt.f32.partialorder %v6224, 0.0
    %vm6233 = vcmp.gt.f32.partialorder %v6225, 0.0
    %vm6234 = vcmp.gt.f32.partialorder %v6226, 0.0
    %vm6235 = vcmp.gt.f32.partialorder %v6227, 0.0
    %vm6236 = vcmp.gt.f32.partialorder %v6228, 0.0
    %v6237 = vmin.f32 %v6221, 0.0
    %v6238 = vmin.f32 %v6222, 0.0
    %v6239 = vmin.f32 %v6223, 0.0
    %v6240 = vmin.f32 %v6224, 0.0
    %v6241 = vmin.f32 %v6225, 0.0
    %v6242 = vmin.f32 %v6226, 0.0
    %v6243 = vmin.f32 %v6227, 0.0
    %v6244 = vmin.f32 %v6228, 0.0
    %v6245 = vmul.f32 %v6237, 1.442695
    %v6246 = vpow.pop %v6245
    %v6247 = vmul.f32 %v6238, 1.442695
    %v6248 = vpow.pop %v6247
    %v6249 = vmul.f32 %v6239, 1.442695
    %v6250 = vpow.pop %v6249
    %v6251 = vmul.f32 %v6240, 1.442695
    %v6252 = vpow.pop %v6251
    %v6253 = vmul.f32 %v6241, 1.442695
    %v6254 = vpow.pop %v6253
    %v6255 = vmul.f32 %v6242, 1.442695
    %v6256 = vpow.pop %v6255
    %v6257 = vmul.f32 %v6243, 1.442695
    %v6258 = vpow.pop %v6257
    %v6259 = vmul.f32 %v6244, 1.442695
    %v6260 = vpow.pop %v6259
    %v6261 = vsub.f32 %v6246, 1.0
    %v6262 = vsub.f32 %v6248, 1.0
    %v6263 = vsub.f32 %v6250, 1.0
    %v6264 = vsub.f32 %v6252, 1.0
    %v6265 = vsub.f32 %v6254, 1.0
    %v6266 = vsub.f32 %v6256, 1.0
    %v6267 = vsub.f32 %v6258, 1.0
    %v6268 = vsub.f32 %v6260, 1.0
    %v6269 = vmul.f32 %v6261, 1.6732632
    %v6270 = vmul.f32 %v6262, 1.6732632
    %v6271 = vmul.f32 %v6263, 1.6732632
    %v6272 = vmul.f32 %v6264, 1.6732632
    %v6273 = vmul.f32 %v6265, 1.6732632
    %v6274 = vmul.f32 %v6266, 1.6732632
    %v6275 = vmul.f32 %v6267, 1.6732632
    %v6276 = vmul.f32 %v6268, 1.6732632
    %v6277 = vsel %vm6229, %v6221, %v6269
    %v6278 = vsel %vm6230, %v6222, %v6270
    %v6279 = vsel %vm6231, %v6223, %v6271
    %v6280 = vsel %vm6232, %v6224, %v6272
    %v6281 = vsel %vm6233, %v6225, %v6273
    %v6282 = vsel %vm6234, %v6226, %v6274
    %v6283 = vsel %vm6235, %v6227, %v6275
    %v6284 = vsel %vm6236, %v6228, %v6276
    %v6285 = vmul.f32 %v6277, 1.050701
    %v6286 = vmul.f32 %v6278, 1.050701
    %v6287 = vmul.f32 %v6279, 1.050701
    %v6288 = vmul.f32 %v6280, 1.050701
    %v6289 = vmul.f32 %v6281, 1.050701
    %v6290 = vmul.f32 %v6282, 1.050701
    %v6291 = vmul.f32 %v6283, 1.050701
    %v6292 = vmul.f32 %v6284, 1.050701
    %v6293 = vld [vmem:[%s5] sm:$0xff]
    %v6294 = vld [vmem:[%s5 + $0x8] sm:$0x3]
    %vm6295 = vcmask 80896
    %v6297 = vsel %vm6295, %v6285, 0
    %v6300 = vsel %vm6295, %v6286, 0
    %v6303 = vsel %vm6295, %v6287, 0
    %v6306 = vsel %vm6295, %v6288, 0
    %v6309 = vsel %vm6295, %v6289, 0
    %v6312 = vsel %vm6295, %v6290, 0
    %v6315 = vsel %vm6295, %v6291, 0
    %v6318 = vsel %vm6295, %v6292, 0
    %vm6320 = vcmask 1041408
    %v6322 = vsel %vm6320, %v6294, 0
    %6324 = vmatprep.subr.mxu0 0.0
    %6325 = vmatpush1.msra.mxu0 %v6293
    %6326 = vmatprep.subr.mxu0 0.0
    %6327 = vmatpush1.msra.mxu0 %v6322
    %6328 = vmatprep.subr.mxu0 0.0
    %6329 = vmatpush1.msra.mxu0 0.0
    %6330 = vmatprep.subr.mxu0 0.0
    %6331 = vmatpush1.msra.mxu0 0.0
    %6332 = vmatprep.subr.mxu0 0.0
    %6333 = vmatpush1.msra.mxu0 0.0
    %6334 = vmatprep.subr.mxu0 0.0
    %6335 = vmatpush1.msra.mxu0 0.0
    %6336 = vmatprep.subr.mxu0 0.0
    %6337 = vmatpush1.msra.mxu0 0.0
    %6338 = vmatprep.subr.mxu0 0.0
    %6339 = vmatpush1.msra.mxu0 0.0
    %6340 = vmatprep.subr.mxu0 0.0
    %6341 = vmatpush1.msra.mxu0 0.0
    %6342 = vmatprep.subr.mxu0 0.0
    %6343 = vmatpush1.msra.mxu0 0.0
    %6344 = vmatprep.subr.mxu0 0.0
    %6345 = vmatpush1.msra.mxu0 0.0
    %6346 = vmatprep.subr.mxu0 0.0
    %6347 = vmatpush1.msra.mxu0 0.0
    %6348 = vmatprep.subr.mxu0 0.0
    %6349 = vmatpush1.msra.mxu0 0.0
    %6350 = vmatprep.subr.mxu0 0.0
    %6351 = vmatpush1.msra.mxu0 0.0
    %6352 = vmatprep.subr.mxu0 0.0
    %6353 = vmatpush1.msra.mxu0 0.0
    %6354 = vmatprep.subr.mxu0 0.0
    %6355 = vmatpush1.msra.mxu0 0.0
    %6356 = vmatprep.subr.mxu0 0.0
    %6357 = vmatpush1.msra.mxu0 0.0
    %6358 = vmatprep.subr.mxu0 0.0
    %6359 = vmatpush1.msra.mxu0 0.0
    %6360 = vmatprep.subr.mxu0 0.0
    %6361 = vmatpush1.msra.mxu0 0.0
    %6362 = vmatprep.subr.mxu0 0.0
    %6363 = vmatpush1.msra.mxu0 0.0
    %6364 = vmatprep.subr.mxu0 0.0
    %6365 = vmatpush1.msra.mxu0 0.0
    %6366 = vmatprep.subr.mxu0 0.0
    %6367 = vmatpush1.msra.mxu0 0.0
    %6368 = vmatprep.subr.mxu0 0.0
    %6369 = vmatpush1.msra.mxu0 0.0
    %6370 = vmatprep.subr.mxu0 0.0
    %6371 = vmatpush1.msra.mxu0 0.0
    %6372 = vmatprep.subr.mxu0 0.0
    %6373 = vmatpush1.msra.mxu0 0.0
    %6374 = vmatprep.subr.mxu0 0.0
    %6375 = vmatpush1.msra.mxu0 0.0
    %6376 = vmatprep.subr.mxu0 0.0
    %6377 = vmatpush1.msra.mxu0 0.0
    %6378 = vmatprep.subr.mxu0 0.0
    %6379 = vmatpush1.msra.mxu0 0.0
    %6380 = vmatprep.subr.mxu0 0.0
    %6381 = vmatpush1.msra.mxu0 0.0
    %6382 = vmatprep.subr.mxu0 0.0
    %6383 = vmatpush1.msra.mxu0 0.0
    %6384 = vmatprep.subr.mxu0 0.0
    %6385 = vmatpush1.msra.mxu0 0.0
    %6386 = vmatprep.subr.mxu0 0.0
    %6387 = vmatpush1.msra.mxu0 0.0
    %6388 = vmatprep.mubr.f32.mxu0 0.0
    %6389 = vmatmul.mubr.f32.gmra.mrb[0].mxu0 %v6297
    %v6390 = vpop.f32.mrb[0].mxu0
    %v6391 = vadd.f32 0.0, %v6390
    %v6392 = vpop.f32.mrb[0].mxu0
    %6393 = vmatprep.mubr.f32.mxu0 0.0
    %6394 = vmatmul.mubr.f32.gmra.mrb[0].mxu0 %v6300
    %v6395 = vpop.f32.mrb[0].mxu0
    %v6396 = vadd.f32 0.0, %v6395
    %v6397 = vpop.f32.mrb[0].mxu0
    %6398 = vmatprep.mubr.f32.mxu0 0.0
    %6399 = vmatmul.mubr.f32.gmra.mrb[0].mxu0 %v6303
    %v6400 = vpop.f32.mrb[0].mxu0
    %v6401 = vadd.f32 0.0, %v6400
    %v6402 = vpop.f32.mrb[0].mxu0
    %6403 = vmatprep.mubr.f32.mxu0 0.0
    %6404 = vmatmul.mubr.f32.gmra.mrb[0].mxu0 %v6306
    %v6405 = vpop.f32.mrb[0].mxu0
    %v6406 = vadd.f32 0.0, %v6405
    %v6407 = vpop.f32.mrb[0].mxu0
    %6408 = vmatprep.mubr.f32.mxu0 0.0
    %6409 = vmatmul.mubr.f32.gmra.mrb[0].mxu0 %v6309
    %v6410 = vpop.f32.mrb[0].mxu0
    %v6411 = vadd.f32 0.0, %v6410
    %v6412 = vpop.f32.mrb[0].mxu0
    %6413 = vmatprep.mubr.f32.mxu0 0.0
    %6414 = vmatmul.mubr.f32.gmra.mrb[0].mxu0 %v6312
    %v6415 = vpop.f32.mrb[0].mxu0
    %v6416 = vadd.f32 0.0, %v6415
    %v6417 = vpop.f32.mrb[0].mxu0
    %6418 = vmatprep.mubr.f32.mxu0 0.0
    %6419 = vmatmul.mubr.f32.gmra.mrb[0].mxu0 %v6315
    %v6420 = vpop.f32.mrb[0].mxu0
    %v6421 = vadd.f32 0.0, %v6420
    %v6422 = vpop.f32.mrb[0].mxu0
    %6423 = vmatprep.mubr.f32.mxu0 0.0
    %6424 = vmatmul.mubr.f32.gmra.mrb[0].mxu0 %v6318
    %v6425 = vpop.f32.mrb[0].mxu0
    %v6426 = vadd.f32 0.0, %v6425
    %v6427 = vpop.f32.mrb[0].mxu0
    %6428 = vdwg.mxu0
    %6429 = vst [vmem:[#allocation2] sm:$0xff] %v6391
    %6430 = vst [vmem:[#allocation2 + $0x8] sm:$0xff] %v6396
    %6431 = vst [vmem:[#allocation2 + $0x10] sm:$0xff] %v6401
    %6432 = vst [vmem:[#allocation2 + $0x18] sm:$0xff] %v6406
    %6433 = vst [vmem:[#allocation2 + $0x20] sm:$0xff] %v6411
    %6434 = vst [vmem:[#allocation2 + $0x28] sm:$0xff] %v6416
    %6435 = vst [vmem:[#allocation2 + $0x30] sm:$0xff] %v6421
    %6436 = vst [vmem:[#allocation2 + $0x38] sm:$0xff] %v6426
    // Predicated region
    $region26: #{tpu_custom_call.1} parent=1 // pred_check
      _
    $region27: #{tpu_custom_call.1} parent=1 // pred_check_branch
      %6438 = sbr.rel (0) target = $region29
    $region28: #{tpu_custom_call.1} parent=1 // pred_region
      %s6440 = ssub.s32 1024, 1024
      %6441 = vsyncadd [#allocation3], %s6440
      %s6442 = sshll.u32 [#allocation2], 4
      %s6443 = int_to_ptr.vmem [resolvable:$true] %s6442
      %6448 = dma.vmem_to_hbm [thread:$0]  %s6443, 1024, %s6, [#allocation3], 128, 128, 8
    $region29: #{tpu_custom_call.1} parent=1 // pred_fallthru
      _
    // Predicated region
    $region30: #{tpu_custom_call.1} parent=1 // pred_check
      _
    $region31: #{tpu_custom_call.1} parent=1 // pred_check_branch
      %6450 = sbr.rel (0) target = $region33
    $region32: #{tpu_custom_call.1} parent=1 // pred_region
      %6451 = dma.done [#allocation3], 1024
    $region33: #{tpu_custom_call.1} parent=1 // pred_fallthru
      _
    %6452 = vsyncpa [#allocation3], 1

</llo_original>
